<compile_context>
chip_gen: v7x
topology: tpu7x:2x2x1
jax: 0.10.0
libtpu: 0.0.40
codegen_flags: <defaults>
</compile_context>

<pallas_src>
import functools

import jax
import jax.numpy as jnp
from jax.experimental import pallas as pl
from jax.experimental.pallas import tpu as pltpu

# ----------------------------- configuration --------------------------------
IN_CHANNELS = 1          # PretrainedCNN default in_channels=1
FEAT_CH = 32             # stand-in for base_model.last_linear.in_features (2048)
HDIM = 512               # hdim in PretrainedCNN
OUT_DIM = 10             # out_dim default
LEAKY_SLOPE = 0.01       # F.leaky_relu default negative_slope
BN_EPS = 1e-5
LANE = 128               # lane width: pad channel dims to multiples of this
B_TILE = 8               # samples per stem grid step


def _pad_to_lane(n):
    return (-n) % LANE


# ----------------------------- Pallas kernels --------------------------------
def _stem_kernel(p_ref, w_ref, b_ref, o_ref, *, b_tile, hw, f):
    """Fused (conv0 o feat) -> leaky_relu -> spatial sum-pool for B_TILE samples.

    p_ref: (b_tile*hw, 9*Cin) bf16 im2col rows (K on lanes, MXU contracts it)
    w_ref: (9*Cin, f)         bf16 pre-composed conv0@feat weight
    b_ref: (1, f)             f32 pre-composed bias
    o_ref: (b_tile, f)        f32 pooled features (torch.sum over H, W)
    """
    # One MXU matmul finishes the whole 3x3 conv contraction for the block;
    # the (b_tile*hw, f) pre-activation lives only in VMEM/vregs.
    z = jnp.dot(p_ref[...], w_ref[...], preferred_element_type=jnp.float32)
    z = z + b_ref[...]                                   # fused bias (f32)
    z = jnp.where(z > 0, z, LEAKY_SLOPE * z)             # backbone stand-in act
    # Per-sample global sum-pool (leaky_relu precedes the pool, so it cannot be
    # commuted through the conv).
    o_ref[...] = jnp.sum(z.reshape(b_tile, hw, f), axis=1)


def stem_forward(x_nchw, w_fused, b_fused, *, b_tile=B_TILE):
    """x: (N, Cin, H, W) NCHW -> pooled features (N, F) with F lane-dense."""
    n, cin, h, w = x_nchw.shape
    k = 9 * cin
    f = w_fused.shape[1]
    assert n % b_tile == 0, (n, b_tile)

    # Layout plumbing in XLA: NCHW -> padded NHWC -> (N*H*W, 9*Cin) im2col rows
    # in (ky, kx, c)-major column order (matches the fused weight layout).
    xh = jnp.transpose(x_nchw, (0, 2, 3, 1))
    xp = jnp.pad(xh, ((0, 0), (1, 1), (1, 1), (0, 0)))
    taps = [xp[:, ky:ky + h, kx:kx + w, :]
            for ky in range(3) for kx in range(3)]       # each (N, H, W, Cin)
    patches = jnp.concatenate(taps, axis=-1).reshape(n * h * w, k)
    patches = patches.astype(jnp.bfloat16)

    kernel = functools.partial(_stem_kernel, b_tile=b_tile, hw=h * w, f=f)
    flops = 2 * n * h * w * k * f + 3 * n * h * w * f
    bytes_accessed = patches.size * 2 + w_fused.size * 2 + (n + 1) * f * 4

    return pl.pallas_call(
        kernel,
        out_shape=jax.ShapeDtypeStruct((n, f), jnp.float32),
        grid=(n // b_tile,),
        in_specs=[
            pl.BlockSpec((b_tile * h * w, k), lambda i: (i, 0)),
            pl.BlockSpec((k, f), lambda i: (0, 0)),
            pl.BlockSpec((1, f), lambda i: (0, 0)),
        ],
        out_specs=pl.BlockSpec((b_tile, f), lambda i: (i, 0)),
        compiler_params=pltpu.CompilerParams(
            dimension_semantics=("parallel",),
            vmem_limit_bytes=32 * 1024 * 1024,
        ),
        cost_estimate=pl.CostEstimate(
            flops=flops, transcendentals=0, bytes_accessed=bytes_accessed),
    )(patches, w_fused.astype(jnp.bfloat16), b_fused.reshape(1, f))


def _head_kernel(h_ref, w1_ref, b1_ref, g1_ref, be1_ref,
                 w2_ref, b2_ref, g2_ref, be2_ref, o_ref):
    """Fused lin_layers: Linear->BN->leaky_relu->Linear->BN (batch statistics).

    The full batch lives in one block because BatchNorm1d (training mode) needs
    batch mean / biased batch variance.  Matmul operands are bf16 with f32
    accumulation; BN math stays f32.  Output width is lane-padded; the wrapper
    slices back to out_dim.
    """
    h = h_ref[...].astype(jnp.bfloat16)                                 # (N, F)

    z = jnp.dot(h, w1_ref[...], preferred_element_type=jnp.float32) + b1_ref[...]
    mu = jnp.mean(z, axis=0, keepdims=True)
    var = jnp.mean((z - mu) ** 2, axis=0, keepdims=True)                # biased
    z = (z - mu) * jax.lax.rsqrt(var + BN_EPS) * g1_ref[...] + be1_ref[...]
    z = jnp.where(z > 0, z, LEAKY_SLOPE * z)                            # leaky_relu

    z2 = jnp.dot(z.astype(jnp.bfloat16), w2_ref[...],
                 preferred_element_type=jnp.float32) + b2_ref[...]
    mu2 = jnp.mean(z2, axis=0, keepdims=True)
    var2 = jnp.mean((z2 - mu2) ** 2, axis=0, keepdims=True)
    o_ref[...] = (z2 - mu2) * jax.lax.rsqrt(var2 + BN_EPS) * g2_ref[...] + be2_ref[...]


def mlp_head(h, lin1_w, lin1_b, bn1_g, bn1_b, lin2_w, lin2_b, bn2_g, bn2_b):
    """h: (N, F_pad) -> (N, OD_pad). All channel dims already lane-padded."""
    n, f = h.shape
    hd = lin1_w.shape[1]
    od = lin2_w.shape[1]
    args = (
        h,
        lin1_w.astype(jnp.bfloat16), lin1_b.reshape(1, hd),
        bn1_g.reshape(1, hd), bn1_b.reshape(1, hd),
        lin2_w.astype(jnp.bfloat16), lin2_b.reshape(1, od),
        bn2_g.reshape(1, od), bn2_b.reshape(1, od),
    )
    in_specs = [pl.BlockSpec(a.shape, lambda i: (0, 0)) for a in args]
    flops = 2 * n * (f * hd + hd * od) + 10 * n * (hd + od)
    bytes_accessed = (f * hd + hd * od) * 2 + (n * f + n * od + 3 * (hd + od)) * 4
    return pl.pallas_call(
        _head_kernel,
        out_shape=jax.ShapeDtypeStruct((n, od), jnp.float32),
        grid=(1,),
        in_specs=in_specs,
        out_specs=pl.BlockSpec((n, od), lambda i: (0, 0)),
        compiler_params=pltpu.CompilerParams(
            dimension_semantics=("arbitrary",),
            vmem_limit_bytes=32 * 1024 * 1024,
        ),
        cost_estimate=pl.CostEstimate(
            flops=flops, transcendentals=0, bytes_accessed=bytes_accessed),
    )(*args)


# ------------------------------ forward pass ---------------------------------
def pretrained_cnn_forward(x, params):
    """x: (N, C_in, H, W) float32, NCHW like the PyTorch module."""
    # --- Algebraic fusion of conv0 (3x3) and the 1x1 backbone stand-in.
    # Exact: there is no nonlinearity between conv0 and the feat layer.
    #   z = (xcol @ conv0_w + conv0_b) @ feat_w + feat_b
    #     =  xcol @ (conv0_w @ feat_w) + (conv0_b @ feat_w + feat_b)
    conv0_w = params["conv0_w"]                         # (9*Cin, 3), (ky,kx,c)-major
    feat_w = params["feat_w"]                           # (3, FEAT_CH)
    w_fused = conv0_w @ feat_w                          # (9*Cin, FEAT_CH)
    b_fused = params["conv0_b"] @ feat_w + params["feat_b"]

    # Lane-dense padding of the feature width (zeros -> padded lanes stay 0
    # through leaky_relu / sum-pool and hit zero rows of lin1_w: exact).
    fpad = _pad_to_lane(w_fused.shape[1])
    w_fused = jnp.pad(w_fused, ((0, 0), (0, fpad)))
    b_fused = jnp.pad(b_fused, ((0, fpad),))

    # --- Fused stem: conv0 o feat -> leaky_relu -> sum over (H, W).
    pooled = stem_forward(x, w_fused, b_fused)          # (N, FEAT_CH + fpad)

    # --- Fused head: LinearBlock(FEAT->512, BN, leaky) ; LinearBlock(512->out, BN)
    lin1_w = jnp.pad(params["lin1_w"], ((0, fpad), (0, 0)))     # zero rows for pad lanes
    opad = _pad_to_lane(params["lin2_w"].shape[1])
    lin2_w = jnp.pad(params["lin2_w"], ((0, 0), (0, opad)))
    lin2_b = jnp.pad(params["lin2_b"], ((0, opad),))
    bn2_g = jnp.pad(params["bn2_g"], ((0, opad),))
    bn2_b = jnp.pad(params["bn2_b"], ((0, opad),))

    out_padded = mlp_head(pooled,
                          lin1_w, params["lin1_b"], params["bn1_g"], params["bn1_b"],
                          lin2_w, lin2_b, bn2_g, bn2_b)          # (N, OUT_DIM + opad)
    return out_padded[:, :OUT_DIM]                               # (N, OUT_DIM)


# ------------------------------ parameters -----------------------------------
def init_params(key):
    ks = jax.random.split(key, 8)
    # conv0 weight in (KH, KW, Cin, Cout) layout -> reshaped to (9*Cin, Cout).
    # Note: PyTorch Conv2d stores (Cout, Cin, kH, kW); real checkpoints would
    # need a transpose before this reshape.
    conv0_w = 0.1 * jax.random.normal(ks[0], (3, 3, IN_CHANNELS, 3), jnp.float32)
    params = {
        "conv0_w": conv0_w.reshape(9 * IN_CHANNELS, 3),
        "conv0_b": 0.1 * jax.random.normal(ks[1], (3,), jnp.float32),
        # backbone stand-in (1x1 conv): 3 -> FEAT_CH
        "feat_w": 0.1 * jax.random.normal(ks[2], (3, FEAT_CH), jnp.float32),
        "feat_b": 0.1 * jax.random.normal(ks[3], (FEAT_CH,), jnp.float32),
        # LinearBlock 1: FEAT_CH -> HDIM (weights stored transposed: (in, out))
        "lin1_w": 0.05 * jax.random.normal(ks[4], (FEAT_CH, HDIM), jnp.float32),
        "lin1_b": 0.05 * jax.random.normal(ks[5], (HDIM,), jnp.float32),
        "bn1_g": jnp.ones((HDIM,), jnp.float32),
        "bn1_b": jnp.zeros((HDIM,), jnp.float32),
        # LinearBlock 2: HDIM -> OUT_DIM
        "lin2_w": 0.05 * jax.random.normal(ks[6], (HDIM, OUT_DIM), jnp.float32),
        "lin2_b": 0.05 * jax.random.normal(ks[7], (OUT_DIM,), jnp.float32),
        "bn2_g": jnp.ones((OUT_DIM,), jnp.float32),
        "bn2_b": jnp.zeros((OUT_DIM,), jnp.float32),
    }
    return params


# --------------------------------- main ---------------------------------------
if __name__ == "__main__":
    key = jax.random.PRNGKey(0)
    pkey, xkey = jax.random.split(key)
    params = init_params(pkey)

    # small deterministic input: batch=16 (2 grid steps of 8), in_channels=1,
    # 16x16 spatial (NCHW like the PyTorch module)
    x = jax.random.normal(xkey, (16, IN_CHANNELS, 16, 16), jnp.float32)

    fwd = jax.jit(lambda xx: pretrained_cnn_forward(xx, params))
    out = jax.block_until_ready(fwd(x))

    assert out.shape == (16, OUT_DIM), out.shape
    assert out.dtype == jnp.float32
    assert bool(jnp.all(jnp.isfinite(out)))
    print("KERNEL_OK")
</pallas_src>

<mosaic_0001>
module attributes {stable_mosaic.version = 11 : i64} {
  func.func @_stem_kernel(%arg0: i32, %arg1: memref<2048x9xbf16, #tpu.memory_space<vmem>>, %arg2: memref<9x128xbf16, #tpu.memory_space<vmem>>, %arg3: memref<1x128xf32, #tpu.memory_space<vmem>>, %arg4: memref<8x128xf32, #tpu.memory_space<vmem>>) attributes {dimension_semantics = [#tpu.dimension_semantics<parallel>], iteration_bounds = array<i64: 2>, scalar_prefetch = 0 : i64, scratch_operands = 0 : i64, tpu.core_type = #tpu.core_type<tc>, window_params = [{transform_indices = @transform_0, window_bounds = array<i64: 2048, 9>}, {pipeline_mode = #tpu.pipeline_mode<synchronous>, transform_indices = @transform_1, window_bounds = array<i64: 9, 128>}, {pipeline_mode = #tpu.pipeline_mode<synchronous>, transform_indices = @transform_2, window_bounds = array<i64: 1, 128>}, {transform_indices = @transform_3, window_bounds = array<i64: 8, 128>}]} {
    %c0 = arith.constant 0 : index
    %c0_0 = arith.constant 0 : index
    %0 = vector.load %arg1[%c0, %c0_0] : memref<2048x9xbf16, #tpu.memory_space<vmem>>, vector<2048x9xbf16>
    %c0_1 = arith.constant 0 : index
    %c0_2 = arith.constant 0 : index
    %1 = vector.load %arg2[%c0_1, %c0_2] : memref<9x128xbf16, #tpu.memory_space<vmem>>, vector<9x128xbf16>
    %cst = arith.constant dense<0.000000e+00> : vector<2048x128xf32>
    %2 = tpu.matmul %0, %1, %cst {dimension_numbers = #tpu.dot_dimension_numbers<[1], [0], [0], [1], [0, 0, 1, 1], [], []>} : vector<2048x9xbf16>, vector<9x128xbf16>, vector<2048x128xf32> -> vector<2048x128xf32>
    %c0_3 = arith.constant 0 : index
    %c0_4 = arith.constant 0 : index
    %3 = vector.load %arg3[%c0_3, %c0_4] : memref<1x128xf32, #tpu.memory_space<vmem>>, vector<1x128xf32>
    %4 = vector.broadcast %3 : vector<1x128xf32> to vector<2048x128xf32>
    %5 = arith.addf %2, %4 : vector<2048x128xf32>
    %cst_5 = arith.constant 0.000000e+00 : f32
    %6 = vector.broadcast %cst_5 : f32 to vector<2048x128xf32>
    %7 = arith.cmpf ogt, %5, %6 : vector<2048x128xf32>
    %cst_6 = arith.constant 0.00999999977 : f32
    %8 = vector.broadcast %cst_6 : f32 to vector<2048x128xf32>
    %9 = arith.mulf %8, %5 : vector<2048x128xf32>
    %10 = arith.select %7, %5, %9 : vector<2048x128xi1>, vector<2048x128xf32>
    %11 = vector.shape_cast %10 : vector<2048x128xf32> to vector<8x256x128xf32>
    %cst_7 = arith.constant dense<0.000000e+00> : vector<8x128xf32>
    %12 = vector.multi_reduction <add>, %11, %cst_7 [1] : vector<8x256x128xf32> to vector<8x128xf32>
    %c0_8 = arith.constant 0 : index
    %c0_9 = arith.constant 0 : index
    %13 = vector.load %arg4[%c0_8, %c0_9] : memref<8x128xf32, #tpu.memory_space<vmem>>, vector<8x128xf32>
    tpu.vector_store %arg4[%c0_8, %c0_9], %12 {strides = array<i32>} : memref<8x128xf32, #tpu.memory_space<vmem>>, vector<8x128xf32>,
    return
  }
  func.func @transform_0(%arg0: i32) -> (i32, i32) {
    %c0_i32 = arith.constant 0 : i32
    %c0_i32_0 = arith.constant 0 : i32
    return %arg0, %c0_i32 : i32, i32
  }
  func.func @transform_1(%arg0: i32) -> (i32, i32) {
    %c0_i32 = arith.constant 0 : i32
    %c0_i32_0 = arith.constant 0 : i32
    %c0_i32_1 = arith.constant 0 : i32
    return %c0_i32, %c0_i32_0 : i32, i32
  }
  func.func @transform_2(%arg0: i32) -> (i32, i32) {
    %c0_i32 = arith.constant 0 : i32
    %c0_i32_0 = arith.constant 0 : i32
    %c0_i32_1 = arith.constant 0 : i32
    return %c0_i32, %c0_i32_0 : i32, i32
  }
  func.func @transform_3(%arg0: i32) -> (i32, i32) {
    %c0_i32 = arith.constant 0 : i32
    %c0_i32_0 = arith.constant 0 : i32
    return %arg0, %c0_i32 : i32, i32
  }
}

module attributes {stable_mosaic.version = 11 : i64} {
  func.func @_head_kernel(%arg0: i32, %arg1: memref<16x128xf32, #tpu.memory_space<vmem>>, %arg2: memref<128x512xbf16, #tpu.memory_space<vmem>>, %arg3: memref<1x512xf32, #tpu.memory_space<vmem>>, %arg4: memref<1x512xf32, #tpu.memory_space<vmem>>, %arg5: memref<1x512xf32, #tpu.memory_space<vmem>>, %arg6: memref<512x128xbf16, #tpu.memory_space<vmem>>, %arg7: memref<1x128xf32, #tpu.memory_space<vmem>>, %arg8: memref<1x128xf32, #tpu.memory_space<vmem>>, %arg9: memref<1x128xf32, #tpu.memory_space<vmem>>, %arg10: memref<16x128xf32, #tpu.memory_space<vmem>>) attributes {dimension_semantics = [#tpu.dimension_semantics<arbitrary>], iteration_bounds = array<i64: 1>, scalar_prefetch = 0 : i64, scratch_operands = 0 : i64, tpu.core_type = #tpu.core_type<tc>, window_params = [{pipeline_mode = #tpu.pipeline_mode<synchronous>, transform_indices = @transform_0, window_bounds = array<i64: 16, 128>}, {pipeline_mode = #tpu.pipeline_mode<synchronous>, transform_indices = @transform_1, window_bounds = array<i64: 128, 512>}, {pipeline_mode = #tpu.pipeline_mode<synchronous>, transform_indices = @transform_2, window_bounds = array<i64: 1, 512>}, {pipeline_mode = #tpu.pipeline_mode<synchronous>, transform_indices = @transform_3, window_bounds = array<i64: 1, 512>}, {pipeline_mode = #tpu.pipeline_mode<synchronous>, transform_indices = @transform_4, window_bounds = array<i64: 1, 512>}, {pipeline_mode = #tpu.pipeline_mode<synchronous>, transform_indices = @transform_5, window_bounds = array<i64: 512, 128>}, {pipeline_mode = #tpu.pipeline_mode<synchronous>, transform_indices = @transform_6, window_bounds = array<i64: 1, 128>}, {pipeline_mode = #tpu.pipeline_mode<synchronous>, transform_indices = @transform_7, window_bounds = array<i64: 1, 128>}, {pipeline_mode = #tpu.pipeline_mode<synchronous>, transform_indices = @transform_8, window_bounds = array<i64: 1, 128>}, {pipeline_mode = #tpu.pipeline_mode<synchronous>, transform_indices = @transform_9, window_bounds = array<i64: 16, 128>}]} {
    %c0 = arith.constant 0 : index
    %c0_0 = arith.constant 0 : index
    %0 = vector.load %arg1[%c0, %c0_0] : memref<16x128xf32, #tpu.memory_space<vmem>>, vector<16x128xf32>
    %1 = arith.truncf %0 : vector<16x128xf32> to vector<16x128xbf16>
    %c0_1 = arith.constant 0 : index
    %c0_2 = arith.constant 0 : index
    %2 = vector.load %arg2[%c0_1, %c0_2] : memref<128x512xbf16, #tpu.memory_space<vmem>>, vector<128x512xbf16>
    %cst = arith.constant dense<0.000000e+00> : vector<16x512xf32>
    %3 = tpu.matmul %1, %2, %cst {dimension_numbers = #tpu.dot_dimension_numbers<[1], [0], [0], [1], [0, 0, 1, 1], [], []>} : vector<16x128xbf16>, vector<128x512xbf16>, vector<16x512xf32> -> vector<16x512xf32>
    %c0_3 = arith.constant 0 : index
    %c0_4 = arith.constant 0 : index
    %4 = vector.load %arg3[%c0_3, %c0_4] : memref<1x512xf32, #tpu.memory_space<vmem>>, vector<1x512xf32>
    %5 = vector.broadcast %4 : vector<1x512xf32> to vector<16x512xf32>
    %6 = arith.addf %3, %5 : vector<16x512xf32>
    %cst_5 = arith.constant dense<0.000000e+00> : vector<512xf32>
    %7 = vector.multi_reduction <add>, %6, %cst_5 [0] : vector<16x512xf32> to vector<512xf32>
    %8 = vector.shape_cast %7 : vector<512xf32> to vector<1x512xf32>
    %cst_6 = arith.constant 1.600000e+01 : f32
    %9 = vector.broadcast %cst_6 : f32 to vector<1x512xf32>
    %10 = arith.divf %8, %9 : vector<1x512xf32>
    %11 = vector.broadcast %10 : vector<1x512xf32> to vector<16x512xf32>
    %12 = arith.subf %6, %11 : vector<16x512xf32>
    %13 = arith.mulf %12, %12 : vector<16x512xf32>
    %cst_7 = arith.constant dense<0.000000e+00> : vector<512xf32>
    %14 = vector.multi_reduction <add>, %13, %cst_7 [0] : vector<16x512xf32> to vector<512xf32>
    %15 = vector.shape_cast %14 : vector<512xf32> to vector<1x512xf32>
    %cst_8 = arith.constant 1.600000e+01 : f32
    %16 = vector.broadcast %cst_8 : f32 to vector<1x512xf32>
    %17 = arith.divf %15, %16 : vector<1x512xf32>
    %18 = vector.broadcast %10 : vector<1x512xf32> to vector<16x512xf32>
    %19 = arith.subf %6, %18 : vector<16x512xf32>
    %cst_9 = arith.constant 9.99999974E-6 : f32
    %20 = vector.broadcast %cst_9 : f32 to vector<1x512xf32>
    %21 = arith.addf %17, %20 : vector<1x512xf32>
    %22 = math.rsqrt %21 : vector<1x512xf32>
    %23 = vector.broadcast %22 : vector<1x512xf32> to vector<16x512xf32>
    %24 = arith.mulf %19, %23 : vector<16x512xf32>
    %c0_10 = arith.constant 0 : index
    %c0_11 = arith.constant 0 : index
    %25 = vector.load %arg4[%c0_10, %c0_11] : memref<1x512xf32, #tpu.memory_space<vmem>>, vector<1x512xf32>
    %26 = vector.broadcast %25 : vector<1x512xf32> to vector<16x512xf32>
    %27 = arith.mulf %24, %26 : vector<16x512xf32>
    %c0_12 = arith.constant 0 : index
    %c0_13 = arith.constant 0 : index
    %28 = vector.load %arg5[%c0_12, %c0_13] : memref<1x512xf32, #tpu.memory_space<vmem>>, vector<1x512xf32>
    %29 = vector.broadcast %28 : vector<1x512xf32> to vector<16x512xf32>
    %30 = arith.addf %27, %29 : vector<16x512xf32>
    %cst_14 = arith.constant 0.000000e+00 : f32
    %31 = vector.broadcast %cst_14 : f32 to vector<16x512xf32>
    %32 = arith.cmpf ogt, %30, %31 : vector<16x512xf32>
    %cst_15 = arith.constant 0.00999999977 : f32
    %33 = vector.broadcast %cst_15 : f32 to vector<16x512xf32>
    %34 = arith.mulf %33, %30 : vector<16x512xf32>
    %35 = arith.select %32, %30, %34 : vector<16x512xi1>, vector<16x512xf32>
    %36 = arith.truncf %35 : vector<16x512xf32> to vector<16x512xbf16>
    %c0_16 = arith.constant 0 : index
    %c0_17 = arith.constant 0 : index
    %37 = vector.load %arg6[%c0_16, %c0_17] : memref<512x128xbf16, #tpu.memory_space<vmem>>, vector<512x128xbf16>
    %cst_18 = arith.constant dense<0.000000e+00> : vector<16x128xf32>
    %38 = tpu.matmul %36, %37, %cst_18 {dimension_numbers = #tpu.dot_dimension_numbers<[1], [0], [0], [1], [0, 0, 1, 1], [], []>} : vector<16x512xbf16>, vector<512x128xbf16>, vector<16x128xf32> -> vector<16x128xf32>
    %c0_19 = arith.constant 0 : index
    %c0_20 = arith.constant 0 : index
    %39 = vector.load %arg7[%c0_19, %c0_20] : memref<1x128xf32, #tpu.memory_space<vmem>>, vector<1x128xf32>
    %40 = vector.broadcast %39 : vector<1x128xf32> to vector<16x128xf32>
    %41 = arith.addf %38, %40 : vector<16x128xf32>
    %cst_21 = arith.constant dense<0.000000e+00> : vector<128xf32>
    %42 = vector.multi_reduction <add>, %41, %cst_21 [0] : vector<16x128xf32> to vector<128xf32>
    %43 = vector.shape_cast %42 : vector<128xf32> to vector<1x128xf32>
    %cst_22 = arith.constant 1.600000e+01 : f32
    %44 = vector.broadcast %cst_22 : f32 to vector<1x128xf32>
    %45 = arith.divf %43, %44 : vector<1x128xf32>
    %46 = vector.broadcast %45 : vector<1x128xf32> to vector<16x128xf32>
    %47 = arith.subf %41, %46 : vector<16x128xf32>
    %48 = arith.mulf %47, %47 : vector<16x128xf32>
    %cst_23 = arith.constant dense<0.000000e+00> : vector<128xf32>
    %49 = vector.multi_reduction <add>, %48, %cst_23 [0] : vector<16x128xf32> to vector<128xf32>
    %50 = vector.shape_cast %49 : vector<128xf32> to vector<1x128xf32>
    %cst_24 = arith.constant 1.600000e+01 : f32
    %51 = vector.broadcast %cst_24 : f32 to vector<1x128xf32>
    %52 = arith.divf %50, %51 : vector<1x128xf32>
    %53 = vector.broadcast %45 : vector<1x128xf32> to vector<16x128xf32>
    %54 = arith.subf %41, %53 : vector<16x128xf32>
    %cst_25 = arith.constant 9.99999974E-6 : f32
    %55 = vector.broadcast %cst_25 : f32 to vector<1x128xf32>
    %56 = arith.addf %52, %55 : vector<1x128xf32>
    %57 = math.rsqrt %56 : vector<1x128xf32>
    %58 = vector.broadcast %57 : vector<1x128xf32> to vector<16x128xf32>
    %59 = arith.mulf %54, %58 : vector<16x128xf32>
    %c0_26 = arith.constant 0 : index
    %c0_27 = arith.constant 0 : index
    %60 = vector.load %arg8[%c0_26, %c0_27] : memref<1x128xf32, #tpu.memory_space<vmem>>, vector<1x128xf32>
    %61 = vector.broadcast %60 : vector<1x128xf32> to vector<16x128xf32>
    %62 = arith.mulf %59, %61 : vector<16x128xf32>
    %c0_28 = arith.constant 0 : index
    %c0_29 = arith.constant 0 : index
    %63 = vector.load %arg9[%c0_28, %c0_29] : memref<1x128xf32, #tpu.memory_space<vmem>>, vector<1x128xf32>
    %64 = vector.broadcast %63 : vector<1x128xf32> to vector<16x128xf32>
    %65 = arith.addf %62, %64 : vector<16x128xf32>
    %c0_30 = arith.constant 0 : index
    %c0_31 = arith.constant 0 : index
    %66 = vector.load %arg10[%c0_30, %c0_31] : memref<16x128xf32, #tpu.memory_space<vmem>>, vector<16x128xf32>
    tpu.vector_store %arg10[%c0_30, %c0_31], %65 {strides = array<i32>} : memref<16x128xf32, #tpu.memory_space<vmem>>, vector<16x128xf32>,
    return
  }
  func.func @transform_0(%arg0: i32) -> (i32, i32) {
    %c0_i32 = arith.constant 0 : i32
    %c0_i32_0 = arith.constant 0 : i32
    %c0_i32_1 = arith.constant 0 : i32
    return %c0_i32, %c0_i32_0 : i32, i32
  }
  func.func @transform_1(%arg0: i32) -> (i32, i32) {
    %c0_i32 = arith.constant 0 : i32
    %c0_i32_0 = arith.constant 0 : i32
    %c0_i32_1 = arith.constant 0 : i32
    return %c0_i32, %c0_i32_0 : i32, i32
  }
  func.func @transform_2(%arg0: i32) -> (i32, i32) {
    %c0_i32 = arith.constant 0 : i32
    %c0_i32_0 = arith.constant 0 : i32
    %c0_i32_1 = arith.constant 0 : i32
    return %c0_i32, %c0_i32_0 : i32, i32
  }
  func.func @transform_3(%arg0: i32) -> (i32, i32) {
    %c0_i32 = arith.constant 0 : i32
    %c0_i32_0 = arith.constant 0 : i32
    %c0_i32_1 = arith.constant 0 : i32
    return %c0_i32, %c0_i32_0 : i32, i32
  }
  func.func @transform_4(%arg0: i32) -> (i32, i32) {
    %c0_i32 = arith.constant 0 : i32
    %c0_i32_0 = arith.constant 0 : i32
    %c0_i32_1 = arith.constant 0 : i32
    return %c0_i32, %c0_i32_0 : i32, i32
  }
  func.func @transform_5(%arg0: i32) -> (i32, i32) {
    %c0_i32 = arith.constant 0 : i32
    %c0_i32_0 = arith.constant 0 : i32
    %c0_i32_1 = arith.constant 0 : i32
    return %c0_i32, %c0_i32_0 : i32, i32
  }
  func.func @transform_6(%arg0: i32) -> (i32, i32) {
    %c0_i32 = arith.constant 0 : i32
    %c0_i32_0 = arith.constant 0 : i32
    %c0_i32_1 = arith.constant 0 : i32
    return %c0_i32, %c0_i32_0 : i32, i32
  }
  func.func @transform_7(%arg0: i32) -> (i32, i32) {
    %c0_i32 = arith.constant 0 : i32
    %c0_i32_0 = arith.constant 0 : i32
    %c0_i32_1 = arith.constant 0 : i32
    return %c0_i32, %c0_i32_0 : i32, i32
  }
  func.func @transform_8(%arg0: i32) -> (i32, i32) {
    %c0_i32 = arith.constant 0 : i32
    %c0_i32_0 = arith.constant 0 : i32
    %c0_i32_1 = arith.constant 0 : i32
    return %c0_i32, %c0_i32_0 : i32, i32
  }
  func.func @transform_9(%arg0: i32) -> (i32, i32) {
    %c0_i32 = arith.constant 0 : i32
    %c0_i32_0 = arith.constant 0 : i32
    %c0_i32_1 = arith.constant 0 : i32
    return %c0_i32, %c0_i32_0 : i32, i32
  }
}

</mosaic_0001>

<llo_original>
// kernel: _lambda_.3
$region0: #{_lambda_.3}
  #allocation0 [shape = 'u32[]', space=smem, size = 0x4, offset = 0x4, fixed_abs, tag = 'smem constant byte address 0x4 - core index']
  #allocation1 [shape = 'u32[144,128]{1,0:T(1,128)}', space=vmem, size = 0x12000, scoped, tag = 'internal scratch']
  %s0 = inlined_call_operand.vmem [shape: f32[16,128], index: 0, kind: input, shape index: {}]
  %s1 = inlined_call_operand.vmem [shape: bf16[128,512], index: 1, kind: input, shape index: {}]
  %s2 = inlined_call_operand.vmem [shape: f32[1,512], index: 2, kind: input, shape index: {}]
  %s3 = inlined_call_operand.vmem [shape: f32[1,512], index: 3, kind: input, shape index: {}]
  %s4 = inlined_call_operand.vmem [shape: f32[1,512], index: 4, kind: input, shape index: {}]
  %s5 = inlined_call_operand.vmem [shape: bf16[512,128], index: 5, kind: input, shape index: {}]
  %s6 = inlined_call_operand.vmem [shape: f32[1,128], index: 6, kind: input, shape index: {}]
  %s7 = inlined_call_operand.vmem [shape: f32[1,128], index: 7, kind: input, shape index: {}]
  %s8 = inlined_call_operand.vmem [shape: f32[1,128], index: 8, kind: input, shape index: {}]
  %s9 = inlined_call_operand.hbm [shape: f32[16,128], index: 9, kind: output, shape index: {}]
  %s10 = sld [smem:[#allocation0]]
  $region46: #{_lambda_.3} parent=0
    _
  %s12 = ssub.s32 1, %s10
  %s13 = scalar_select 0, %s12, %s10
  $region1: #{_lambda_.3} parent=0
    #allocation2 [shape = 'u8[8192]{0}', space=vmem, size = 0x2000, scoped, tag = 'output window, operand 0, single buffered']
    #allocation3 [shape = 's32[1]{0}', space=sflag, size = 0x4, scoped, tag = 'scoped memory for _lambda_.3']
    %14 = vsyncpa [#allocation3], 0
    // Predicated region
    $region2: #{_lambda_.3} parent=1 // pred_check
      _
    $region3: #{_lambda_.3} parent=1 // pred_check_branch
      %16 = sbr.rel (0) target = $region5
    $region4: #{_lambda_.3} parent=1 // pred_region
      _
    $region5: #{_lambda_.3} parent=1 // pred_fallthru
      _
    // Predicated region
    $region6: #{_lambda_.3} parent=1 // pred_check
      _
    $region7: #{_lambda_.3} parent=1 // pred_check_branch
      %18 = sbr.rel (0) target = $region9
    $region8: #{_lambda_.3} parent=1 // pred_region
      _
    $region9: #{_lambda_.3} parent=1 // pred_fallthru
      _
    // Predicated region
    $region10: #{_lambda_.3} parent=1 // pred_check
      _
    $region11: #{_lambda_.3} parent=1 // pred_check_branch
      %20 = sbr.rel (0) target = $region13
    $region12: #{_lambda_.3} parent=1 // pred_region
      _
    $region13: #{_lambda_.3} parent=1 // pred_fallthru
      _
    // Predicated region
    $region14: #{_lambda_.3} parent=1 // pred_check
      _
    $region15: #{_lambda_.3} parent=1 // pred_check_branch
      %22 = sbr.rel (0) target = $region17
    $region16: #{_lambda_.3} parent=1 // pred_region
      _
    $region17: #{_lambda_.3} parent=1 // pred_fallthru
      _
    // Predicated region
    $region18: #{_lambda_.3} parent=1 // pred_check
      _
    $region19: #{_lambda_.3} parent=1 // pred_check_branch
      %24 = sbr.rel (0) target = $region21
    $region20: #{_lambda_.3} parent=1 // pred_region
      _
    $region21: #{_lambda_.3} parent=1 // pred_fallthru
      _
    // Predicated region
    $region22: #{_lambda_.3} parent=1 // pred_check
      _
    $region23: #{_lambda_.3} parent=1 // pred_check_branch
      %26 = sbr.rel (0) target = $region25
    $region24: #{_lambda_.3} parent=1 // pred_region
      _
    $region25: #{_lambda_.3} parent=1 // pred_fallthru
      _
    // Predicated region
    $region26: #{_lambda_.3} parent=1 // pred_check
      _
    $region27: #{_lambda_.3} parent=1 // pred_check_branch
      %28 = sbr.rel (0) target = $region29
    $region28: #{_lambda_.3} parent=1 // pred_region
      _
    $region29: #{_lambda_.3} parent=1 // pred_fallthru
      _
    // Predicated region
    $region30: #{_lambda_.3} parent=1 // pred_check
      _
    $region31: #{_lambda_.3} parent=1 // pred_check_branch
      %30 = sbr.rel (0) target = $region33
    $region32: #{_lambda_.3} parent=1 // pred_region
      _
    $region33: #{_lambda_.3} parent=1 // pred_fallthru
      _
    // Predicated region
    $region34: #{_lambda_.3} parent=1 // pred_check
      _
    $region35: #{_lambda_.3} parent=1 // pred_check_branch
      %32 = sbr.rel (0) target = $region37
    $region36: #{_lambda_.3} parent=1 // pred_region
      _
    $region37: #{_lambda_.3} parent=1 // pred_fallthru
      _
    %v34 = vld [vmem:[%s0] sm:$0xff]
    %v35 = vld [vmem:[%s0 + $0x8] sm:$0xff]
    %v36 = vpack.c.bf16 %v35, %v34
    %v37 = vld [vmem:[%s1] sm:$0xff]
    %v38 = vld [vmem:[%s1 + $0x8] sm:$0xff]
    %v39 = vld [vmem:[%s1 + $0x10] sm:$0xff]
    %v40 = vld [vmem:[%s1 + $0x18] sm:$0xff]
    %v41 = vld [vmem:[%s1 + $0x20] sm:$0xff]
    %v42 = vld [vmem:[%s1 + $0x28] sm:$0xff]
    %v43 = vld [vmem:[%s1 + $0x30] sm:$0xff]
    %v44 = vld [vmem:[%s1 + $0x38] sm:$0xff]
    %v45 = vld [vmem:[%s1 + $0x40] sm:$0xff]
    %v46 = vld [vmem:[%s1 + $0x48] sm:$0xff]
    %v47 = vld [vmem:[%s1 + $0x50] sm:$0xff]
    %v48 = vld [vmem:[%s1 + $0x58] sm:$0xff]
    %v49 = vld [vmem:[%s1 + $0x60] sm:$0xff]
    %v50 = vld [vmem:[%s1 + $0x68] sm:$0xff]
    %v51 = vld [vmem:[%s1 + $0x70] sm:$0xff]
    %v52 = vld [vmem:[%s1 + $0x78] sm:$0xff]
    %v53 = vld [vmem:[%s1 + $0x80] sm:$0xff]
    %v54 = vld [vmem:[%s1 + $0x88] sm:$0xff]
    %v55 = vld [vmem:[%s1 + $0x90] sm:$0xff]
    %v56 = vld [vmem:[%s1 + $0x98] sm:$0xff]
    %v57 = vld [vmem:[%s1 + $0xa0] sm:$0xff]
    %v58 = vld [vmem:[%s1 + $0xa8] sm:$0xff]
    %v59 = vld [vmem:[%s1 + $0xb0] sm:$0xff]
    %v60 = vld [vmem:[%s1 + $0xb8] sm:$0xff]
    %v61 = vld [vmem:[%s1 + $0xc0] sm:$0xff]
    %v62 = vld [vmem:[%s1 + $0xc8] sm:$0xff]
    %v63 = vld [vmem:[%s1 + $0xd0] sm:$0xff]
    %v64 = vld [vmem:[%s1 + $0xd8] sm:$0xff]
    %v65 = vld [vmem:[%s1 + $0xe0] sm:$0xff]
    %v66 = vld [vmem:[%s1 + $0xe8] sm:$0xff]
    %v67 = vld [vmem:[%s1 + $0xf0] sm:$0xff]
    %v68 = vld [vmem:[%s1 + $0xf8] sm:$0xff]
    %v69 = vld [vmem:[%s2] sm:$0xf]
    %v71 = vlaneseq
    %v72 = vshrl.u32 %v71, 7
    %v73 = vsub.s32 0, %v72
    %v74 = vrot.slane %v69, %v73
    %v75 = vlaneseq
    %v76 = vshrl.u32 %v75, 7
    %v77 = vsub.s32 1, %v76
    %v78 = vrot.slane %v69, %v77
    %v79 = vlaneseq
    %v80 = vshrl.u32 %v79, 7
    %v81 = vsub.s32 2, %v80
    %v82 = vrot.slane %v69, %v81
    %v83 = vlaneseq
    %v84 = vshrl.u32 %v83, 7
    %v85 = vsub.s32 3, %v84
    %v86 = vrot.slane %v69, %v85
    %v123 = vunpack.c.l.b16 %v37
    %v124 = vunpack.c.h.b16 %v37
    %v125 = vunpack.c.l.b16 %v38
    %v126 = vunpack.c.h.b16 %v38
    %v127 = vunpack.c.l.b16 %v39
    %v128 = vunpack.c.h.b16 %v39
    %v129 = vunpack.c.l.b16 %v40
    %v130 = vunpack.c.h.b16 %v40
    %v131 = vunpack.c.l.b16 %v41
    %v132 = vunpack.c.h.b16 %v41
    %v133 = vunpack.c.l.b16 %v42
    %v134 = vunpack.c.h.b16 %v42
    %v135 = vunpack.c.l.b16 %v43
    %v136 = vunpack.c.h.b16 %v43
    %v137 = vunpack.c.l.b16 %v44
    %v138 = vunpack.c.h.b16 %v44
    %v139 = vunpack.c.l.b16 %v45
    %v140 = vunpack.c.h.b16 %v45
    %v141 = vunpack.c.l.b16 %v46
    %v142 = vunpack.c.h.b16 %v46
    %v143 = vunpack.c.l.b16 %v47
    %v144 = vunpack.c.h.b16 %v47
    %v145 = vunpack.c.l.b16 %v48
    %v146 = vunpack.c.h.b16 %v48
    %v147 = vunpack.c.l.b16 %v49
    %v148 = vunpack.c.h.b16 %v49
    %v149 = vunpack.c.l.b16 %v50
    %v150 = vunpack.c.h.b16 %v50
    %v151 = vunpack.c.l.b16 %v51
    %v152 = vunpack.c.h.b16 %v51
    %v153 = vunpack.c.l.b16 %v52
    %v154 = vunpack.c.h.b16 %v52
    %v155 = vunpack.c.l.b16 %v53
    %v156 = vunpack.c.h.b16 %v53
    %v157 = vunpack.c.l.b16 %v54
    %v158 = vunpack.c.h.b16 %v54
    %v159 = vunpack.c.l.b16 %v55
    %v160 = vunpack.c.h.b16 %v55
    %v161 = vunpack.c.l.b16 %v56
    %v162 = vunpack.c.h.b16 %v56
    %v163 = vunpack.c.l.b16 %v57
    %v164 = vunpack.c.h.b16 %v57
    %v165 = vunpack.c.l.b16 %v58
    %v166 = vunpack.c.h.b16 %v58
    %v167 = vunpack.c.l.b16 %v59
    %v168 = vunpack.c.h.b16 %v59
    %v169 = vunpack.c.l.b16 %v60
    %v170 = vunpack.c.h.b16 %v60
    %v171 = vunpack.c.l.b16 %v61
    %v172 = vunpack.c.h.b16 %v61
    %v173 = vunpack.c.l.b16 %v62
    %v174 = vunpack.c.h.b16 %v62
    %v175 = vunpack.c.l.b16 %v63
    %v176 = vunpack.c.h.b16 %v63
    %v177 = vunpack.c.l.b16 %v64
    %v178 = vunpack.c.h.b16 %v64
    %v179 = vunpack.c.l.b16 %v65
    %v180 = vunpack.c.h.b16 %v65
    %v181 = vunpack.c.l.b16 %v66
    %v182 = vunpack.c.h.b16 %v66
    %v183 = vunpack.c.l.b16 %v67
    %v184 = vunpack.c.h.b16 %v67
    %v185 = vunpack.c.l.b16 %v68
    %v186 = vunpack.c.h.b16 %v68
    %v187 = vpack.c.b16 %v127, %v123
    %v188 = vpack.c.b16 %v128, %v124
    %v189 = vpack.c.b16 %v129, %v125
    %v190 = vpack.c.b16 %v130, %v126
    %v191 = vpack.c.b16 %v135, %v131
    %v192 = vpack.c.b16 %v136, %v132
    %v193 = vpack.c.b16 %v137, %v133
    %v194 = vpack.c.b16 %v138, %v134
    %v195 = vpack.c.b16 %v143, %v139
    %v196 = vpack.c.b16 %v144, %v140
    %v197 = vpack.c.b16 %v145, %v141
    %v198 = vpack.c.b16 %v146, %v142
    %v199 = vpack.c.b16 %v151, %v147
    %v200 = vpack.c.b16 %v152, %v148
    %v201 = vpack.c.b16 %v153, %v149
    %v202 = vpack.c.b16 %v154, %v150
    %v203 = vpack.c.b16 %v159, %v155
    %v204 = vpack.c.b16 %v160, %v156
    %v205 = vpack.c.b16 %v161, %v157
    %v206 = vpack.c.b16 %v162, %v158
    %v207 = vpack.c.b16 %v167, %v163
    %v208 = vpack.c.b16 %v168, %v164
    %v209 = vpack.c.b16 %v169, %v165
    %v210 = vpack.c.b16 %v170, %v166
    %v211 = vpack.c.b16 %v175, %v171
    %v212 = vpack.c.b16 %v176, %v172
    %v213 = vpack.c.b16 %v177, %v173
    %v214 = vpack.c.b16 %v178, %v174
    %v215 = vpack.c.b16 %v183, %v179
    %v216 = vpack.c.b16 %v184, %v180
    %v217 = vpack.c.b16 %v185, %v181
    %v218 = vpack.c.b16 %v186, %v182
    %251 = vmatprep.subr.bf16.mxu0 %v188
    %252 = vmatpush1.bf16.msra.mxu0 %v187
    %253 = vmatprep.subr.bf16.mxu0 %v192
    %254 = vmatpush1.bf16.msra.mxu0 %v191
    %255 = vmatprep.subr.bf16.mxu0 %v196
    %256 = vmatpush1.bf16.msra.mxu0 %v195
    %257 = vmatprep.subr.bf16.mxu0 %v200
    %258 = vmatpush1.bf16.msra.mxu0 %v199
    %259 = vmatprep.subr.bf16.mxu0 %v204
    %260 = vmatpush1.bf16.msra.mxu0 %v203
    %261 = vmatprep.subr.bf16.mxu0 %v208
    %262 = vmatpush1.bf16.msra.mxu0 %v207
    %263 = vmatprep.subr.bf16.mxu0 %v212
    %264 = vmatpush1.bf16.msra.mxu0 %v211
    %265 = vmatprep.subr.bf16.mxu0 %v216
    %266 = vmatpush1.bf16.msra.mxu0 %v215
    %267 = vmatprep.subr.bf16.mxu0 0
    %268 = vmatpush1.bf16.msra.mxu0 0
    %269 = vmatprep.subr.bf16.mxu0 0
    %270 = vmatpush1.bf16.msra.mxu0 0
    %271 = vmatprep.subr.bf16.mxu0 0
    %272 = vmatpush1.bf16.msra.mxu0 0
    %273 = vmatprep.subr.bf16.mxu0 0
    %274 = vmatpush1.bf16.msra.mxu0 0
    %275 = vmatprep.subr.bf16.mxu0 0
    %276 = vmatpush1.bf16.msra.mxu0 0
    %277 = vmatprep.subr.bf16.mxu0 0
    %278 = vmatpush1.bf16.msra.mxu0 0
    %279 = vmatprep.subr.bf16.mxu0 0
    %280 = vmatpush1.bf16.msra.mxu0 0
    %281 = vmatprep.subr.bf16.mxu0 0
    %282 = vmatpush1.bf16.msra.mxu0 0
    %283 = vmatprep.mubr.bf16.mxu0 0
    %284 = vmatmul.mubr.bf16.gmra.mrb[0].mxu0 %v36
    %v285 = vpop.f32.mrb[0].mxu0
    %v286 = vadd.f32 %v74, %v285
    %v287 = vpop.f32.mrb[0].mxu0
    %v288 = vadd.f32 %v78, %v287
    %v289 = vpop.f32.mrb[0].mxu0
    %v290 = vadd.f32 %v74, %v289
    %v291 = vpop.f32.mrb[0].mxu0
    %v292 = vadd.f32 %v78, %v291
    %293 = vdwg.mxu0
    %294 = vmatprep.subr.bf16.mxu0 %v190
    %295 = vmatpush1.bf16.msra.mxu0 %v189
    %296 = vmatprep.subr.bf16.mxu0 %v194
    %297 = vmatpush1.bf16.msra.mxu0 %v193
    %298 = vmatprep.subr.bf16.mxu0 %v198
    %299 = vmatpush1.bf16.msra.mxu0 %v197
    %300 = vmatprep.subr.bf16.mxu0 %v202
    %301 = vmatpush1.bf16.msra.mxu0 %v201
    %302 = vmatprep.subr.bf16.mxu0 %v206
    %303 = vmatpush1.bf16.msra.mxu0 %v205
    %304 = vmatprep.subr.bf16.mxu0 %v210
    %305 = vmatpush1.bf16.msra.mxu0 %v209
    %306 = vmatprep.subr.bf16.mxu0 %v214
    %307 = vmatpush1.bf16.msra.mxu0 %v213
    %308 = vmatprep.subr.bf16.mxu0 %v218
    %309 = vmatpush1.bf16.msra.mxu0 %v217
    %310 = vmatprep.subr.bf16.mxu0 0
    %311 = vmatpush1.bf16.msra.mxu0 0
    %312 = vmatprep.subr.bf16.mxu0 0
    %313 = vmatpush1.bf16.msra.mxu0 0
    %314 = vmatprep.subr.bf16.mxu0 0
    %315 = vmatpush1.bf16.msra.mxu0 0
    %316 = vmatprep.subr.bf16.mxu0 0
    %317 = vmatpush1.bf16.msra.mxu0 0
    %318 = vmatprep.subr.bf16.mxu0 0
    %319 = vmatpush1.bf16.msra.mxu0 0
    %320 = vmatprep.subr.bf16.mxu0 0
    %321 = vmatpush1.bf16.msra.mxu0 0
    %322 = vmatprep.subr.bf16.mxu0 0
    %323 = vmatpush1.bf16.msra.mxu0 0
    %324 = vmatprep.subr.bf16.mxu0 0
    %325 = vmatpush1.bf16.msra.mxu0 0
    %326 = vmatprep.mubr.bf16.mxu0 0
    %327 = vmatmul.mubr.bf16.gmra.mrb[0].mxu0 %v36
    %v328 = vpop.f32.mrb[0].mxu0
    %v329 = vadd.f32 %v82, %v328
    %v330 = vpop.f32.mrb[0].mxu0
    %v331 = vadd.f32 %v86, %v330
    %v332 = vpop.f32.mrb[0].mxu0
    %v333 = vadd.f32 %v82, %v332
    %v334 = vpop.f32.mrb[0].mxu0
    %v335 = vadd.f32 %v86, %v334
    %336 = vdwg.mxu0
    %v337 = vadd.f32 %v286, %v290
    %v338 = vrot.slane %v337, 4
    %v339 = vadd.f32 %v337, %v338
    %v340 = vrot.slane %v339, 2
    %v341 = vadd.f32 %v339, %v340
    %v342 = vrot.slane %v341, 1
    %v343 = vadd.f32 %v341, %v342
    %v344 = vadd.f32 %v288, %v292
    %v345 = vrot.slane %v344, 4
    %v346 = vadd.f32 %v344, %v345
    %v347 = vrot.slane %v346, 2
    %v348 = vadd.f32 %v346, %v347
    %v349 = vrot.slane %v348, 1
    %v350 = vadd.f32 %v348, %v349
    %v351 = vadd.f32 %v329, %v333
    %v352 = vrot.slane %v351, 4
    %v353 = vadd.f32 %v351, %v352
    %v354 = vrot.slane %v353, 2
    %v355 = vadd.f32 %v353, %v354
    %v356 = vrot.slane %v355, 1
    %v357 = vadd.f32 %v355, %v356
    %v358 = vadd.f32 %v331, %v335
    %v359 = vrot.slane %v358, 4
    %v360 = vadd.f32 %v358, %v359
    %v361 = vrot.slane %v360, 2
    %v362 = vadd.f32 %v360, %v361
    %v363 = vrot.slane %v362, 1
    %v364 = vadd.f32 %v362, %v363
    %v365 = vrcp.pop 16.0
    %v366 = vmul.f32 %v343, %v365
    %v367 = vmul.f32 %v350, %v365
    %v368 = vmul.f32 %v357, %v365
    %v369 = vmul.f32 %v364, %v365
    %v370 = vsub.f32 %v286, %v366
    %v371 = vsub.f32 %v288, %v367
    %v372 = vsub.f32 %v329, %v368
    %v373 = vsub.f32 %v331, %v369
    %v374 = vsub.f32 %v290, %v366
    %v375 = vsub.f32 %v292, %v367
    %v376 = vsub.f32 %v333, %v368
    %v377 = vsub.f32 %v335, %v369
    %v378 = vmul.f32 %v370, %v370
    %v379 = vmul.f32 %v371, %v371
    %v380 = vmul.f32 %v372, %v372
    %v381 = vmul.f32 %v373, %v373
    %v382 = vmul.f32 %v374, %v374
    %v383 = vmul.f32 %v375, %v375
    %v384 = vmul.f32 %v376, %v376
    %v385 = vmul.f32 %v377, %v377
    %v386 = vadd.f32 %v378, %v382
    %v387 = vrot.slane %v386, 4
    %v388 = vadd.f32 %v386, %v387
    %v389 = vrot.slane %v388, 2
    %v390 = vadd.f32 %v388, %v389
    %v391 = vrot.slane %v390, 1
    %v392 = vadd.f32 %v390, %v391
    %v393 = vadd.f32 %v379, %v383
    %v394 = vrot.slane %v393, 4
    %v395 = vadd.f32 %v393, %v394
    %v396 = vrot.slane %v395, 2
    %v397 = vadd.f32 %v395, %v396
    %v398 = vrot.slane %v397, 1
    %v399 = vadd.f32 %v397, %v398
    %v400 = vadd.f32 %v380, %v384
    %v401 = vrot.slane %v400, 4
    %v402 = vadd.f32 %v400, %v401
    %v403 = vrot.slane %v402, 2
    %v404 = vadd.f32 %v402, %v403
    %v405 = vrot.slane %v404, 1
    %v406 = vadd.f32 %v404, %v405
    %v407 = vadd.f32 %v381, %v385
    %v408 = vrot.slane %v407, 4
    %v409 = vadd.f32 %v407, %v408
    %v410 = vrot.slane %v409, 2
    %v411 = vadd.f32 %v409, %v410
    %v412 = vrot.slane %v411, 1
    %v413 = vadd.f32 %v411, %v412
    %v414 = vmul.f32 %v392, %v365
    %v415 = vmul.f32 %v399, %v365
    %v416 = vmul.f32 %v406, %v365
    %v417 = vmul.f32 %v413, %v365
    %v418 = vadd.f32 %v414, 1e-05
    %v419 = vadd.f32 %v415, 1e-05
    %v420 = vadd.f32 %v416, 1e-05
    %v421 = vadd.f32 %v417, 1e-05
    %v422 = vrsqrt.pop %v418
    %v423 = vrsqrt.pop %v419
    %v424 = vrsqrt.pop %v420
    %v425 = vrsqrt.pop %v421
    %v426 = vmul.f32 %v370, %v422
    %v427 = vmul.f32 %v371, %v423
    %v428 = vmul.f32 %v372, %v424
    %v429 = vmul.f32 %v373, %v425
    %v430 = vmul.f32 %v374, %v422
    %v431 = vmul.f32 %v375, %v423
    %v432 = vmul.f32 %v376, %v424
    %v433 = vmul.f32 %v377, %v425
    %v434 = vld [vmem:[%s3] sm:$0xf]
    %v436 = vlaneseq
    %v437 = vshrl.u32 %v436, 7
    %v438 = vsub.s32 0, %v437
    %v439 = vrot.slane %v434, %v438
    %v440 = vlaneseq
    %v441 = vshrl.u32 %v440, 7
    %v442 = vsub.s32 1, %v441
    %v443 = vrot.slane %v434, %v442
    %v444 = vlaneseq
    %v445 = vshrl.u32 %v444, 7
    %v446 = vsub.s32 2, %v445
    %v447 = vrot.slane %v434, %v446
    %v448 = vlaneseq
    %v449 = vshrl.u32 %v448, 7
    %v450 = vsub.s32 3, %v449
    %v451 = vrot.slane %v434, %v450
    %v456 = vmul.f32 %v426, %v439
    %v457 = vmul.f32 %v427, %v443
    %v458 = vmul.f32 %v428, %v447
    %v459 = vmul.f32 %v429, %v451
    %v460 = vmul.f32 %v430, %v439
    %v461 = vmul.f32 %v431, %v443
    %v462 = vmul.f32 %v432, %v447
    %v463 = vmul.f32 %v433, %v451
    %v464 = vld [vmem:[%s4] sm:$0xf]
    %v466 = vlaneseq
    %v467 = vshrl.u32 %v466, 7
    %v468 = vsub.s32 0, %v467
    %v469 = vrot.slane %v464, %v468
    %v470 = vlaneseq
    %v471 = vshrl.u32 %v470, 7
    %v472 = vsub.s32 1, %v471
    %v473 = vrot.slane %v464, %v472
    %v474 = vlaneseq
    %v475 = vshrl.u32 %v474, 7
    %v476 = vsub.s32 2, %v475
    %v477 = vrot.slane %v464, %v476
    %v478 = vlaneseq
    %v479 = vshrl.u32 %v478, 7
    %v480 = vsub.s32 3, %v479
    %v481 = vrot.slane %v464, %v480
    %v486 = vadd.f32 %v456, %v469
    %v487 = vadd.f32 %v457, %v473
    %v488 = vadd.f32 %v458, %v477
    %v489 = vadd.f32 %v459, %v481
    %v490 = vadd.f32 %v460, %v469
    %v491 = vadd.f32 %v461, %v473
    %v492 = vadd.f32 %v462, %v477
    %v493 = vadd.f32 %v463, %v481
    %vm494 = vcmp.gt.f32.partialorder %v486, 0.0
    %vm495 = vcmp.gt.f32.partialorder %v487, 0.0
    %vm496 = vcmp.gt.f32.partialorder %v488, 0.0
    %vm497 = vcmp.gt.f32.partialorder %v489, 0.0
    %vm498 = vcmp.gt.f32.partialorder %v490, 0.0
    %vm499 = vcmp.gt.f32.partialorder %v491, 0.0
    %vm500 = vcmp.gt.f32.partialorder %v492, 0.0
    %vm501 = vcmp.gt.f32.partialorder %v493, 0.0
    %v502 = vmul.f32 %v486, 0.01
    %v503 = vmul.f32 %v487, 0.01
    %v504 = vmul.f32 %v488, 0.01
    %v505 = vmul.f32 %v489, 0.01
    %v506 = vmul.f32 %v490, 0.01
    %v507 = vmul.f32 %v491, 0.01
    %v508 = vmul.f32 %v492, 0.01
    %v509 = vmul.f32 %v493, 0.01
    %v510 = vsel %vm494, %v486, %v502
    %v511 = vsel %vm495, %v487, %v503
    %v512 = vsel %vm496, %v488, %v504
    %v513 = vsel %vm497, %v489, %v505
    %v514 = vsel %vm498, %v490, %v506
    %v515 = vsel %vm499, %v491, %v507
    %v516 = vsel %vm500, %v492, %v508
    %v517 = vsel %vm501, %v493, %v509
    %v518 = vpack.c.bf16 %v514, %v510
    %v519 = vpack.c.bf16 %v515, %v511
    %v520 = vpack.c.bf16 %v516, %v512
    %v521 = vpack.c.bf16 %v517, %v513
    %v522 = vld [vmem:[%s5] sm:$0xf]
    %v523 = vld [vmem:[%s5 + $0x4] sm:$0xf]
    %v524 = vld [vmem:[%s5 + $0x8] sm:$0xf]
    %v525 = vld [vmem:[%s5 + $0xc] sm:$0xf]
    %v526 = vld [vmem:[%s5 + $0x10] sm:$0xf]
    %v527 = vld [vmem:[%s5 + $0x14] sm:$0xf]
    %v528 = vld [vmem:[%s5 + $0x18] sm:$0xf]
    %v529 = vld [vmem:[%s5 + $0x1c] sm:$0xf]
    %v530 = vld [vmem:[%s5 + $0x20] sm:$0xf]
    %v531 = vld [vmem:[%s5 + $0x24] sm:$0xf]
    %v532 = vld [vmem:[%s5 + $0x28] sm:$0xf]
    %v533 = vld [vmem:[%s5 + $0x2c] sm:$0xf]
    %v534 = vld [vmem:[%s5 + $0x30] sm:$0xf]
    %v535 = vld [vmem:[%s5 + $0x34] sm:$0xf]
    %v536 = vld [vmem:[%s5 + $0x38] sm:$0xf]
    %v537 = vld [vmem:[%s5 + $0x3c] sm:$0xf]
    %v538 = vld [vmem:[%s5 + $0x40] sm:$0xf]
    %v539 = vld [vmem:[%s5 + $0x44] sm:$0xf]
    %v540 = vld [vmem:[%s5 + $0x48] sm:$0xf]
    %v541 = vld [vmem:[%s5 + $0x4c] sm:$0xf]
    %v542 = vld [vmem:[%s5 + $0x50] sm:$0xf]
    %v543 = vld [vmem:[%s5 + $0x54] sm:$0xf]
    %v544 = vld [vmem:[%s5 + $0x58] sm:$0xf]
    %v545 = vld [vmem:[%s5 + $0x5c] sm:$0xf]
    %v546 = vld [vmem:[%s5 + $0x60] sm:$0xf]
    %v547 = vld [vmem:[%s5 + $0x64] sm:$0xf]
    %v548 = vld [vmem:[%s5 + $0x68] sm:$0xf]
    %v549 = vld [vmem:[%s5 + $0x6c] sm:$0xf]
    %v550 = vld [vmem:[%s5 + $0x70] sm:$0xf]
    %v551 = vld [vmem:[%s5 + $0x74] sm:$0xf]
    %v552 = vld [vmem:[%s5 + $0x78] sm:$0xf]
    %v553 = vld [vmem:[%s5 + $0x7c] sm:$0xf]
    %v554 = vld [vmem:[%s5 + $0x80] sm:$0xf]
    %v555 = vld [vmem:[%s5 + $0x84] sm:$0xf]
    %v556 = vld [vmem:[%s5 + $0x88] sm:$0xf]
    %v557 = vld [vmem:[%s5 + $0x8c] sm:$0xf]
    %v558 = vld [vmem:[%s5 + $0x90] sm:$0xf]
    %v559 = vld [vmem:[%s5 + $0x94] sm:$0xf]
    %v560 = vld [vmem:[%s5 + $0x98] sm:$0xf]
    %v561 = vld [vmem:[%s5 + $0x9c] sm:$0xf]
    %v562 = vld [vmem:[%s5 + $0xa0] sm:$0xf]
    %v563 = vld [vmem:[%s5 + $0xa4] sm:$0xf]
    %v564 = vld [vmem:[%s5 + $0xa8] sm:$0xf]
    %v565 = vld [vmem:[%s5 + $0xac] sm:$0xf]
    %v566 = vld [vmem:[%s5 + $0xb0] sm:$0xf]
    %v567 = vld [vmem:[%s5 + $0xb4] sm:$0xf]
    %v568 = vld [vmem:[%s5 + $0xb8] sm:$0xf]
    %v569 = vld [vmem:[%s5 + $0xbc] sm:$0xf]
    %v570 = vld [vmem:[%s5 + $0xc0] sm:$0xf]
    %v571 = vld [vmem:[%s5 + $0xc4] sm:$0xf]
    %v572 = vld [vmem:[%s5 + $0xc8] sm:$0xf]
    %v573 = vld [vmem:[%s5 + $0xcc] sm:$0xf]
    %v574 = vld [vmem:[%s5 + $0xd0] sm:$0xf]
    %v575 = vld [vmem:[%s5 + $0xd4] sm:$0xf]
    %v576 = vld [vmem:[%s5 + $0xd8] sm:$0xf]
    %v577 = vld [vmem:[%s5 + $0xdc] sm:$0xf]
    %v578 = vld [vmem:[%s5 + $0xe0] sm:$0xf]
    %v579 = vld [vmem:[%s5 + $0xe4] sm:$0xf]
    %v580 = vld [vmem:[%s5 + $0xe8] sm:$0xf]
    %v581 = vld [vmem:[%s5 + $0xec] sm:$0xf]
    %v582 = vld [vmem:[%s5 + $0xf0] sm:$0xf]
    %v583 = vld [vmem:[%s5 + $0xf4] sm:$0xf]
    %v584 = vld [vmem:[%s5 + $0xf8] sm:$0xf]
    %v585 = vld [vmem:[%s5 + $0xfc] sm:$0xf]
    %v586 = vld [vmem:[%s6] sm:$0x1]
    %v588 = vlaneseq
    %v589 = vshrl.u32 %v588, 7
    %v590 = vsub.s32 0, %v589
    %v591 = vrot.slane %v586, %v590
    %v657 = vunpack.c.l.b16 %v522
    %v658 = vunpack.c.l.b16 %v523
    %v659 = vunpack.c.l.b16 %v524
    %v660 = vunpack.c.l.b16 %v525
    %v661 = vunpack.c.l.b16 %v526
    %v662 = vunpack.c.l.b16 %v527
    %v663 = vunpack.c.l.b16 %v528
    %v664 = vunpack.c.l.b16 %v529
    %v665 = vunpack.c.l.b16 %v530
    %v666 = vunpack.c.l.b16 %v531
    %v667 = vunpack.c.l.b16 %v532
    %v668 = vunpack.c.l.b16 %v533
    %v669 = vunpack.c.l.b16 %v534
    %v670 = vunpack.c.l.b16 %v535
    %v671 = vunpack.c.l.b16 %v536
    %v672 = vunpack.c.l.b16 %v537
    %v673 = vunpack.c.l.b16 %v538
    %v674 = vunpack.c.l.b16 %v539
    %v675 = vunpack.c.l.b16 %v540
    %v676 = vunpack.c.l.b16 %v541
    %v677 = vunpack.c.l.b16 %v542
    %v678 = vunpack.c.l.b16 %v543
    %v679 = vunpack.c.l.b16 %v544
    %v680 = vunpack.c.l.b16 %v545
    %v681 = vunpack.c.l.b16 %v546
    %v682 = vunpack.c.l.b16 %v547
    %v683 = vunpack.c.l.b16 %v548
    %v684 = vunpack.c.l.b16 %v549
    %v685 = vunpack.c.l.b16 %v550
    %v686 = vunpack.c.l.b16 %v551
    %v687 = vunpack.c.l.b16 %v552
    %v688 = vunpack.c.l.b16 %v553
    %v689 = vunpack.c.l.b16 %v554
    %v690 = vunpack.c.l.b16 %v555
    %v691 = vunpack.c.l.b16 %v556
    %v692 = vunpack.c.l.b16 %v557
    %v693 = vunpack.c.l.b16 %v558
    %v694 = vunpack.c.l.b16 %v559
    %v695 = vunpack.c.l.b16 %v560
    %v696 = vunpack.c.l.b16 %v561
    %v697 = vunpack.c.l.b16 %v562
    %v698 = vunpack.c.l.b16 %v563
    %v699 = vunpack.c.l.b16 %v564
    %v700 = vunpack.c.l.b16 %v565
    %v701 = vunpack.c.l.b16 %v566
    %v702 = vunpack.c.l.b16 %v567
    %v703 = vunpack.c.l.b16 %v568
    %v704 = vunpack.c.l.b16 %v569
    %v705 = vunpack.c.l.b16 %v570
    %v706 = vunpack.c.l.b16 %v571
    %v707 = vunpack.c.l.b16 %v572
    %v708 = vunpack.c.l.b16 %v573
    %v709 = vunpack.c.l.b16 %v574
    %v710 = vunpack.c.l.b16 %v575
    %v711 = vunpack.c.l.b16 %v576
    %v712 = vunpack.c.l.b16 %v577
    %v713 = vunpack.c.l.b16 %v578
    %v714 = vunpack.c.l.b16 %v579
    %v715 = vunpack.c.l.b16 %v580
    %v716 = vunpack.c.l.b16 %v581
    %v717 = vunpack.c.l.b16 %v582
    %v718 = vunpack.c.l.b16 %v583
    %v719 = vunpack.c.l.b16 %v584
    %v720 = vunpack.c.l.b16 %v585
    %v721 = vpack.c.b16 %v658, %v657
    %v722 = vpack.c.b16 %v660, %v659
    %v723 = vpack.c.b16 %v662, %v661
    %v724 = vpack.c.b16 %v664, %v663
    %v725 = vpack.c.b16 %v666, %v665
    %v726 = vpack.c.b16 %v668, %v667
    %v727 = vpack.c.b16 %v670, %v669
    %v728 = vpack.c.b16 %v672, %v671
    %v729 = vpack.c.b16 %v674, %v673
    %v730 = vpack.c.b16 %v676, %v675
    %v731 = vpack.c.b16 %v678, %v677
    %v732 = vpack.c.b16 %v680, %v679
    %v733 = vpack.c.b16 %v682, %v681
    %v734 = vpack.c.b16 %v684, %v683
    %v735 = vpack.c.b16 %v686, %v685
    %v736 = vpack.c.b16 %v688, %v687
    %v737 = vpack.c.b16 %v690, %v689
    %v738 = vpack.c.b16 %v692, %v691
    %v739 = vpack.c.b16 %v694, %v693
    %v740 = vpack.c.b16 %v696, %v695
    %v741 = vpack.c.b16 %v698, %v697
    %v742 = vpack.c.b16 %v700, %v699
    %v743 = vpack.c.b16 %v702, %v701
    %v744 = vpack.c.b16 %v704, %v703
    %v745 = vpack.c.b16 %v706, %v705
    %v746 = vpack.c.b16 %v708, %v707
    %v747 = vpack.c.b16 %v710, %v709
    %v748 = vpack.c.b16 %v712, %v711
    %v749 = vpack.c.b16 %v714, %v713
    %v750 = vpack.c.b16 %v716, %v715
    %v751 = vpack.c.b16 %v718, %v717
    %v752 = vpack.c.b16 %v720, %v719
    %785 = vmatprep.subr.bf16.mxu0 0
    %786 = vmatpush1.bf16.msra.mxu0 %v721
    %787 = vmatprep.subr.bf16.mxu0 0
    %788 = vmatpush1.bf16.msra.mxu0 %v722
    %789 = vmatprep.subr.bf16.mxu0 0
    %790 = vmatpush1.bf16.msra.mxu0 %v723
    %791 = vmatprep.subr.bf16.mxu0 0
    %792 = vmatpush1.bf16.msra.mxu0 %v724
    %793 = vmatprep.subr.bf16.mxu0 0
    %794 = vmatpush1.bf16.msra.mxu0 %v725
    %795 = vmatprep.subr.bf16.mxu0 0
    %796 = vmatpush1.bf16.msra.mxu0 %v726
    %797 = vmatprep.subr.bf16.mxu0 0
    %798 = vmatpush1.bf16.msra.mxu0 %v727
    %799 = vmatprep.subr.bf16.mxu0 0
    %800 = vmatpush1.bf16.msra.mxu0 %v728
    %801 = vmatprep.subr.bf16.mxu0 0
    %802 = vmatpush1.bf16.msra.mxu0 %v729
    %803 = vmatprep.subr.bf16.mxu0 0
    %804 = vmatpush1.bf16.msra.mxu0 %v730
    %805 = vmatprep.subr.bf16.mxu0 0
    %806 = vmatpush1.bf16.msra.mxu0 %v731
    %807 = vmatprep.subr.bf16.mxu0 0
    %808 = vmatpush1.bf16.msra.mxu0 %v732
    %809 = vmatprep.subr.bf16.mxu0 0
    %810 = vmatpush1.bf16.msra.mxu0 %v733
    %811 = vmatprep.subr.bf16.mxu0 0
    %812 = vmatpush1.bf16.msra.mxu0 %v734
    %813 = vmatprep.subr.bf16.mxu0 0
    %814 = vmatpush1.bf16.msra.mxu0 %v735
    %815 = vmatprep.subr.bf16.mxu0 0
    %816 = vmatpush1.bf16.msra.mxu0 %v736
    %817 = vmatprep.mubr.bf16.mxu0 %v519
    %818 = vmatmul.mubr.bf16.gmra.mrb[0].mxu0 %v518
    %v819 = vpop.f32.mrb[0].mxu0
    %v820 = vadd.f32 %v591, %v819
    %v821 = vpop.f32.mrb[0].mxu0
    %v822 = vpop.f32.mrb[0].mxu0
    %v823 = vadd.f32 %v591, %v822
    %v824 = vpop.f32.mrb[0].mxu0
    %825 = vdwg.mxu0
    %826 = vmatprep.subr.bf16.mxu0 0
    %827 = vmatpush1.bf16.msra.mxu0 %v737
    %828 = vmatprep.subr.bf16.mxu0 0
    %829 = vmatpush1.bf16.msra.mxu0 %v738
    %830 = vmatprep.subr.bf16.mxu0 0
    %831 = vmatpush1.bf16.msra.mxu0 %v739
    %832 = vmatprep.subr.bf16.mxu0 0
    %833 = vmatpush1.bf16.msra.mxu0 %v740
    %834 = vmatprep.subr.bf16.mxu0 0
    %835 = vmatpush1.bf16.msra.mxu0 %v741
    %836 = vmatprep.subr.bf16.mxu0 0
    %837 = vmatpush1.bf16.msra.mxu0 %v742
    %838 = vmatprep.subr.bf16.mxu0 0
    %839 = vmatpush1.bf16.msra.mxu0 %v743
    %840 = vmatprep.subr.bf16.mxu0 0
    %841 = vmatpush1.bf16.msra.mxu0 %v744
    %842 = vmatprep.subr.bf16.mxu0 0
    %843 = vmatpush1.bf16.msra.mxu0 %v745
    %844 = vmatprep.subr.bf16.mxu0 0
    %845 = vmatpush1.bf16.msra.mxu0 %v746
    %846 = vmatprep.subr.bf16.mxu0 0
    %847 = vmatpush1.bf16.msra.mxu0 %v747
    %848 = vmatprep.subr.bf16.mxu0 0
    %849 = vmatpush1.bf16.msra.mxu0 %v748
    %850 = vmatprep.subr.bf16.mxu0 0
    %851 = vmatpush1.bf16.msra.mxu0 %v749
    %852 = vmatprep.subr.bf16.mxu0 0
    %853 = vmatpush1.bf16.msra.mxu0 %v750
    %854 = vmatprep.subr.bf16.mxu0 0
    %855 = vmatpush1.bf16.msra.mxu0 %v751
    %856 = vmatprep.subr.bf16.mxu0 0
    %857 = vmatpush1.bf16.msra.mxu0 %v752
    %858 = vmatprep.mubr.bf16.mxu0 %v521
    %859 = vmatmul.mubr.bf16.gmra.mrb[0].mxu0 %v520
    %v860 = vpop.f32.mrb[0].mxu0
    %v861 = vadd.f32 %v820, %v860
    %v862 = vpop.f32.mrb[0].mxu0
    %v863 = vpop.f32.mrb[0].mxu0
    %v864 = vadd.f32 %v823, %v863
    %v865 = vpop.f32.mrb[0].mxu0
    %866 = vdwg.mxu0
    %v867 = vadd.f32 %v861, %v864
    %v868 = vrot.slane %v867, 4
    %v869 = vadd.f32 %v867, %v868
    %v870 = vrot.slane %v869, 2
    %v871 = vadd.f32 %v869, %v870
    %v872 = vrot.slane %v871, 1
    %v873 = vadd.f32 %v871, %v872
    %v874 = vmul.f32 %v873, %v365
    %v875 = vsub.f32 %v861, %v874
    %v876 = vsub.f32 %v864, %v874
    %v877 = vmul.f32 %v875, %v875
    %v878 = vmul.f32 %v876, %v876
    %v879 = vadd.f32 %v877, %v878
    %v880 = vrot.slane %v879, 4
    %v881 = vadd.f32 %v879, %v880
    %v882 = vrot.slane %v881, 2
    %v883 = vadd.f32 %v881, %v882
    %v884 = vrot.slane %v883, 1
    %v885 = vadd.f32 %v883, %v884
    %v886 = vmul.f32 %v885, %v365
    %v887 = vadd.f32 %v886, 1e-05
    %v888 = vrsqrt.pop %v887
    %v889 = vmul.f32 %v875, %v888
    %v890 = vmul.f32 %v876, %v888
    %v891 = vld [vmem:[%s7] sm:$0x1]
    %v893 = vlaneseq
    %v894 = vshrl.u32 %v893, 7
    %v895 = vsub.s32 0, %v894
    %v896 = vrot.slane %v891, %v895
    %v898 = vmul.f32 %v889, %v896
    %v899 = vmul.f32 %v890, %v896
    %v900 = vld [vmem:[%s8] sm:$0x1]
    %v902 = vlaneseq
    %v903 = vshrl.u32 %v902, 7
    %v904 = vsub.s32 0, %v903
    %v905 = vrot.slane %v900, %v904
    %v907 = vadd.f32 %v898, %v905
    %v908 = vadd.f32 %v899, %v905
    %909 = vst [vmem:[#allocation2] sm:$0xff] %v907
    %910 = vst [vmem:[#allocation2 + $0x8] sm:$0xff] %v908
    // Predicated region
    $region38: #{_lambda_.3} parent=1 // pred_check
      _
    $region39: #{_lambda_.3} parent=1 // pred_check_branch
      %912 = sbr.rel (0) target = $region41
    $region40: #{_lambda_.3} parent=1 // pred_region
      %s914 = ssub.s32 256, 256
      %915 = vsyncadd [#allocation3], %s914
      %s916 = sshll.u32 [#allocation2], 4
      %s917 = int_to_ptr.vmem [resolvable:$true] %s916
      %922 = dma.vmem_to_hbm [thread:$0]  %s917, 256, %s9, [#allocation3], 128, 128, 8
    $region41: #{_lambda_.3} parent=1 // pred_fallthru
      _
    // Predicated region
    $region42: #{_lambda_.3} parent=1 // pred_check
      _
    $region43: #{_lambda_.3} parent=1 // pred_check_branch
      %924 = sbr.rel (0) target = $region45
    $region44: #{_lambda_.3} parent=1 // pred_region
      %925 = dma.done [#allocation3], 256
    $region45: #{_lambda_.3} parent=1 // pred_fallthru
      _
    %926 = vsyncpa [#allocation3], 1

// kernel: _lambda_.2
$region0: #{_lambda_.2}
  #allocation0 [shape = 'u32[]', space=smem, size = 0x4, offset = 0x4, fixed_abs, tag = 'smem constant byte address 0x4 - core index']
  #allocation1 [shape = 'u32[144,128]{1,0:T(1,128)}', space=vmem, size = 0x12000, scoped, tag = 'internal scratch']
  %s0 = inlined_call_operand.vmem [shape: bf16[4096,9], index: 0, kind: input, shape index: {}]
  %s1 = inlined_call_operand.vmem [shape: bf16[9,128], index: 1, kind: input, shape index: {}]
  %s2 = inlined_call_operand.vmem [shape: f32[1,128], index: 2, kind: input, shape index: {}]
  %s3 = inlined_call_operand.vmem [shape: f32[16,128], index: 3, kind: output, shape index: {}]
  %s4 = sld [smem:[#allocation0]]
  $region45: #{_lambda_.2} parent=0
    _
  %s6 = ssub.s32 1, %s4
  %s7 = scalar_select 0, %s6, %s4
  loop: start=0, step=1, limit=4
  $region2: #{_lambda_.2} parent=0 // loop_pre_header
    _
  $region3: #{_lambda_.2} parent=0 // loop_header
    %s9 = sphi 0, %s13
    %p10 = scmp.ge.s32.totalorder %s9, 4
    %s19 = sphi 0, %s21
    %s22 = sphi 0, %s19
    %s23 = sphi 0, %s22
    %s39 = sphi 0, %s23
    %s43 = sphi 0, %s43
    %s45 = sphi 0, %s43
    %s46 = sphi 0, %s45
    %s60 = sphi 0, %s46
    %s64 = sphi 0, %s64
    %s66 = sphi 0, %s64
    %s67 = sphi 0, %s66
    %s81 = sphi 0, %s67
    %s87 = sphi 0, %s89
    %s90 = sphi 0, %s87
    %s91 = sphi 0, %s90
    %s107 = sphi 0, %s91
  $region4: #{_lambda_.2} parent=0 // loop_header_branch
    %12 = sbr.rel (%p10) target = $region8
  $region5: #{_lambda_.2} parent=0 // loop_body
    %s14 = ssub.s32 %s9, 1
    %s15 = ssub.s32 %s9, 2
    %s16 = sadd.s32 %s9, 1
    %s17 = ssub.s32 %s9, %s16
    %p18 = scmp.eq.s32.totalorder %s17, 0
    %s20 = sadd.s32 %s19, 1
    %s21 = scalar_select %p18, %s19, %s20
    %p24 = pneg %p18
    %p25 = scmp.eq.s32.totalorder %s9, 1
    %p26 = por %p24, %p25
    %p27 = scmp.ne.s32.totalorder %s19, %s22
    %p28 = scmp.eq.s32.totalorder %s9, 0
    %p29 = por %p27, %p28
    %p30 = scmp.ne.s32.totalorder %s19, %s22
    %p31 = scmp.eq.s32.totalorder %s14, 1
    %p32 = por %p30, %p31
    %p33 = scmp.ne.s32.totalorder %s22, %s23
    %p34 = scmp.eq.s32.totalorder %s14, 0
    %p35 = por %p33, %p34
    %p36 = scmp.ne.s32.totalorder %s22, %s23
    %p37 = scmp.eq.s32.totalorder %s15, 1
    %p38 = por %p36, %p37
    %p40 = scmp.ne.s32.totalorder %s23, %s39
    %p41 = scmp.eq.s32.totalorder %s15, 0
    %p42 = por %p40, %p41
    %s44 = sadd.s32 %s43, 1
    %p47 = scmp.eq.s32.totalorder %s9, 1
    %p48 = scmp.ne.s32.totalorder %s43, %s45
    %p49 = scmp.eq.s32.totalorder %s9, 0
    %p50 = por %p48, %p49
    %p51 = scmp.ne.s32.totalorder %s43, %s45
    %p52 = scmp.eq.s32.totalorder %s14, 1
    %p53 = por %p51, %p52
    %p54 = scmp.ne.s32.totalorder %s45, %s46
    %p55 = scmp.eq.s32.totalorder %s14, 0
    %p56 = por %p54, %p55
    %p57 = scmp.ne.s32.totalorder %s45, %s46
    %p58 = scmp.eq.s32.totalorder %s15, 1
    %p59 = por %p57, %p58
    %p61 = scmp.ne.s32.totalorder %s46, %s60
    %p62 = scmp.eq.s32.totalorder %s15, 0
    %p63 = por %p61, %p62
    %s65 = sadd.s32 %s64, 1
    %p68 = scmp.eq.s32.totalorder %s9, 1
    %p69 = scmp.ne.s32.totalorder %s64, %s66
    %p70 = scmp.eq.s32.totalorder %s9, 0
    %p71 = por %p69, %p70
    %p72 = scmp.ne.s32.totalorder %s64, %s66
    %p73 = scmp.eq.s32.totalorder %s14, 1
    %p74 = por %p72, %p73
    %p75 = scmp.ne.s32.totalorder %s66, %s67
    %p76 = scmp.eq.s32.totalorder %s14, 0
    %p77 = por %p75, %p76
    %p78 = scmp.ne.s32.totalorder %s66, %s67
    %p79 = scmp.eq.s32.totalorder %s15, 1
    %p80 = por %p78, %p79
    %p82 = scmp.ne.s32.totalorder %s67, %s81
    %p83 = scmp.eq.s32.totalorder %s15, 0
    %p84 = por %p82, %p83
    %s85 = ssub.s32 %s9, %s16
    %p86 = scmp.eq.s32.totalorder %s85, 0
    %s88 = sadd.s32 %s87, 1
    %s89 = scalar_select %p86, %s87, %s88
    %p92 = pneg %p86
    %p93 = scmp.eq.s32.totalorder %s9, 1
    %p94 = por %p92, %p93
    %p95 = scmp.ne.s32.totalorder %s87, %s90
    %p96 = scmp.eq.s32.totalorder %s9, 0
    %p97 = por %p95, %p96
    %p98 = scmp.ne.s32.totalorder %s87, %s90
    %p99 = scmp.eq.s32.totalorder %s14, 1
    %p100 = por %p98, %p99
    %p101 = scmp.ne.s32.totalorder %s90, %s91
    %p102 = scmp.eq.s32.totalorder %s14, 0
    %p103 = por %p101, %p102
    %p104 = scmp.ne.s32.totalorder %s90, %s91
    %p105 = scmp.eq.s32.totalorder %s15, 1
    %p106 = por %p104, %p105
    %p108 = scmp.ne.s32.totalorder %s91, %s107
    %p109 = scmp.eq.s32.totalorder %s15, 0
    %p110 = por %p108, %p109
    %p111 = scmp.le.s32.totalorder 1, %s9
    %p112 = scmp.lt.s32.totalorder %s9, 3
    %p113 = pnand %p111, %p112
    %p114 = pneg %p113
    // Predicated region
    $region9: #{_lambda_.2} parent=5 // pred_check
      _
    $region10: #{_lambda_.2} parent=5 // pred_check_branch
      %116 = sbr.rel (%p113) target = $region12
    $region11: #{_lambda_.2} parent=5 // pred_region
      %s117 = ssub.s32 %s9, 1
      // Predicated region
      $region13: #{_lambda_.2} parent=11 // pred_check
        %p118 = pneg %p56
      $region14: #{_lambda_.2} parent=11 // pred_check_branch
        %120 = sbr.rel (%p118) target = $region16
      $region15: #{_lambda_.2} parent=11 // pred_region
        _
      $region16: #{_lambda_.2} parent=11 // pred_fallthru
        _
      // Predicated region
      $region17: #{_lambda_.2} parent=11 // pred_check
        %p121 = pneg %p77
      $region18: #{_lambda_.2} parent=11 // pred_check_branch
        %123 = sbr.rel (%p121) target = $region20
      $region19: #{_lambda_.2} parent=11 // pred_region
        _
      $region20: #{_lambda_.2} parent=11 // pred_fallthru
        _
    $region12: #{_lambda_.2} parent=5 // pred_fallthru
      _
    %p124 = scmp.lt.s32.totalorder %s9, 2
    // Predicated region
    $region21: #{_lambda_.2} parent=5 // pred_check
      %p125 = pneg %p124
    $region22: #{_lambda_.2} parent=5 // pred_check_branch
      %127 = sbr.rel (%p125) target = $region24
    $region23: #{_lambda_.2} parent=5 // pred_region
      // Predicated region
      $region25: #{_lambda_.2} parent=23 // pred_check
        %p128 = pneg %p29
      $region26: #{_lambda_.2} parent=23 // pred_check_branch
        %130 = sbr.rel (%p128) target = $region28
      $region27: #{_lambda_.2} parent=23 // pred_region
        %s131 = smul.u32 256, %s9
        %p132 = scmp.lt.s32.totalorder %s131, 511
        %s133 = scalar_select %p132, %s131, 511
        %s134 = smul.addr %s133, 4
        %s135 = scalar_lea.vmem %s0, %s134
        %s136 = smul.u32 256, %s9
      $region28: #{_lambda_.2} parent=23 // pred_fallthru
        _
    $region24: #{_lambda_.2} parent=5 // pred_fallthru
      _
    %p137 = scmp.le.s32.totalorder 1, %s9
    %p138 = scmp.lt.s32.totalorder %s9, 3
    %p139 = pnand %p137, %p138
    %p140 = pneg %p139
    // Predicated region
    $region29: #{_lambda_.2} parent=5 // pred_check
      _
    $region30: #{_lambda_.2} parent=5 // pred_check_branch
      %142 = sbr.rel (%p139) target = $region32
    $region31: #{_lambda_.2} parent=5 // pred_region
      %s143 = ssub.s32 %s9, 1
      %s144 = smul.u32 256, %s14
      %p145 = scmp.lt.s32.totalorder %s144, 511
      %s146 = scalar_select %p145, %s144, 511
      %s147 = smul.addr %s146, 4
      %s148 = scalar_lea.vmem %s0, %s147
      %p149 = pneg %p35
      %p150 = pneg %p32
      %p151 = pneg %p56
      %p152 = pneg %p53
      %p153 = pneg %p77
      %p154 = pneg %p74
      %p155 = pneg %p103
      %p156 = pneg %p100
      %p157 = scmp.lt.s32.totalorder %s14, 1
      %s158 = scalar_select %p157, %s14, 1
      %s159 = smul.addr %s158, 8
      %s160 = scalar_lea.vmem %s3, %s159
      %s161 = smul.u32 256, %s14
      %p162 = scmp.lt.s32.totalorder %s161, 511
      %s163 = scalar_select %p162, %s161, 511
      %s164 = smul.addr %s163, 4
      %s165 = scalar_lea.vmem %s0, %s164
      %s166 = smul.u32 256, %s14
      %p167 = scmp.lt.s32.totalorder %s14, 1
      %s168 = scalar_select %p167, %s14, 1
      %s169 = smul.addr %s168, 8
      %s170 = scalar_lea.vmem %s3, %s169
      %v172 = vld [vmem:[%s165] sm:$0xf]
      %v173 = vld [vmem:[%s165 + $0x4] sm:$0xf]
      %v174 = vld [vmem:[%s165 + $0x8] sm:$0xf]
      %v175 = vld [vmem:[%s165 + $0xc] sm:$0xf]
      %v176 = vld [vmem:[%s165 + $0x10] sm:$0xf]
      %v177 = vld [vmem:[%s165 + $0x14] sm:$0xf]
      %v178 = vld [vmem:[%s165 + $0x18] sm:$0xf]
      %v179 = vld [vmem:[%s165 + $0x1c] sm:$0xf]
      %v180 = vld [vmem:[%s165 + $0x20] sm:$0xf]
      %v181 = vld [vmem:[%s165 + $0x24] sm:$0xf]
      %v182 = vld [vmem:[%s165 + $0x28] sm:$0xf]
      %v183 = vld [vmem:[%s165 + $0x2c] sm:$0xf]
      %v184 = vld [vmem:[%s165 + $0x30] sm:$0xf]
      %v185 = vld [vmem:[%s165 + $0x34] sm:$0xf]
      %v186 = vld [vmem:[%s165 + $0x38] sm:$0xf]
      %v187 = vld [vmem:[%s165 + $0x3c] sm:$0xf]
      %v188 = vld [vmem:[%s165 + $0x40] sm:$0xf]
      %v189 = vld [vmem:[%s165 + $0x44] sm:$0xf]
      %v190 = vld [vmem:[%s165 + $0x48] sm:$0xf]
      %v191 = vld [vmem:[%s165 + $0x4c] sm:$0xf]
      %v192 = vld [vmem:[%s165 + $0x50] sm:$0xf]
      %v193 = vld [vmem:[%s165 + $0x54] sm:$0xf]
      %v194 = vld [vmem:[%s165 + $0x58] sm:$0xf]
      %v195 = vld [vmem:[%s165 + $0x5c] sm:$0xf]
      %v196 = vld [vmem:[%s165 + $0x60] sm:$0xf]
      %v197 = vld [vmem:[%s165 + $0x64] sm:$0xf]
      %v198 = vld [vmem:[%s165 + $0x68] sm:$0xf]
      %v199 = vld [vmem:[%s165 + $0x6c] sm:$0xf]
      %v200 = vld [vmem:[%s165 + $0x70] sm:$0xf]
      %v201 = vld [vmem:[%s165 + $0x74] sm:$0xf]
      %v202 = vld [vmem:[%s165 + $0x78] sm:$0xf]
      %v203 = vld [vmem:[%s165 + $0x7c] sm:$0xf]
      %v204 = vld [vmem:[%s165 + $0x80] sm:$0xf]
      %v205 = vld [vmem:[%s165 + $0x84] sm:$0xf]
      %v206 = vld [vmem:[%s165 + $0x88] sm:$0xf]
      %v207 = vld [vmem:[%s165 + $0x8c] sm:$0xf]
      %v208 = vld [vmem:[%s165 + $0x90] sm:$0xf]
      %v209 = vld [vmem:[%s165 + $0x94] sm:$0xf]
      %v210 = vld [vmem:[%s165 + $0x98] sm:$0xf]
      %v211 = vld [vmem:[%s165 + $0x9c] sm:$0xf]
      %v212 = vld [vmem:[%s165 + $0xa0] sm:$0xf]
      %v213 = vld [vmem:[%s165 + $0xa4] sm:$0xf]
      %v214 = vld [vmem:[%s165 + $0xa8] sm:$0xf]
      %v215 = vld [vmem:[%s165 + $0xac] sm:$0xf]
      %v216 = vld [vmem:[%s165 + $0xb0] sm:$0xf]
      %v217 = vld [vmem:[%s165 + $0xb4] sm:$0xf]
      %v218 = vld [vmem:[%s165 + $0xb8] sm:$0xf]
      %v219 = vld [vmem:[%s165 + $0xbc] sm:$0xf]
      %v220 = vld [vmem:[%s165 + $0xc0] sm:$0xf]
      %v221 = vld [vmem:[%s165 + $0xc4] sm:$0xf]
      %v222 = vld [vmem:[%s165 + $0xc8] sm:$0xf]
      %v223 = vld [vmem:[%s165 + $0xcc] sm:$0xf]
      %v224 = vld [vmem:[%s165 + $0xd0] sm:$0xf]
      %v225 = vld [vmem:[%s165 + $0xd4] sm:$0xf]
      %v226 = vld [vmem:[%s165 + $0xd8] sm:$0xf]
      %v227 = vld [vmem:[%s165 + $0xdc] sm:$0xf]
      %v228 = vld [vmem:[%s165 + $0xe0] sm:$0xf]
      %v229 = vld [vmem:[%s165 + $0xe4] sm:$0xf]
      %v230 = vld [vmem:[%s165 + $0xe8] sm:$0xf]
      %v231 = vld [vmem:[%s165 + $0xec] sm:$0xf]
      %v232 = vld [vmem:[%s165 + $0xf0] sm:$0xf]
      %v233 = vld [vmem:[%s165 + $0xf4] sm:$0xf]
      %v234 = vld [vmem:[%s165 + $0xf8] sm:$0xf]
      %v235 = vld [vmem:[%s165 + $0xfc] sm:$0xf]
      %v236 = vld [vmem:[%s165 + $0x100] sm:$0xf]
      %v237 = vld [vmem:[%s165 + $0x104] sm:$0xf]
      %v238 = vld [vmem:[%s165 + $0x108] sm:$0xf]
      %v239 = vld [vmem:[%s165 + $0x10c] sm:$0xf]
      %v240 = vld [vmem:[%s165 + $0x110] sm:$0xf]
      %v241 = vld [vmem:[%s165 + $0x114] sm:$0xf]
      %v242 = vld [vmem:[%s165 + $0x118] sm:$0xf]
      %v243 = vld [vmem:[%s165 + $0x11c] sm:$0xf]
      %v244 = vld [vmem:[%s165 + $0x120] sm:$0xf]
      %v245 = vld [vmem:[%s165 + $0x124] sm:$0xf]
      %v246 = vld [vmem:[%s165 + $0x128] sm:$0xf]
      %v247 = vld [vmem:[%s165 + $0x12c] sm:$0xf]
      %v248 = vld [vmem:[%s165 + $0x130] sm:$0xf]
      %v249 = vld [vmem:[%s165 + $0x134] sm:$0xf]
      %v250 = vld [vmem:[%s165 + $0x138] sm:$0xf]
      %v251 = vld [vmem:[%s165 + $0x13c] sm:$0xf]
      %v252 = vld [vmem:[%s165 + $0x140] sm:$0xf]
      %v253 = vld [vmem:[%s165 + $0x144] sm:$0xf]
      %v254 = vld [vmem:[%s165 + $0x148] sm:$0xf]
      %v255 = vld [vmem:[%s165 + $0x14c] sm:$0xf]
      %v256 = vld [vmem:[%s165 + $0x150] sm:$0xf]
      %v257 = vld [vmem:[%s165 + $0x154] sm:$0xf]
      %v258 = vld [vmem:[%s165 + $0x158] sm:$0xf]
      %v259 = vld [vmem:[%s165 + $0x15c] sm:$0xf]
      %v260 = vld [vmem:[%s165 + $0x160] sm:$0xf]
      %v261 = vld [vmem:[%s165 + $0x164] sm:$0xf]
      %v262 = vld [vmem:[%s165 + $0x168] sm:$0xf]
      %v263 = vld [vmem:[%s165 + $0x16c] sm:$0xf]
      %v264 = vld [vmem:[%s165 + $0x170] sm:$0xf]
      %v265 = vld [vmem:[%s165 + $0x174] sm:$0xf]
      %v266 = vld [vmem:[%s165 + $0x178] sm:$0xf]
      %v267 = vld [vmem:[%s165 + $0x17c] sm:$0xf]
      %v268 = vld [vmem:[%s165 + $0x180] sm:$0xf]
      %v269 = vld [vmem:[%s165 + $0x184] sm:$0xf]
      %v270 = vld [vmem:[%s165 + $0x188] sm:$0xf]
      %v271 = vld [vmem:[%s165 + $0x18c] sm:$0xf]
      %v272 = vld [vmem:[%s165 + $0x190] sm:$0xf]
      %v273 = vld [vmem:[%s165 + $0x194] sm:$0xf]
      %v274 = vld [vmem:[%s165 + $0x198] sm:$0xf]
      %v275 = vld [vmem:[%s165 + $0x19c] sm:$0xf]
      %v276 = vld [vmem:[%s165 + $0x1a0] sm:$0xf]
      %v277 = vld [vmem:[%s165 + $0x1a4] sm:$0xf]
      %v278 = vld [vmem:[%s165 + $0x1a8] sm:$0xf]
      %v279 = vld [vmem:[%s165 + $0x1ac] sm:$0xf]
      %v280 = vld [vmem:[%s165 + $0x1b0] sm:$0xf]
      %v281 = vld [vmem:[%s165 + $0x1b4] sm:$0xf]
      %v282 = vld [vmem:[%s165 + $0x1b8] sm:$0xf]
      %v283 = vld [vmem:[%s165 + $0x1bc] sm:$0xf]
      %v284 = vld [vmem:[%s165 + $0x1c0] sm:$0xf]
      %v285 = vld [vmem:[%s165 + $0x1c4] sm:$0xf]
      %v286 = vld [vmem:[%s165 + $0x1c8] sm:$0xf]
      %v287 = vld [vmem:[%s165 + $0x1cc] sm:$0xf]
      %v288 = vld [vmem:[%s165 + $0x1d0] sm:$0xf]
      %v289 = vld [vmem:[%s165 + $0x1d4] sm:$0xf]
      %v290 = vld [vmem:[%s165 + $0x1d8] sm:$0xf]
      %v291 = vld [vmem:[%s165 + $0x1dc] sm:$0xf]
      %v292 = vld [vmem:[%s165 + $0x1e0] sm:$0xf]
      %v293 = vld [vmem:[%s165 + $0x1e4] sm:$0xf]
      %v294 = vld [vmem:[%s165 + $0x1e8] sm:$0xf]
      %v295 = vld [vmem:[%s165 + $0x1ec] sm:$0xf]
      %v296 = vld [vmem:[%s165 + $0x1f0] sm:$0xf]
      %v297 = vld [vmem:[%s165 + $0x1f4] sm:$0xf]
      %v298 = vld [vmem:[%s165 + $0x1f8] sm:$0xf]
      %v299 = vld [vmem:[%s165 + $0x1fc] sm:$0xf]
      %v300 = vld [vmem:[%s165 + $0x200] sm:$0xf]
      %v301 = vld [vmem:[%s165 + $0x204] sm:$0xf]
      %v302 = vld [vmem:[%s165 + $0x208] sm:$0xf]
      %v303 = vld [vmem:[%s165 + $0x20c] sm:$0xf]
      %v304 = vld [vmem:[%s165 + $0x210] sm:$0xf]
      %v305 = vld [vmem:[%s165 + $0x214] sm:$0xf]
      %v306 = vld [vmem:[%s165 + $0x218] sm:$0xf]
      %v307 = vld [vmem:[%s165 + $0x21c] sm:$0xf]
      %v308 = vld [vmem:[%s165 + $0x220] sm:$0xf]
      %v309 = vld [vmem:[%s165 + $0x224] sm:$0xf]
      %v310 = vld [vmem:[%s165 + $0x228] sm:$0xf]
      %v311 = vld [vmem:[%s165 + $0x22c] sm:$0xf]
      %v312 = vld [vmem:[%s165 + $0x230] sm:$0xf]
      %v313 = vld [vmem:[%s165 + $0x234] sm:$0xf]
      %v314 = vld [vmem:[%s165 + $0x238] sm:$0xf]
      %v315 = vld [vmem:[%s165 + $0x23c] sm:$0xf]
      %v316 = vld [vmem:[%s165 + $0x240] sm:$0xf]
      %v317 = vld [vmem:[%s165 + $0x244] sm:$0xf]
      %v318 = vld [vmem:[%s165 + $0x248] sm:$0xf]
      %v319 = vld [vmem:[%s165 + $0x24c] sm:$0xf]
      %v320 = vld [vmem:[%s165 + $0x250] sm:$0xf]
      %v321 = vld [vmem:[%s165 + $0x254] sm:$0xf]
      %v322 = vld [vmem:[%s165 + $0x258] sm:$0xf]
      %v323 = vld [vmem:[%s165 + $0x25c] sm:$0xf]
      %v324 = vld [vmem:[%s165 + $0x260] sm:$0xf]
      %v325 = vld [vmem:[%s165 + $0x264] sm:$0xf]
      %v326 = vld [vmem:[%s165 + $0x268] sm:$0xf]
      %v327 = vld [vmem:[%s165 + $0x26c] sm:$0xf]
      %v328 = vld [vmem:[%s165 + $0x270] sm:$0xf]
      %v329 = vld [vmem:[%s165 + $0x274] sm:$0xf]
      %v330 = vld [vmem:[%s165 + $0x278] sm:$0xf]
      %v331 = vld [vmem:[%s165 + $0x27c] sm:$0xf]
      %v332 = vld [vmem:[%s165 + $0x280] sm:$0xf]
      %v333 = vld [vmem:[%s165 + $0x284] sm:$0xf]
      %v334 = vld [vmem:[%s165 + $0x288] sm:$0xf]
      %v335 = vld [vmem:[%s165 + $0x28c] sm:$0xf]
      %v336 = vld [vmem:[%s165 + $0x290] sm:$0xf]
      %v337 = vld [vmem:[%s165 + $0x294] sm:$0xf]
      %v338 = vld [vmem:[%s165 + $0x298] sm:$0xf]
      %v339 = vld [vmem:[%s165 + $0x29c] sm:$0xf]
      %v340 = vld [vmem:[%s165 + $0x2a0] sm:$0xf]
      %v341 = vld [vmem:[%s165 + $0x2a4] sm:$0xf]
      %v342 = vld [vmem:[%s165 + $0x2a8] sm:$0xf]
      %v343 = vld [vmem:[%s165 + $0x2ac] sm:$0xf]
      %v344 = vld [vmem:[%s165 + $0x2b0] sm:$0xf]
      %v345 = vld [vmem:[%s165 + $0x2b4] sm:$0xf]
      %v346 = vld [vmem:[%s165 + $0x2b8] sm:$0xf]
      %v347 = vld [vmem:[%s165 + $0x2bc] sm:$0xf]
      %v348 = vld [vmem:[%s165 + $0x2c0] sm:$0xf]
      %v349 = vld [vmem:[%s165 + $0x2c4] sm:$0xf]
      %v350 = vld [vmem:[%s165 + $0x2c8] sm:$0xf]
      %v351 = vld [vmem:[%s165 + $0x2cc] sm:$0xf]
      %v352 = vld [vmem:[%s165 + $0x2d0] sm:$0xf]
      %v353 = vld [vmem:[%s165 + $0x2d4] sm:$0xf]
      %v354 = vld [vmem:[%s165 + $0x2d8] sm:$0xf]
      %v355 = vld [vmem:[%s165 + $0x2dc] sm:$0xf]
      %v356 = vld [vmem:[%s165 + $0x2e0] sm:$0xf]
      %v357 = vld [vmem:[%s165 + $0x2e4] sm:$0xf]
      %v358 = vld [vmem:[%s165 + $0x2e8] sm:$0xf]
      %v359 = vld [vmem:[%s165 + $0x2ec] sm:$0xf]
      %v360 = vld [vmem:[%s165 + $0x2f0] sm:$0xf]
      %v361 = vld [vmem:[%s165 + $0x2f4] sm:$0xf]
      %v362 = vld [vmem:[%s165 + $0x2f8] sm:$0xf]
      %v363 = vld [vmem:[%s165 + $0x2fc] sm:$0xf]
      %v364 = vld [vmem:[%s165 + $0x300] sm:$0xf]
      %v365 = vld [vmem:[%s165 + $0x304] sm:$0xf]
      %v366 = vld [vmem:[%s165 + $0x308] sm:$0xf]
      %v367 = vld [vmem:[%s165 + $0x30c] sm:$0xf]
      %v368 = vld [vmem:[%s165 + $0x310] sm:$0xf]
      %v369 = vld [vmem:[%s165 + $0x314] sm:$0xf]
      %v370 = vld [vmem:[%s165 + $0x318] sm:$0xf]
      %v371 = vld [vmem:[%s165 + $0x31c] sm:$0xf]
      %v372 = vld [vmem:[%s165 + $0x320] sm:$0xf]
      %v373 = vld [vmem:[%s165 + $0x324] sm:$0xf]
      %v374 = vld [vmem:[%s165 + $0x328] sm:$0xf]
      %v375 = vld [vmem:[%s165 + $0x32c] sm:$0xf]
      %v376 = vld [vmem:[%s165 + $0x330] sm:$0xf]
      %v377 = vld [vmem:[%s165 + $0x334] sm:$0xf]
      %v378 = vld [vmem:[%s165 + $0x338] sm:$0xf]
      %v379 = vld [vmem:[%s165 + $0x33c] sm:$0xf]
      %v380 = vld [vmem:[%s165 + $0x340] sm:$0xf]
      %v381 = vld [vmem:[%s165 + $0x344] sm:$0xf]
      %v382 = vld [vmem:[%s165 + $0x348] sm:$0xf]
      %v383 = vld [vmem:[%s165 + $0x34c] sm:$0xf]
      %v384 = vld [vmem:[%s165 + $0x350] sm:$0xf]
      %v385 = vld [vmem:[%s165 + $0x354] sm:$0xf]
      %v386 = vld [vmem:[%s165 + $0x358] sm:$0xf]
      %v387 = vld [vmem:[%s165 + $0x35c] sm:$0xf]
      %v388 = vld [vmem:[%s165 + $0x360] sm:$0xf]
      %v389 = vld [vmem:[%s165 + $0x364] sm:$0xf]
      %v390 = vld [vmem:[%s165 + $0x368] sm:$0xf]
      %v391 = vld [vmem:[%s165 + $0x36c] sm:$0xf]
      %v392 = vld [vmem:[%s165 + $0x370] sm:$0xf]
      %v393 = vld [vmem:[%s165 + $0x374] sm:$0xf]
      %v394 = vld [vmem:[%s165 + $0x378] sm:$0xf]
      %v395 = vld [vmem:[%s165 + $0x37c] sm:$0xf]
      %v396 = vld [vmem:[%s165 + $0x380] sm:$0xf]
      %v397 = vld [vmem:[%s165 + $0x384] sm:$0xf]
      %v398 = vld [vmem:[%s165 + $0x388] sm:$0xf]
      %v399 = vld [vmem:[%s165 + $0x38c] sm:$0xf]
      %v400 = vld [vmem:[%s165 + $0x390] sm:$0xf]
      %v401 = vld [vmem:[%s165 + $0x394] sm:$0xf]
      %v402 = vld [vmem:[%s165 + $0x398] sm:$0xf]
      %v403 = vld [vmem:[%s165 + $0x39c] sm:$0xf]
      %v404 = vld [vmem:[%s165 + $0x3a0] sm:$0xf]
      %v405 = vld [vmem:[%s165 + $0x3a4] sm:$0xf]
      %v406 = vld [vmem:[%s165 + $0x3a8] sm:$0xf]
      %v407 = vld [vmem:[%s165 + $0x3ac] sm:$0xf]
      %v408 = vld [vmem:[%s165 + $0x3b0] sm:$0xf]
      %v409 = vld [vmem:[%s165 + $0x3b4] sm:$0xf]
      %v410 = vld [vmem:[%s165 + $0x3b8] sm:$0xf]
      %v411 = vld [vmem:[%s165 + $0x3bc] sm:$0xf]
      %v412 = vld [vmem:[%s165 + $0x3c0] sm:$0xf]
      %v413 = vld [vmem:[%s165 + $0x3c4] sm:$0xf]
      %v414 = vld [vmem:[%s165 + $0x3c8] sm:$0xf]
      %v415 = vld [vmem:[%s165 + $0x3cc] sm:$0xf]
      %v416 = vld [vmem:[%s165 + $0x3d0] sm:$0xf]
      %v417 = vld [vmem:[%s165 + $0x3d4] sm:$0xf]
      %v418 = vld [vmem:[%s165 + $0x3d8] sm:$0xf]
      %v419 = vld [vmem:[%s165 + $0x3dc] sm:$0xf]
      %v420 = vld [vmem:[%s165 + $0x3e0] sm:$0xf]
      %v421 = vld [vmem:[%s165 + $0x3e4] sm:$0xf]
      %v422 = vld [vmem:[%s165 + $0x3e8] sm:$0xf]
      %v423 = vld [vmem:[%s165 + $0x3ec] sm:$0xf]
      %v424 = vld [vmem:[%s165 + $0x3f0] sm:$0xf]
      %v425 = vld [vmem:[%s165 + $0x3f4] sm:$0xf]
      %v426 = vld [vmem:[%s165 + $0x3f8] sm:$0xf]
      %v427 = vld [vmem:[%s165 + $0x3fc] sm:$0xf]
      %v428 = vld [vmem:[%s1] sm:$0xf]
      %v429 = vld [vmem:[%s1 + $0x4] sm:$0x1]
      %v430 = vld [vmem:[%s2] sm:$0x1]
      %v432 = vlaneseq
      %v433 = vshrl.u32 %v432, 7
      %v434 = vsub.s32 0, %v433
      %v435 = vrot.slane %v430, %v434
      %v693 = vunpack.c.l.b16 %v172
      %v694 = vunpack.c.l.b16 %v173
      %v695 = vunpack.c.l.b16 %v174
      %v696 = vunpack.c.l.b16 %v175
      %v697 = vunpack.c.l.b16 %v176
      %v698 = vunpack.c.l.b16 %v177
      %v699 = vunpack.c.l.b16 %v178
      %v700 = vunpack.c.l.b16 %v179
      %v701 = vunpack.c.l.b16 %v180
      %v702 = vunpack.c.l.b16 %v181
      %v703 = vunpack.c.l.b16 %v182
      %v704 = vunpack.c.l.b16 %v183
      %v705 = vunpack.c.l.b16 %v184
      %v706 = vunpack.c.l.b16 %v185
      %v707 = vunpack.c.l.b16 %v186
      %v708 = vunpack.c.l.b16 %v187
      %v709 = vunpack.c.l.b16 %v188
      %v710 = vunpack.c.l.b16 %v189
      %v711 = vunpack.c.l.b16 %v190
      %v712 = vunpack.c.l.b16 %v191
      %v713 = vunpack.c.l.b16 %v192
      %v714 = vunpack.c.l.b16 %v193
      %v715 = vunpack.c.l.b16 %v194
      %v716 = vunpack.c.l.b16 %v195
      %v717 = vunpack.c.l.b16 %v196
      %v718 = vunpack.c.l.b16 %v197
      %v719 = vunpack.c.l.b16 %v198
      %v720 = vunpack.c.l.b16 %v199
      %v721 = vunpack.c.l.b16 %v200
      %v722 = vunpack.c.l.b16 %v201
      %v723 = vunpack.c.l.b16 %v202
      %v724 = vunpack.c.l.b16 %v203
      %v725 = vunpack.c.l.b16 %v204
      %v726 = vunpack.c.l.b16 %v205
      %v727 = vunpack.c.l.b16 %v206
      %v728 = vunpack.c.l.b16 %v207
      %v729 = vunpack.c.l.b16 %v208
      %v730 = vunpack.c.l.b16 %v209
      %v731 = vunpack.c.l.b16 %v210
      %v732 = vunpack.c.l.b16 %v211
      %v733 = vunpack.c.l.b16 %v212
      %v734 = vunpack.c.l.b16 %v213
      %v735 = vunpack.c.l.b16 %v214
      %v736 = vunpack.c.l.b16 %v215
      %v737 = vunpack.c.l.b16 %v216
      %v738 = vunpack.c.l.b16 %v217
      %v739 = vunpack.c.l.b16 %v218
      %v740 = vunpack.c.l.b16 %v219
      %v741 = vunpack.c.l.b16 %v220
      %v742 = vunpack.c.l.b16 %v221
      %v743 = vunpack.c.l.b16 %v222
      %v744 = vunpack.c.l.b16 %v223
      %v745 = vunpack.c.l.b16 %v224
      %v746 = vunpack.c.l.b16 %v225
      %v747 = vunpack.c.l.b16 %v226
      %v748 = vunpack.c.l.b16 %v227
      %v749 = vunpack.c.l.b16 %v228
      %v750 = vunpack.c.l.b16 %v229
      %v751 = vunpack.c.l.b16 %v230
      %v752 = vunpack.c.l.b16 %v231
      %v753 = vunpack.c.l.b16 %v232
      %v754 = vunpack.c.l.b16 %v233
      %v755 = vunpack.c.l.b16 %v234
      %v756 = vunpack.c.l.b16 %v235
      %v757 = vunpack.c.l.b16 %v236
      %v758 = vunpack.c.l.b16 %v237
      %v759 = vunpack.c.l.b16 %v238
      %v760 = vunpack.c.l.b16 %v239
      %v761 = vunpack.c.l.b16 %v240
      %v762 = vunpack.c.l.b16 %v241
      %v763 = vunpack.c.l.b16 %v242
      %v764 = vunpack.c.l.b16 %v243
      %v765 = vunpack.c.l.b16 %v244
      %v766 = vunpack.c.l.b16 %v245
      %v767 = vunpack.c.l.b16 %v246
      %v768 = vunpack.c.l.b16 %v247
      %v769 = vunpack.c.l.b16 %v248
      %v770 = vunpack.c.l.b16 %v249
      %v771 = vunpack.c.l.b16 %v250
      %v772 = vunpack.c.l.b16 %v251
      %v773 = vunpack.c.l.b16 %v252
      %v774 = vunpack.c.l.b16 %v253
      %v775 = vunpack.c.l.b16 %v254
      %v776 = vunpack.c.l.b16 %v255
      %v777 = vunpack.c.l.b16 %v256
      %v778 = vunpack.c.l.b16 %v257
      %v779 = vunpack.c.l.b16 %v258
      %v780 = vunpack.c.l.b16 %v259
      %v781 = vunpack.c.l.b16 %v260
      %v782 = vunpack.c.l.b16 %v261
      %v783 = vunpack.c.l.b16 %v262
      %v784 = vunpack.c.l.b16 %v263
      %v785 = vunpack.c.l.b16 %v264
      %v786 = vunpack.c.l.b16 %v265
      %v787 = vunpack.c.l.b16 %v266
      %v788 = vunpack.c.l.b16 %v267
      %v789 = vunpack.c.l.b16 %v268
      %v790 = vunpack.c.l.b16 %v269
      %v791 = vunpack.c.l.b16 %v270
      %v792 = vunpack.c.l.b16 %v271
      %v793 = vunpack.c.l.b16 %v272
      %v794 = vunpack.c.l.b16 %v273
      %v795 = vunpack.c.l.b16 %v274
      %v796 = vunpack.c.l.b16 %v275
      %v797 = vunpack.c.l.b16 %v276
      %v798 = vunpack.c.l.b16 %v277
      %v799 = vunpack.c.l.b16 %v278
      %v800 = vunpack.c.l.b16 %v279
      %v801 = vunpack.c.l.b16 %v280
      %v802 = vunpack.c.l.b16 %v281
      %v803 = vunpack.c.l.b16 %v282
      %v804 = vunpack.c.l.b16 %v283
      %v805 = vunpack.c.l.b16 %v284
      %v806 = vunpack.c.l.b16 %v285
      %v807 = vunpack.c.l.b16 %v286
      %v808 = vunpack.c.l.b16 %v287
      %v809 = vunpack.c.l.b16 %v288
      %v810 = vunpack.c.l.b16 %v289
      %v811 = vunpack.c.l.b16 %v290
      %v812 = vunpack.c.l.b16 %v291
      %v813 = vunpack.c.l.b16 %v292
      %v814 = vunpack.c.l.b16 %v293
      %v815 = vunpack.c.l.b16 %v294
      %v816 = vunpack.c.l.b16 %v295
      %v817 = vunpack.c.l.b16 %v296
      %v818 = vunpack.c.l.b16 %v297
      %v819 = vunpack.c.l.b16 %v298
      %v820 = vunpack.c.l.b16 %v299
      %v821 = vunpack.c.l.b16 %v300
      %v822 = vunpack.c.l.b16 %v301
      %v823 = vunpack.c.l.b16 %v302
      %v824 = vunpack.c.l.b16 %v303
      %v825 = vunpack.c.l.b16 %v304
      %v826 = vunpack.c.l.b16 %v305
      %v827 = vunpack.c.l.b16 %v306
      %v828 = vunpack.c.l.b16 %v307
      %v829 = vunpack.c.l.b16 %v308
      %v830 = vunpack.c.l.b16 %v309
      %v831 = vunpack.c.l.b16 %v310
      %v832 = vunpack.c.l.b16 %v311
      %v833 = vunpack.c.l.b16 %v312
      %v834 = vunpack.c.l.b16 %v313
      %v835 = vunpack.c.l.b16 %v314
      %v836 = vunpack.c.l.b16 %v315
      %v837 = vunpack.c.l.b16 %v316
      %v838 = vunpack.c.l.b16 %v317
      %v839 = vunpack.c.l.b16 %v318
      %v840 = vunpack.c.l.b16 %v319
      %v841 = vunpack.c.l.b16 %v320
      %v842 = vunpack.c.l.b16 %v321
      %v843 = vunpack.c.l.b16 %v322
      %v844 = vunpack.c.l.b16 %v323
      %v845 = vunpack.c.l.b16 %v324
      %v846 = vunpack.c.l.b16 %v325
      %v847 = vunpack.c.l.b16 %v326
      %v848 = vunpack.c.l.b16 %v327
      %v849 = vunpack.c.l.b16 %v328
      %v850 = vunpack.c.l.b16 %v329
      %v851 = vunpack.c.l.b16 %v330
      %v852 = vunpack.c.l.b16 %v331
      %v853 = vunpack.c.l.b16 %v332
      %v854 = vunpack.c.l.b16 %v333
      %v855 = vunpack.c.l.b16 %v334
      %v856 = vunpack.c.l.b16 %v335
      %v857 = vunpack.c.l.b16 %v336
      %v858 = vunpack.c.l.b16 %v337
      %v859 = vunpack.c.l.b16 %v338
      %v860 = vunpack.c.l.b16 %v339
      %v861 = vunpack.c.l.b16 %v340
      %v862 = vunpack.c.l.b16 %v341
      %v863 = vunpack.c.l.b16 %v342
      %v864 = vunpack.c.l.b16 %v343
      %v865 = vunpack.c.l.b16 %v344
      %v866 = vunpack.c.l.b16 %v345
      %v867 = vunpack.c.l.b16 %v346
      %v868 = vunpack.c.l.b16 %v347
      %v869 = vunpack.c.l.b16 %v348
      %v870 = vunpack.c.l.b16 %v349
      %v871 = vunpack.c.l.b16 %v350
      %v872 = vunpack.c.l.b16 %v351
      %v873 = vunpack.c.l.b16 %v352
      %v874 = vunpack.c.l.b16 %v353
      %v875 = vunpack.c.l.b16 %v354
      %v876 = vunpack.c.l.b16 %v355
      %v877 = vunpack.c.l.b16 %v356
      %v878 = vunpack.c.l.b16 %v357
      %v879 = vunpack.c.l.b16 %v358
      %v880 = vunpack.c.l.b16 %v359
      %v881 = vunpack.c.l.b16 %v360
      %v882 = vunpack.c.l.b16 %v361
      %v883 = vunpack.c.l.b16 %v362
      %v884 = vunpack.c.l.b16 %v363
      %v885 = vunpack.c.l.b16 %v364
      %v886 = vunpack.c.l.b16 %v365
      %v887 = vunpack.c.l.b16 %v366
      %v888 = vunpack.c.l.b16 %v367
      %v889 = vunpack.c.l.b16 %v368
      %v890 = vunpack.c.l.b16 %v369
      %v891 = vunpack.c.l.b16 %v370
      %v892 = vunpack.c.l.b16 %v371
      %v893 = vunpack.c.l.b16 %v372
      %v894 = vunpack.c.l.b16 %v373
      %v895 = vunpack.c.l.b16 %v374
      %v896 = vunpack.c.l.b16 %v375
      %v897 = vunpack.c.l.b16 %v376
      %v898 = vunpack.c.l.b16 %v377
      %v899 = vunpack.c.l.b16 %v378
      %v900 = vunpack.c.l.b16 %v379
      %v901 = vunpack.c.l.b16 %v380
      %v902 = vunpack.c.l.b16 %v381
      %v903 = vunpack.c.l.b16 %v382
      %v904 = vunpack.c.l.b16 %v383
      %v905 = vunpack.c.l.b16 %v384
      %v906 = vunpack.c.l.b16 %v385
      %v907 = vunpack.c.l.b16 %v386
      %v908 = vunpack.c.l.b16 %v387
      %v909 = vunpack.c.l.b16 %v388
      %v910 = vunpack.c.l.b16 %v389
      %v911 = vunpack.c.l.b16 %v390
      %v912 = vunpack.c.l.b16 %v391
      %v913 = vunpack.c.l.b16 %v392
      %v914 = vunpack.c.l.b16 %v393
      %v915 = vunpack.c.l.b16 %v394
      %v916 = vunpack.c.l.b16 %v395
      %v917 = vunpack.c.l.b16 %v396
      %v918 = vunpack.c.l.b16 %v397
      %v919 = vunpack.c.l.b16 %v398
      %v920 = vunpack.c.l.b16 %v399
      %v921 = vunpack.c.l.b16 %v400
      %v922 = vunpack.c.l.b16 %v401
      %v923 = vunpack.c.l.b16 %v402
      %v924 = vunpack.c.l.b16 %v403
      %v925 = vunpack.c.l.b16 %v404
      %v926 = vunpack.c.l.b16 %v405
      %v927 = vunpack.c.l.b16 %v406
      %v928 = vunpack.c.l.b16 %v407
      %v929 = vunpack.c.l.b16 %v408
      %v930 = vunpack.c.l.b16 %v409
      %v931 = vunpack.c.l.b16 %v410
      %v932 = vunpack.c.l.b16 %v411
      %v933 = vunpack.c.l.b16 %v412
      %v934 = vunpack.c.l.b16 %v413
      %v935 = vunpack.c.l.b16 %v414
      %v936 = vunpack.c.l.b16 %v415
      %v937 = vunpack.c.l.b16 %v416
      %v938 = vunpack.c.l.b16 %v417
      %v939 = vunpack.c.l.b16 %v418
      %v940 = vunpack.c.l.b16 %v419
      %v941 = vunpack.c.l.b16 %v420
      %v942 = vunpack.c.l.b16 %v421
      %v943 = vunpack.c.l.b16 %v422
      %v944 = vunpack.c.l.b16 %v423
      %v945 = vunpack.c.l.b16 %v424
      %v946 = vunpack.c.l.b16 %v425
      %v947 = vunpack.c.l.b16 %v426
      %v948 = vunpack.c.l.b16 %v427
      %v949 = vpack.c.b16 %v694, %v693
      %v950 = vpack.c.b16 %v696, %v695
      %v951 = vpack.c.b16 %v698, %v697
      %v952 = vpack.c.b16 %v700, %v699
      %v953 = vpack.c.b16 %v702, %v701
      %v954 = vpack.c.b16 %v704, %v703
      %v955 = vpack.c.b16 %v706, %v705
      %v956 = vpack.c.b16 %v708, %v707
      %v957 = vpack.c.b16 %v710, %v709
      %v958 = vpack.c.b16 %v712, %v711
      %v959 = vpack.c.b16 %v714, %v713
      %v960 = vpack.c.b16 %v716, %v715
      %v961 = vpack.c.b16 %v718, %v717
      %v962 = vpack.c.b16 %v720, %v719
      %v963 = vpack.c.b16 %v722, %v721
      %v964 = vpack.c.b16 %v724, %v723
      %v965 = vpack.c.b16 %v726, %v725
      %v966 = vpack.c.b16 %v728, %v727
      %v967 = vpack.c.b16 %v730, %v729
      %v968 = vpack.c.b16 %v732, %v731
      %v969 = vpack.c.b16 %v734, %v733
      %v970 = vpack.c.b16 %v736, %v735
      %v971 = vpack.c.b16 %v738, %v737
      %v972 = vpack.c.b16 %v740, %v739
      %v973 = vpack.c.b16 %v742, %v741
      %v974 = vpack.c.b16 %v744, %v743
      %v975 = vpack.c.b16 %v746, %v745
      %v976 = vpack.c.b16 %v748, %v747
      %v977 = vpack.c.b16 %v750, %v749
      %v978 = vpack.c.b16 %v752, %v751
      %v979 = vpack.c.b16 %v754, %v753
      %v980 = vpack.c.b16 %v756, %v755
      %v981 = vpack.c.b16 %v758, %v757
      %v982 = vpack.c.b16 %v760, %v759
      %v983 = vpack.c.b16 %v762, %v761
      %v984 = vpack.c.b16 %v764, %v763
      %v985 = vpack.c.b16 %v766, %v765
      %v986 = vpack.c.b16 %v768, %v767
      %v987 = vpack.c.b16 %v770, %v769
      %v988 = vpack.c.b16 %v772, %v771
      %v989 = vpack.c.b16 %v774, %v773
      %v990 = vpack.c.b16 %v776, %v775
      %v991 = vpack.c.b16 %v778, %v777
      %v992 = vpack.c.b16 %v780, %v779
      %v993 = vpack.c.b16 %v782, %v781
      %v994 = vpack.c.b16 %v784, %v783
      %v995 = vpack.c.b16 %v786, %v785
      %v996 = vpack.c.b16 %v788, %v787
      %v997 = vpack.c.b16 %v790, %v789
      %v998 = vpack.c.b16 %v792, %v791
      %v999 = vpack.c.b16 %v794, %v793
      %v1000 = vpack.c.b16 %v796, %v795
      %v1001 = vpack.c.b16 %v798, %v797
      %v1002 = vpack.c.b16 %v800, %v799
      %v1003 = vpack.c.b16 %v802, %v801
      %v1004 = vpack.c.b16 %v804, %v803
      %v1005 = vpack.c.b16 %v806, %v805
      %v1006 = vpack.c.b16 %v808, %v807
      %v1007 = vpack.c.b16 %v810, %v809
      %v1008 = vpack.c.b16 %v812, %v811
      %v1009 = vpack.c.b16 %v814, %v813
      %v1010 = vpack.c.b16 %v816, %v815
      %v1011 = vpack.c.b16 %v818, %v817
      %v1012 = vpack.c.b16 %v820, %v819
      %v1013 = vpack.c.b16 %v822, %v821
      %v1014 = vpack.c.b16 %v824, %v823
      %v1015 = vpack.c.b16 %v826, %v825
      %v1016 = vpack.c.b16 %v828, %v827
      %v1017 = vpack.c.b16 %v830, %v829
      %v1018 = vpack.c.b16 %v832, %v831
      %v1019 = vpack.c.b16 %v834, %v833
      %v1020 = vpack.c.b16 %v836, %v835
      %v1021 = vpack.c.b16 %v838, %v837
      %v1022 = vpack.c.b16 %v840, %v839
      %v1023 = vpack.c.b16 %v842, %v841
      %v1024 = vpack.c.b16 %v844, %v843
      %v1025 = vpack.c.b16 %v846, %v845
      %v1026 = vpack.c.b16 %v848, %v847
      %v1027 = vpack.c.b16 %v850, %v849
      %v1028 = vpack.c.b16 %v852, %v851
      %v1029 = vpack.c.b16 %v854, %v853
      %v1030 = vpack.c.b16 %v856, %v855
      %v1031 = vpack.c.b16 %v858, %v857
      %v1032 = vpack.c.b16 %v860, %v859
      %v1033 = vpack.c.b16 %v862, %v861
      %v1034 = vpack.c.b16 %v864, %v863
      %v1035 = vpack.c.b16 %v866, %v865
      %v1036 = vpack.c.b16 %v868, %v867
      %v1037 = vpack.c.b16 %v870, %v869
      %v1038 = vpack.c.b16 %v872, %v871
      %v1039 = vpack.c.b16 %v874, %v873
      %v1040 = vpack.c.b16 %v876, %v875
      %v1041 = vpack.c.b16 %v878, %v877
      %v1042 = vpack.c.b16 %v880, %v879
      %v1043 = vpack.c.b16 %v882, %v881
      %v1044 = vpack.c.b16 %v884, %v883
      %v1045 = vpack.c.b16 %v886, %v885
      %v1046 = vpack.c.b16 %v888, %v887
      %v1047 = vpack.c.b16 %v890, %v889
      %v1048 = vpack.c.b16 %v892, %v891
      %v1049 = vpack.c.b16 %v894, %v893
      %v1050 = vpack.c.b16 %v896, %v895
      %v1051 = vpack.c.b16 %v898, %v897
      %v1052 = vpack.c.b16 %v900, %v899
      %v1053 = vpack.c.b16 %v902, %v901
      %v1054 = vpack.c.b16 %v904, %v903
      %v1055 = vpack.c.b16 %v906, %v905
      %v1056 = vpack.c.b16 %v908, %v907
      %v1057 = vpack.c.b16 %v910, %v909
      %v1058 = vpack.c.b16 %v912, %v911
      %v1059 = vpack.c.b16 %v914, %v913
      %v1060 = vpack.c.b16 %v916, %v915
      %v1061 = vpack.c.b16 %v918, %v917
      %v1062 = vpack.c.b16 %v920, %v919
      %v1063 = vpack.c.b16 %v922, %v921
      %v1064 = vpack.c.b16 %v924, %v923
      %v1065 = vpack.c.b16 %v926, %v925
      %v1066 = vpack.c.b16 %v928, %v927
      %v1067 = vpack.c.b16 %v930, %v929
      %v1068 = vpack.c.b16 %v932, %v931
      %v1069 = vpack.c.b16 %v934, %v933
      %v1070 = vpack.c.b16 %v936, %v935
      %v1071 = vpack.c.b16 %v938, %v937
      %v1072 = vpack.c.b16 %v940, %v939
      %v1073 = vpack.c.b16 %v942, %v941
      %v1074 = vpack.c.b16 %v944, %v943
      %v1075 = vpack.c.b16 %v946, %v945
      %v1076 = vpack.c.b16 %v948, %v947
      %v1079 = vunpack.c.l.b16 %v428
      %v1080 = vunpack.c.l.b16 %v429
      %v1081 = vpack.c.b16 %v1080, %v1079
      %vm1082 = vcmask 72704
      %v1084 = vsel %vm1082, %v949, 0
      %v1087 = vsel %vm1082, %v950, 0
      %v1090 = vsel %vm1082, %v951, 0
      %v1093 = vsel %vm1082, %v952, 0
      %v1096 = vsel %vm1082, %v953, 0
      %v1099 = vsel %vm1082, %v954, 0
      %v1102 = vsel %vm1082, %v955, 0
      %v1105 = vsel %vm1082, %v956, 0
      %v1108 = vsel %vm1082, %v957, 0
      %v1111 = vsel %vm1082, %v958, 0
      %v1114 = vsel %vm1082, %v959, 0
      %v1117 = vsel %vm1082, %v960, 0
      %v1120 = vsel %vm1082, %v961, 0
      %v1123 = vsel %vm1082, %v962, 0
      %v1126 = vsel %vm1082, %v963, 0
      %v1129 = vsel %vm1082, %v964, 0
      %v1132 = vsel %vm1082, %v965, 0
      %v1135 = vsel %vm1082, %v966, 0
      %v1138 = vsel %vm1082, %v967, 0
      %v1141 = vsel %vm1082, %v968, 0
      %v1144 = vsel %vm1082, %v969, 0
      %v1147 = vsel %vm1082, %v970, 0
      %v1150 = vsel %vm1082, %v971, 0
      %v1153 = vsel %vm1082, %v972, 0
      %v1156 = vsel %vm1082, %v973, 0
      %v1159 = vsel %vm1082, %v974, 0
      %v1162 = vsel %vm1082, %v975, 0
      %v1165 = vsel %vm1082, %v976, 0
      %v1168 = vsel %vm1082, %v977, 0
      %v1171 = vsel %vm1082, %v978, 0
      %v1174 = vsel %vm1082, %v979, 0
      %v1177 = vsel %vm1082, %v980, 0
      %v1180 = vsel %vm1082, %v981, 0
      %v1183 = vsel %vm1082, %v982, 0
      %v1186 = vsel %vm1082, %v983, 0
      %v1189 = vsel %vm1082, %v984, 0
      %v1192 = vsel %vm1082, %v985, 0
      %v1195 = vsel %vm1082, %v986, 0
      %v1198 = vsel %vm1082, %v987, 0
      %v1201 = vsel %vm1082, %v988, 0
      %v1204 = vsel %vm1082, %v989, 0
      %v1207 = vsel %vm1082, %v990, 0
      %v1210 = vsel %vm1082, %v991, 0
      %v1213 = vsel %vm1082, %v992, 0
      %v1216 = vsel %vm1082, %v993, 0
      %v1219 = vsel %vm1082, %v994, 0
      %v1222 = vsel %vm1082, %v995, 0
      %v1225 = vsel %vm1082, %v996, 0
      %v1228 = vsel %vm1082, %v997, 0
      %v1231 = vsel %vm1082, %v998, 0
      %v1234 = vsel %vm1082, %v999, 0
      %v1237 = vsel %vm1082, %v1000, 0
      %v1240 = vsel %vm1082, %v1001, 0
      %v1243 = vsel %vm1082, %v1002, 0
      %v1246 = vsel %vm1082, %v1003, 0
      %v1249 = vsel %vm1082, %v1004, 0
      %v1252 = vsel %vm1082, %v1005, 0
      %v1255 = vsel %vm1082, %v1006, 0
      %v1258 = vsel %vm1082, %v1007, 0
      %v1261 = vsel %vm1082, %v1008, 0
      %v1264 = vsel %vm1082, %v1009, 0
      %v1267 = vsel %vm1082, %v1010, 0
      %v1270 = vsel %vm1082, %v1011, 0
      %v1273 = vsel %vm1082, %v1012, 0
      %v1276 = vsel %vm1082, %v1013, 0
      %v1279 = vsel %vm1082, %v1014, 0
      %v1282 = vsel %vm1082, %v1015, 0
      %v1285 = vsel %vm1082, %v1016, 0
      %v1288 = vsel %vm1082, %v1017, 0
      %v1291 = vsel %vm1082, %v1018, 0
      %v1294 = vsel %vm1082, %v1019, 0
      %v1297 = vsel %vm1082, %v1020, 0
      %v1300 = vsel %vm1082, %v1021, 0
      %v1303 = vsel %vm1082, %v1022, 0
      %v1306 = vsel %vm1082, %v1023, 0
      %v1309 = vsel %vm1082, %v1024, 0
      %v1312 = vsel %vm1082, %v1025, 0
      %v1315 = vsel %vm1082, %v1026, 0
      %v1318 = vsel %vm1082, %v1027, 0
      %v1321 = vsel %vm1082, %v1028, 0
      %v1324 = vsel %vm1082, %v1029, 0
      %v1327 = vsel %vm1082, %v1030, 0
      %v1330 = vsel %vm1082, %v1031, 0
      %v1333 = vsel %vm1082, %v1032, 0
      %v1336 = vsel %vm1082, %v1033, 0
      %v1339 = vsel %vm1082, %v1034, 0
      %v1342 = vsel %vm1082, %v1035, 0
      %v1345 = vsel %vm1082, %v1036, 0
      %v1348 = vsel %vm1082, %v1037, 0
      %v1351 = vsel %vm1082, %v1038, 0
      %v1354 = vsel %vm1082, %v1039, 0
      %v1357 = vsel %vm1082, %v1040, 0
      %v1360 = vsel %vm1082, %v1041, 0
      %v1363 = vsel %vm1082, %v1042, 0
      %v1366 = vsel %vm1082, %v1043, 0
      %v1369 = vsel %vm1082, %v1044, 0
      %v1372 = vsel %vm1082, %v1045, 0
      %v1375 = vsel %vm1082, %v1046, 0
      %v1378 = vsel %vm1082, %v1047, 0
      %v1381 = vsel %vm1082, %v1048, 0
      %v1384 = vsel %vm1082, %v1049, 0
      %v1387 = vsel %vm1082, %v1050, 0
      %v1390 = vsel %vm1082, %v1051, 0
      %v1393 = vsel %vm1082, %v1052, 0
      %v1396 = vsel %vm1082, %v1053, 0
      %v1399 = vsel %vm1082, %v1054, 0
      %v1402 = vsel %vm1082, %v1055, 0
      %v1405 = vsel %vm1082, %v1056, 0
      %v1408 = vsel %vm1082, %v1057, 0
      %v1411 = vsel %vm1082, %v1058, 0
      %v1414 = vsel %vm1082, %v1059, 0
      %v1417 = vsel %vm1082, %v1060, 0
      %v1420 = vsel %vm1082, %v1061, 0
      %v1423 = vsel %vm1082, %v1062, 0
      %v1426 = vsel %vm1082, %v1063, 0
      %v1429 = vsel %vm1082, %v1064, 0
      %v1432 = vsel %vm1082, %v1065, 0
      %v1435 = vsel %vm1082, %v1066, 0
      %v1438 = vsel %vm1082, %v1067, 0
      %v1441 = vsel %vm1082, %v1068, 0
      %v1444 = vsel %vm1082, %v1069, 0
      %v1447 = vsel %vm1082, %v1070, 0
      %v1450 = vsel %vm1082, %v1071, 0
      %v1453 = vsel %vm1082, %v1072, 0
      %v1456 = vsel %vm1082, %v1073, 0
      %v1459 = vsel %vm1082, %v1074, 0
      %v1462 = vsel %vm1082, %v1075, 0
      %v1465 = vsel %vm1082, %v1076, 0
      %vm1467 = vcmask 1043456
      %vm1468 = vcmask 1044480
      %v1469 = vsel %vm1467, 4294967295, 65535
      %v1470 = vsel %vm1468, %v1469, 0
      %v1472 = vand.u32 %v1081, %v1470
      %1474 = vmatprep.subr.bf16.mxu0 0
      %1475 = vmatpush1.bf16.msra.mxu0 %v1472
      %1476 = vmatprep.subr.bf16.mxu0 0
      %1477 = vmatpush1.bf16.msra.mxu0 0
      %1478 = vmatprep.subr.bf16.mxu0 0
      %1479 = vmatpush1.bf16.msra.mxu0 0
      %1480 = vmatprep.subr.bf16.mxu0 0
      %1481 = vmatpush1.bf16.msra.mxu0 0
      %1482 = vmatprep.subr.bf16.mxu0 0
      %1483 = vmatpush1.bf16.msra.mxu0 0
      %1484 = vmatprep.subr.bf16.mxu0 0
      %1485 = vmatpush1.bf16.msra.mxu0 0
      %1486 = vmatprep.subr.bf16.mxu0 0
      %1487 = vmatpush1.bf16.msra.mxu0 0
      %1488 = vmatprep.subr.bf16.mxu0 0
      %1489 = vmatpush1.bf16.msra.mxu0 0
      %1490 = vmatprep.subr.bf16.mxu0 0
      %1491 = vmatpush1.bf16.msra.mxu0 0
      %1492 = vmatprep.subr.bf16.mxu0 0
      %1493 = vmatpush1.bf16.msra.mxu0 0
      %1494 = vmatprep.subr.bf16.mxu0 0
      %1495 = vmatpush1.bf16.msra.mxu0 0
      %1496 = vmatprep.subr.bf16.mxu0 0
      %1497 = vmatpush1.bf16.msra.mxu0 0
      %1498 = vmatprep.subr.bf16.mxu0 0
      %1499 = vmatpush1.bf16.msra.mxu0 0
      %1500 = vmatprep.subr.bf16.mxu0 0
      %1501 = vmatpush1.bf16.msra.mxu0 0
      %1502 = vmatprep.subr.bf16.mxu0 0
      %1503 = vmatpush1.bf16.msra.mxu0 0
      %1504 = vmatprep.subr.bf16.mxu0 0
      %1505 = vmatpush1.bf16.msra.mxu0 0
      %1506 = vmatprep.mubr.bf16.mxu0 0
      %1507 = vmatmul.mubr.bf16.gmra.mrb[0].mxu0 %v1084
      %v1508 = vpop.f32.mrb[0].mxu0
      %v1509 = vadd.f32 %v435, %v1508
      %v1510 = vpop.f32.mrb[0].mxu0
      %v1511 = vpop.f32.mrb[0].mxu0
      %v1512 = vadd.f32 %v435, %v1511
      %v1513 = vpop.f32.mrb[0].mxu0
      %1514 = vmatprep.mubr.bf16.mxu0 0
      %1515 = vmatmul.mubr.bf16.gmra.mrb[0].mxu0 %v1087
      %v1516 = vpop.f32.mrb[0].mxu0
      %v1517 = vadd.f32 %v435, %v1516
      %v1518 = vpop.f32.mrb[0].mxu0
      %v1519 = vpop.f32.mrb[0].mxu0
      %v1520 = vadd.f32 %v435, %v1519
      %v1521 = vpop.f32.mrb[0].mxu0
      %1522 = vmatprep.mubr.bf16.mxu0 0
      %1523 = vmatmul.mubr.bf16.gmra.mrb[0].mxu0 %v1090
      %v1524 = vpop.f32.mrb[0].mxu0
      %v1525 = vadd.f32 %v435, %v1524
      %v1526 = vpop.f32.mrb[0].mxu0
      %v1527 = vpop.f32.mrb[0].mxu0
      %v1528 = vadd.f32 %v435, %v1527
      %v1529 = vpop.f32.mrb[0].mxu0
      %1530 = vmatprep.mubr.bf16.mxu0 0
      %1531 = vmatmul.mubr.bf16.gmra.mrb[0].mxu0 %v1093
      %v1532 = vpop.f32.mrb[0].mxu0
      %v1533 = vadd.f32 %v435, %v1532
      %v1534 = vpop.f32.mrb[0].mxu0
      %v1535 = vpop.f32.mrb[0].mxu0
      %v1536 = vadd.f32 %v435, %v1535
      %v1537 = vpop.f32.mrb[0].mxu0
      %1538 = vmatprep.mubr.bf16.mxu0 0
      %1539 = vmatmul.mubr.bf16.gmra.mrb[0].mxu0 %v1096
      %v1540 = vpop.f32.mrb[0].mxu0
      %v1541 = vadd.f32 %v435, %v1540
      %v1542 = vpop.f32.mrb[0].mxu0
      %v1543 = vpop.f32.mrb[0].mxu0
      %v1544 = vadd.f32 %v435, %v1543
      %v1545 = vpop.f32.mrb[0].mxu0
      %1546 = vmatprep.mubr.bf16.mxu0 0
      %1547 = vmatmul.mubr.bf16.gmra.mrb[0].mxu0 %v1099
      %v1548 = vpop.f32.mrb[0].mxu0
      %v1549 = vadd.f32 %v435, %v1548
      %v1550 = vpop.f32.mrb[0].mxu0
      %v1551 = vpop.f32.mrb[0].mxu0
      %v1552 = vadd.f32 %v435, %v1551
      %v1553 = vpop.f32.mrb[0].mxu0
      %1554 = vmatprep.mubr.bf16.mxu0 0
      %1555 = vmatmul.mubr.bf16.gmra.mrb[0].mxu0 %v1102
      %v1556 = vpop.f32.mrb[0].mxu0
      %v1557 = vadd.f32 %v435, %v1556
      %v1558 = vpop.f32.mrb[0].mxu0
      %v1559 = vpop.f32.mrb[0].mxu0
      %v1560 = vadd.f32 %v435, %v1559
      %v1561 = vpop.f32.mrb[0].mxu0
      %1562 = vmatprep.mubr.bf16.mxu0 0
      %1563 = vmatmul.mubr.bf16.gmra.mrb[0].mxu0 %v1105
      %v1564 = vpop.f32.mrb[0].mxu0
      %v1565 = vadd.f32 %v435, %v1564
      %v1566 = vpop.f32.mrb[0].mxu0
      %v1567 = vpop.f32.mrb[0].mxu0
      %v1568 = vadd.f32 %v435, %v1567
      %v1569 = vpop.f32.mrb[0].mxu0
      %1570 = vmatprep.mubr.bf16.mxu0 0
      %1571 = vmatmul.mubr.bf16.gmra.mrb[0].mxu0 %v1108
      %v1572 = vpop.f32.mrb[0].mxu0
      %v1573 = vadd.f32 %v435, %v1572
      %v1574 = vpop.f32.mrb[0].mxu0
      %v1575 = vpop.f32.mrb[0].mxu0
      %v1576 = vadd.f32 %v435, %v1575
      %v1577 = vpop.f32.mrb[0].mxu0
      %1578 = vmatprep.mubr.bf16.mxu0 0
      %1579 = vmatmul.mubr.bf16.gmra.mrb[0].mxu0 %v1111
      %v1580 = vpop.f32.mrb[0].mxu0
      %v1581 = vadd.f32 %v435, %v1580
      %v1582 = vpop.f32.mrb[0].mxu0
      %v1583 = vpop.f32.mrb[0].mxu0
      %v1584 = vadd.f32 %v435, %v1583
      %v1585 = vpop.f32.mrb[0].mxu0
      %1586 = vmatprep.mubr.bf16.mxu0 0
      %1587 = vmatmul.mubr.bf16.gmra.mrb[0].mxu0 %v1114
      %v1588 = vpop.f32.mrb[0].mxu0
      %v1589 = vadd.f32 %v435, %v1588
      %v1590 = vpop.f32.mrb[0].mxu0
      %v1591 = vpop.f32.mrb[0].mxu0
      %v1592 = vadd.f32 %v435, %v1591
      %v1593 = vpop.f32.mrb[0].mxu0
      %1594 = vmatprep.mubr.bf16.mxu0 0
      %1595 = vmatmul.mubr.bf16.gmra.mrb[0].mxu0 %v1117
      %v1596 = vpop.f32.mrb[0].mxu0
      %v1597 = vadd.f32 %v435, %v1596
      %v1598 = vpop.f32.mrb[0].mxu0
      %v1599 = vpop.f32.mrb[0].mxu0
      %v1600 = vadd.f32 %v435, %v1599
      %v1601 = vpop.f32.mrb[0].mxu0
      %1602 = vmatprep.mubr.bf16.mxu0 0
      %1603 = vmatmul.mubr.bf16.gmra.mrb[0].mxu0 %v1120
      %v1604 = vpop.f32.mrb[0].mxu0
      %v1605 = vadd.f32 %v435, %v1604
      %v1606 = vpop.f32.mrb[0].mxu0
      %v1607 = vpop.f32.mrb[0].mxu0
      %v1608 = vadd.f32 %v435, %v1607
      %v1609 = vpop.f32.mrb[0].mxu0
      %1610 = vmatprep.mubr.bf16.mxu0 0
      %1611 = vmatmul.mubr.bf16.gmra.mrb[0].mxu0 %v1123
      %v1612 = vpop.f32.mrb[0].mxu0
      %v1613 = vadd.f32 %v435, %v1612
      %v1614 = vpop.f32.mrb[0].mxu0
      %v1615 = vpop.f32.mrb[0].mxu0
      %v1616 = vadd.f32 %v435, %v1615
      %v1617 = vpop.f32.mrb[0].mxu0
      %1618 = vmatprep.mubr.bf16.mxu0 0
      %1619 = vmatmul.mubr.bf16.gmra.mrb[0].mxu0 %v1126
      %v1620 = vpop.f32.mrb[0].mxu0
      %v1621 = vadd.f32 %v435, %v1620
      %v1622 = vpop.f32.mrb[0].mxu0
      %v1623 = vpop.f32.mrb[0].mxu0
      %v1624 = vadd.f32 %v435, %v1623
      %v1625 = vpop.f32.mrb[0].mxu0
      %1626 = vmatprep.mubr.bf16.mxu0 0
      %1627 = vmatmul.mubr.bf16.gmra.mrb[0].mxu0 %v1129
      %v1628 = vpop.f32.mrb[0].mxu0
      %v1629 = vadd.f32 %v435, %v1628
      %v1630 = vpop.f32.mrb[0].mxu0
      %v1631 = vpop.f32.mrb[0].mxu0
      %v1632 = vadd.f32 %v435, %v1631
      %v1633 = vpop.f32.mrb[0].mxu0
      %1634 = vmatprep.mubr.bf16.mxu0 0
      %1635 = vmatmul.mubr.bf16.gmra.mrb[0].mxu0 %v1132
      %v1636 = vpop.f32.mrb[0].mxu0
      %v1637 = vadd.f32 %v435, %v1636
      %v1638 = vpop.f32.mrb[0].mxu0
      %v1639 = vpop.f32.mrb[0].mxu0
      %v1640 = vadd.f32 %v435, %v1639
      %v1641 = vpop.f32.mrb[0].mxu0
      %1642 = vmatprep.mubr.bf16.mxu0 0
      %1643 = vmatmul.mubr.bf16.gmra.mrb[0].mxu0 %v1135
      %v1644 = vpop.f32.mrb[0].mxu0
      %v1645 = vadd.f32 %v435, %v1644
      %v1646 = vpop.f32.mrb[0].mxu0
      %v1647 = vpop.f32.mrb[0].mxu0
      %v1648 = vadd.f32 %v435, %v1647
      %v1649 = vpop.f32.mrb[0].mxu0
      %1650 = vmatprep.mubr.bf16.mxu0 0
      %1651 = vmatmul.mubr.bf16.gmra.mrb[0].mxu0 %v1138
      %v1652 = vpop.f32.mrb[0].mxu0
      %v1653 = vadd.f32 %v435, %v1652
      %v1654 = vpop.f32.mrb[0].mxu0
      %v1655 = vpop.f32.mrb[0].mxu0
      %v1656 = vadd.f32 %v435, %v1655
      %v1657 = vpop.f32.mrb[0].mxu0
      %1658 = vmatprep.mubr.bf16.mxu0 0
      %1659 = vmatmul.mubr.bf16.gmra.mrb[0].mxu0 %v1141
      %v1660 = vpop.f32.mrb[0].mxu0
      %v1661 = vadd.f32 %v435, %v1660
      %v1662 = vpop.f32.mrb[0].mxu0
      %v1663 = vpop.f32.mrb[0].mxu0
      %v1664 = vadd.f32 %v435, %v1663
      %v1665 = vpop.f32.mrb[0].mxu0
      %1666 = vmatprep.mubr.bf16.mxu0 0
      %1667 = vmatmul.mubr.bf16.gmra.mrb[0].mxu0 %v1144
      %v1668 = vpop.f32.mrb[0].mxu0
      %v1669 = vadd.f32 %v435, %v1668
      %v1670 = vpop.f32.mrb[0].mxu0
      %v1671 = vpop.f32.mrb[0].mxu0
      %v1672 = vadd.f32 %v435, %v1671
      %v1673 = vpop.f32.mrb[0].mxu0
      %1674 = vmatprep.mubr.bf16.mxu0 0
      %1675 = vmatmul.mubr.bf16.gmra.mrb[0].mxu0 %v1147
      %v1676 = vpop.f32.mrb[0].mxu0
      %v1677 = vadd.f32 %v435, %v1676
      %v1678 = vpop.f32.mrb[0].mxu0
      %v1679 = vpop.f32.mrb[0].mxu0
      %v1680 = vadd.f32 %v435, %v1679
      %v1681 = vpop.f32.mrb[0].mxu0
      %1682 = vmatprep.mubr.bf16.mxu0 0
      %1683 = vmatmul.mubr.bf16.gmra.mrb[0].mxu0 %v1150
      %v1684 = vpop.f32.mrb[0].mxu0
      %v1685 = vadd.f32 %v435, %v1684
      %v1686 = vpop.f32.mrb[0].mxu0
      %v1687 = vpop.f32.mrb[0].mxu0
      %v1688 = vadd.f32 %v435, %v1687
      %v1689 = vpop.f32.mrb[0].mxu0
      %1690 = vmatprep.mubr.bf16.mxu0 0
      %1691 = vmatmul.mubr.bf16.gmra.mrb[0].mxu0 %v1153
      %v1692 = vpop.f32.mrb[0].mxu0
      %v1693 = vadd.f32 %v435, %v1692
      %v1694 = vpop.f32.mrb[0].mxu0
      %v1695 = vpop.f32.mrb[0].mxu0
      %v1696 = vadd.f32 %v435, %v1695
      %v1697 = vpop.f32.mrb[0].mxu0
      %1698 = vmatprep.mubr.bf16.mxu0 0
      %1699 = vmatmul.mubr.bf16.gmra.mrb[0].mxu0 %v1156
      %v1700 = vpop.f32.mrb[0].mxu0
      %v1701 = vadd.f32 %v435, %v1700
      %v1702 = vpop.f32.mrb[0].mxu0
      %v1703 = vpop.f32.mrb[0].mxu0
      %v1704 = vadd.f32 %v435, %v1703
      %v1705 = vpop.f32.mrb[0].mxu0
      %1706 = vmatprep.mubr.bf16.mxu0 0
      %1707 = vmatmul.mubr.bf16.gmra.mrb[0].mxu0 %v1159
      %v1708 = vpop.f32.mrb[0].mxu0
      %v1709 = vadd.f32 %v435, %v1708
      %v1710 = vpop.f32.mrb[0].mxu0
      %v1711 = vpop.f32.mrb[0].mxu0
      %v1712 = vadd.f32 %v435, %v1711
      %v1713 = vpop.f32.mrb[0].mxu0
      %1714 = vmatprep.mubr.bf16.mxu0 0
      %1715 = vmatmul.mubr.bf16.gmra.mrb[0].mxu0 %v1162
      %v1716 = vpop.f32.mrb[0].mxu0
      %v1717 = vadd.f32 %v435, %v1716
      %v1718 = vpop.f32.mrb[0].mxu0
      %v1719 = vpop.f32.mrb[0].mxu0
      %v1720 = vadd.f32 %v435, %v1719
      %v1721 = vpop.f32.mrb[0].mxu0
      %1722 = vmatprep.mubr.bf16.mxu0 0
      %1723 = vmatmul.mubr.bf16.gmra.mrb[0].mxu0 %v1165
      %v1724 = vpop.f32.mrb[0].mxu0
      %v1725 = vadd.f32 %v435, %v1724
      %v1726 = vpop.f32.mrb[0].mxu0
      %v1727 = vpop.f32.mrb[0].mxu0
      %v1728 = vadd.f32 %v435, %v1727
      %v1729 = vpop.f32.mrb[0].mxu0
      %1730 = vmatprep.mubr.bf16.mxu0 0
      %1731 = vmatmul.mubr.bf16.gmra.mrb[0].mxu0 %v1168
      %v1732 = vpop.f32.mrb[0].mxu0
      %v1733 = vadd.f32 %v435, %v1732
      %v1734 = vpop.f32.mrb[0].mxu0
      %v1735 = vpop.f32.mrb[0].mxu0
      %v1736 = vadd.f32 %v435, %v1735
      %v1737 = vpop.f32.mrb[0].mxu0
      %1738 = vmatprep.mubr.bf16.mxu0 0
      %1739 = vmatmul.mubr.bf16.gmra.mrb[0].mxu0 %v1171
      %v1740 = vpop.f32.mrb[0].mxu0
      %v1741 = vadd.f32 %v435, %v1740
      %v1742 = vpop.f32.mrb[0].mxu0
      %v1743 = vpop.f32.mrb[0].mxu0
      %v1744 = vadd.f32 %v435, %v1743
      %v1745 = vpop.f32.mrb[0].mxu0
      %1746 = vmatprep.mubr.bf16.mxu0 0
      %1747 = vmatmul.mubr.bf16.gmra.mrb[0].mxu0 %v1174
      %v1748 = vpop.f32.mrb[0].mxu0
      %v1749 = vadd.f32 %v435, %v1748
      %v1750 = vpop.f32.mrb[0].mxu0
      %v1751 = vpop.f32.mrb[0].mxu0
      %v1752 = vadd.f32 %v435, %v1751
      %v1753 = vpop.f32.mrb[0].mxu0
      %1754 = vmatprep.mubr.bf16.mxu0 0
      %1755 = vmatmul.mubr.bf16.gmra.mrb[0].mxu0 %v1177
      %v1756 = vpop.f32.mrb[0].mxu0
      %v1757 = vadd.f32 %v435, %v1756
      %v1758 = vpop.f32.mrb[0].mxu0
      %v1759 = vpop.f32.mrb[0].mxu0
      %v1760 = vadd.f32 %v435, %v1759
      %v1761 = vpop.f32.mrb[0].mxu0
      %1762 = vmatprep.mubr.bf16.mxu0 0
      %1763 = vmatmul.mubr.bf16.gmra.mrb[0].mxu0 %v1180
      %v1764 = vpop.f32.mrb[0].mxu0
      %v1765 = vadd.f32 %v435, %v1764
      %v1766 = vpop.f32.mrb[0].mxu0
      %v1767 = vpop.f32.mrb[0].mxu0
      %v1768 = vadd.f32 %v435, %v1767
      %v1769 = vpop.f32.mrb[0].mxu0
      %1770 = vmatprep.mubr.bf16.mxu0 0
      %1771 = vmatmul.mubr.bf16.gmra.mrb[0].mxu0 %v1183
      %v1772 = vpop.f32.mrb[0].mxu0
      %v1773 = vadd.f32 %v435, %v1772
      %v1774 = vpop.f32.mrb[0].mxu0
      %v1775 = vpop.f32.mrb[0].mxu0
      %v1776 = vadd.f32 %v435, %v1775
      %v1777 = vpop.f32.mrb[0].mxu0
      %1778 = vmatprep.mubr.bf16.mxu0 0
      %1779 = vmatmul.mubr.bf16.gmra.mrb[0].mxu0 %v1186
      %v1780 = vpop.f32.mrb[0].mxu0
      %v1781 = vadd.f32 %v435, %v1780
      %v1782 = vpop.f32.mrb[0].mxu0
      %v1783 = vpop.f32.mrb[0].mxu0
      %v1784 = vadd.f32 %v435, %v1783
      %v1785 = vpop.f32.mrb[0].mxu0
      %1786 = vmatprep.mubr.bf16.mxu0 0
      %1787 = vmatmul.mubr.bf16.gmra.mrb[0].mxu0 %v1189
      %v1788 = vpop.f32.mrb[0].mxu0
      %v1789 = vadd.f32 %v435, %v1788
      %v1790 = vpop.f32.mrb[0].mxu0
      %v1791 = vpop.f32.mrb[0].mxu0
      %v1792 = vadd.f32 %v435, %v1791
      %v1793 = vpop.f32.mrb[0].mxu0
      %1794 = vmatprep.mubr.bf16.mxu0 0
      %1795 = vmatmul.mubr.bf16.gmra.mrb[0].mxu0 %v1192
      %v1796 = vpop.f32.mrb[0].mxu0
      %v1797 = vadd.f32 %v435, %v1796
      %v1798 = vpop.f32.mrb[0].mxu0
      %v1799 = vpop.f32.mrb[0].mxu0
      %v1800 = vadd.f32 %v435, %v1799
      %v1801 = vpop.f32.mrb[0].mxu0
      %1802 = vmatprep.mubr.bf16.mxu0 0
      %1803 = vmatmul.mubr.bf16.gmra.mrb[0].mxu0 %v1195
      %v1804 = vpop.f32.mrb[0].mxu0
      %v1805 = vadd.f32 %v435, %v1804
      %v1806 = vpop.f32.mrb[0].mxu0
      %v1807 = vpop.f32.mrb[0].mxu0
      %v1808 = vadd.f32 %v435, %v1807
      %v1809 = vpop.f32.mrb[0].mxu0
      %1810 = vmatprep.mubr.bf16.mxu0 0
      %1811 = vmatmul.mubr.bf16.gmra.mrb[0].mxu0 %v1198
      %v1812 = vpop.f32.mrb[0].mxu0
      %v1813 = vadd.f32 %v435, %v1812
      %v1814 = vpop.f32.mrb[0].mxu0
      %v1815 = vpop.f32.mrb[0].mxu0
      %v1816 = vadd.f32 %v435, %v1815
      %v1817 = vpop.f32.mrb[0].mxu0
      %1818 = vmatprep.mubr.bf16.mxu0 0
      %1819 = vmatmul.mubr.bf16.gmra.mrb[0].mxu0 %v1201
      %v1820 = vpop.f32.mrb[0].mxu0
      %v1821 = vadd.f32 %v435, %v1820
      %v1822 = vpop.f32.mrb[0].mxu0
      %v1823 = vpop.f32.mrb[0].mxu0
      %v1824 = vadd.f32 %v435, %v1823
      %v1825 = vpop.f32.mrb[0].mxu0
      %1826 = vmatprep.mubr.bf16.mxu0 0
      %1827 = vmatmul.mubr.bf16.gmra.mrb[0].mxu0 %v1204
      %v1828 = vpop.f32.mrb[0].mxu0
      %v1829 = vadd.f32 %v435, %v1828
      %v1830 = vpop.f32.mrb[0].mxu0
      %v1831 = vpop.f32.mrb[0].mxu0
      %v1832 = vadd.f32 %v435, %v1831
      %v1833 = vpop.f32.mrb[0].mxu0
      %1834 = vmatprep.mubr.bf16.mxu0 0
      %1835 = vmatmul.mubr.bf16.gmra.mrb[0].mxu0 %v1207
      %v1836 = vpop.f32.mrb[0].mxu0
      %v1837 = vadd.f32 %v435, %v1836
      %v1838 = vpop.f32.mrb[0].mxu0
      %v1839 = vpop.f32.mrb[0].mxu0
      %v1840 = vadd.f32 %v435, %v1839
      %v1841 = vpop.f32.mrb[0].mxu0
      %1842 = vmatprep.mubr.bf16.mxu0 0
      %1843 = vmatmul.mubr.bf16.gmra.mrb[0].mxu0 %v1210
      %v1844 = vpop.f32.mrb[0].mxu0
      %v1845 = vadd.f32 %v435, %v1844
      %v1846 = vpop.f32.mrb[0].mxu0
      %v1847 = vpop.f32.mrb[0].mxu0
      %v1848 = vadd.f32 %v435, %v1847
      %v1849 = vpop.f32.mrb[0].mxu0
      %1850 = vmatprep.mubr.bf16.mxu0 0
      %1851 = vmatmul.mubr.bf16.gmra.mrb[0].mxu0 %v1213
      %v1852 = vpop.f32.mrb[0].mxu0
      %v1853 = vadd.f32 %v435, %v1852
      %v1854 = vpop.f32.mrb[0].mxu0
      %v1855 = vpop.f32.mrb[0].mxu0
      %v1856 = vadd.f32 %v435, %v1855
      %v1857 = vpop.f32.mrb[0].mxu0
      %1858 = vmatprep.mubr.bf16.mxu0 0
      %1859 = vmatmul.mubr.bf16.gmra.mrb[0].mxu0 %v1216
      %v1860 = vpop.f32.mrb[0].mxu0
      %v1861 = vadd.f32 %v435, %v1860
      %v1862 = vpop.f32.mrb[0].mxu0
      %v1863 = vpop.f32.mrb[0].mxu0
      %v1864 = vadd.f32 %v435, %v1863
      %v1865 = vpop.f32.mrb[0].mxu0
      %1866 = vmatprep.mubr.bf16.mxu0 0
      %1867 = vmatmul.mubr.bf16.gmra.mrb[0].mxu0 %v1219
      %v1868 = vpop.f32.mrb[0].mxu0
      %v1869 = vadd.f32 %v435, %v1868
      %v1870 = vpop.f32.mrb[0].mxu0
      %v1871 = vpop.f32.mrb[0].mxu0
      %v1872 = vadd.f32 %v435, %v1871
      %v1873 = vpop.f32.mrb[0].mxu0
      %1874 = vmatprep.mubr.bf16.mxu0 0
      %1875 = vmatmul.mubr.bf16.gmra.mrb[0].mxu0 %v1222
      %v1876 = vpop.f32.mrb[0].mxu0
      %v1877 = vadd.f32 %v435, %v1876
      %v1878 = vpop.f32.mrb[0].mxu0
      %v1879 = vpop.f32.mrb[0].mxu0
      %v1880 = vadd.f32 %v435, %v1879
      %v1881 = vpop.f32.mrb[0].mxu0
      %1882 = vmatprep.mubr.bf16.mxu0 0
      %1883 = vmatmul.mubr.bf16.gmra.mrb[0].mxu0 %v1225
      %v1884 = vpop.f32.mrb[0].mxu0
      %v1885 = vadd.f32 %v435, %v1884
      %v1886 = vpop.f32.mrb[0].mxu0
      %v1887 = vpop.f32.mrb[0].mxu0
      %v1888 = vadd.f32 %v435, %v1887
      %v1889 = vpop.f32.mrb[0].mxu0
      %1890 = vmatprep.mubr.bf16.mxu0 0
      %1891 = vmatmul.mubr.bf16.gmra.mrb[0].mxu0 %v1228
      %v1892 = vpop.f32.mrb[0].mxu0
      %v1893 = vadd.f32 %v435, %v1892
      %v1894 = vpop.f32.mrb[0].mxu0
      %v1895 = vpop.f32.mrb[0].mxu0
      %v1896 = vadd.f32 %v435, %v1895
      %v1897 = vpop.f32.mrb[0].mxu0
      %1898 = vmatprep.mubr.bf16.mxu0 0
      %1899 = vmatmul.mubr.bf16.gmra.mrb[0].mxu0 %v1231
      %v1900 = vpop.f32.mrb[0].mxu0
      %v1901 = vadd.f32 %v435, %v1900
      %v1902 = vpop.f32.mrb[0].mxu0
      %v1903 = vpop.f32.mrb[0].mxu0
      %v1904 = vadd.f32 %v435, %v1903
      %v1905 = vpop.f32.mrb[0].mxu0
      %1906 = vmatprep.mubr.bf16.mxu0 0
      %1907 = vmatmul.mubr.bf16.gmra.mrb[0].mxu0 %v1234
      %v1908 = vpop.f32.mrb[0].mxu0
      %v1909 = vadd.f32 %v435, %v1908
      %v1910 = vpop.f32.mrb[0].mxu0
      %v1911 = vpop.f32.mrb[0].mxu0
      %v1912 = vadd.f32 %v435, %v1911
      %v1913 = vpop.f32.mrb[0].mxu0
      %1914 = vmatprep.mubr.bf16.mxu0 0
      %1915 = vmatmul.mubr.bf16.gmra.mrb[0].mxu0 %v1237
      %v1916 = vpop.f32.mrb[0].mxu0
      %v1917 = vadd.f32 %v435, %v1916
      %v1918 = vpop.f32.mrb[0].mxu0
      %v1919 = vpop.f32.mrb[0].mxu0
      %v1920 = vadd.f32 %v435, %v1919
      %v1921 = vpop.f32.mrb[0].mxu0
      %1922 = vmatprep.mubr.bf16.mxu0 0
      %1923 = vmatmul.mubr.bf16.gmra.mrb[0].mxu0 %v1240
      %v1924 = vpop.f32.mrb[0].mxu0
      %v1925 = vadd.f32 %v435, %v1924
      %v1926 = vpop.f32.mrb[0].mxu0
      %v1927 = vpop.f32.mrb[0].mxu0
      %v1928 = vadd.f32 %v435, %v1927
      %v1929 = vpop.f32.mrb[0].mxu0
      %1930 = vmatprep.mubr.bf16.mxu0 0
      %1931 = vmatmul.mubr.bf16.gmra.mrb[0].mxu0 %v1243
      %v1932 = vpop.f32.mrb[0].mxu0
      %v1933 = vadd.f32 %v435, %v1932
      %v1934 = vpop.f32.mrb[0].mxu0
      %v1935 = vpop.f32.mrb[0].mxu0
      %v1936 = vadd.f32 %v435, %v1935
      %v1937 = vpop.f32.mrb[0].mxu0
      %1938 = vmatprep.mubr.bf16.mxu0 0
      %1939 = vmatmul.mubr.bf16.gmra.mrb[0].mxu0 %v1246
      %v1940 = vpop.f32.mrb[0].mxu0
      %v1941 = vadd.f32 %v435, %v1940
      %v1942 = vpop.f32.mrb[0].mxu0
      %v1943 = vpop.f32.mrb[0].mxu0
      %v1944 = vadd.f32 %v435, %v1943
      %v1945 = vpop.f32.mrb[0].mxu0
      %1946 = vmatprep.mubr.bf16.mxu0 0
      %1947 = vmatmul.mubr.bf16.gmra.mrb[0].mxu0 %v1249
      %v1948 = vpop.f32.mrb[0].mxu0
      %v1949 = vadd.f32 %v435, %v1948
      %v1950 = vpop.f32.mrb[0].mxu0
      %v1951 = vpop.f32.mrb[0].mxu0
      %v1952 = vadd.f32 %v435, %v1951
      %v1953 = vpop.f32.mrb[0].mxu0
      %1954 = vmatprep.mubr.bf16.mxu0 0
      %1955 = vmatmul.mubr.bf16.gmra.mrb[0].mxu0 %v1252
      %v1956 = vpop.f32.mrb[0].mxu0
      %v1957 = vadd.f32 %v435, %v1956
      %v1958 = vpop.f32.mrb[0].mxu0
      %v1959 = vpop.f32.mrb[0].mxu0
      %v1960 = vadd.f32 %v435, %v1959
      %v1961 = vpop.f32.mrb[0].mxu0
      %1962 = vmatprep.mubr.bf16.mxu0 0
      %1963 = vmatmul.mubr.bf16.gmra.mrb[0].mxu0 %v1255
      %v1964 = vpop.f32.mrb[0].mxu0
      %v1965 = vadd.f32 %v435, %v1964
      %v1966 = vpop.f32.mrb[0].mxu0
      %v1967 = vpop.f32.mrb[0].mxu0
      %v1968 = vadd.f32 %v435, %v1967
      %v1969 = vpop.f32.mrb[0].mxu0
      %1970 = vmatprep.mubr.bf16.mxu0 0
      %1971 = vmatmul.mubr.bf16.gmra.mrb[0].mxu0 %v1258
      %v1972 = vpop.f32.mrb[0].mxu0
      %v1973 = vadd.f32 %v435, %v1972
      %v1974 = vpop.f32.mrb[0].mxu0
      %v1975 = vpop.f32.mrb[0].mxu0
      %v1976 = vadd.f32 %v435, %v1975
      %v1977 = vpop.f32.mrb[0].mxu0
      %1978 = vmatprep.mubr.bf16.mxu0 0
      %1979 = vmatmul.mubr.bf16.gmra.mrb[0].mxu0 %v1261
      %v1980 = vpop.f32.mrb[0].mxu0
      %v1981 = vadd.f32 %v435, %v1980
      %v1982 = vpop.f32.mrb[0].mxu0
      %v1983 = vpop.f32.mrb[0].mxu0
      %v1984 = vadd.f32 %v435, %v1983
      %v1985 = vpop.f32.mrb[0].mxu0
      %1986 = vmatprep.mubr.bf16.mxu0 0
      %1987 = vmatmul.mubr.bf16.gmra.mrb[0].mxu0 %v1264
      %v1988 = vpop.f32.mrb[0].mxu0
      %v1989 = vadd.f32 %v435, %v1988
      %v1990 = vpop.f32.mrb[0].mxu0
      %v1991 = vpop.f32.mrb[0].mxu0
      %v1992 = vadd.f32 %v435, %v1991
      %v1993 = vpop.f32.mrb[0].mxu0
      %1994 = vmatprep.mubr.bf16.mxu0 0
      %1995 = vmatmul.mubr.bf16.gmra.mrb[0].mxu0 %v1267
      %v1996 = vpop.f32.mrb[0].mxu0
      %v1997 = vadd.f32 %v435, %v1996
      %v1998 = vpop.f32.mrb[0].mxu0
      %v1999 = vpop.f32.mrb[0].mxu0
      %v2000 = vadd.f32 %v435, %v1999
      %v2001 = vpop.f32.mrb[0].mxu0
      %2002 = vmatprep.mubr.bf16.mxu0 0
      %2003 = vmatmul.mubr.bf16.gmra.mrb[0].mxu0 %v1270
      %v2004 = vpop.f32.mrb[0].mxu0
      %v2005 = vadd.f32 %v435, %v2004
      %v2006 = vpop.f32.mrb[0].mxu0
      %v2007 = vpop.f32.mrb[0].mxu0
      %v2008 = vadd.f32 %v435, %v2007
      %v2009 = vpop.f32.mrb[0].mxu0
      %2010 = vmatprep.mubr.bf16.mxu0 0
      %2011 = vmatmul.mubr.bf16.gmra.mrb[0].mxu0 %v1273
      %v2012 = vpop.f32.mrb[0].mxu0
      %v2013 = vadd.f32 %v435, %v2012
      %v2014 = vpop.f32.mrb[0].mxu0
      %v2015 = vpop.f32.mrb[0].mxu0
      %v2016 = vadd.f32 %v435, %v2015
      %v2017 = vpop.f32.mrb[0].mxu0
      %2018 = vmatprep.mubr.bf16.mxu0 0
      %2019 = vmatmul.mubr.bf16.gmra.mrb[0].mxu0 %v1276
      %v2020 = vpop.f32.mrb[0].mxu0
      %v2021 = vadd.f32 %v435, %v2020
      %v2022 = vpop.f32.mrb[0].mxu0
      %v2023 = vpop.f32.mrb[0].mxu0
      %v2024 = vadd.f32 %v435, %v2023
      %v2025 = vpop.f32.mrb[0].mxu0
      %2026 = vmatprep.mubr.bf16.mxu0 0
      %2027 = vmatmul.mubr.bf16.gmra.mrb[0].mxu0 %v1279
      %v2028 = vpop.f32.mrb[0].mxu0
      %v2029 = vadd.f32 %v435, %v2028
      %v2030 = vpop.f32.mrb[0].mxu0
      %v2031 = vpop.f32.mrb[0].mxu0
      %v2032 = vadd.f32 %v435, %v2031
      %v2033 = vpop.f32.mrb[0].mxu0
      %2034 = vmatprep.mubr.bf16.mxu0 0
      %2035 = vmatmul.mubr.bf16.gmra.mrb[0].mxu0 %v1282
      %v2036 = vpop.f32.mrb[0].mxu0
      %v2037 = vadd.f32 %v435, %v2036
      %v2038 = vpop.f32.mrb[0].mxu0
      %v2039 = vpop.f32.mrb[0].mxu0
      %v2040 = vadd.f32 %v435, %v2039
      %v2041 = vpop.f32.mrb[0].mxu0
      %2042 = vmatprep.mubr.bf16.mxu0 0
      %2043 = vmatmul.mubr.bf16.gmra.mrb[0].mxu0 %v1285
      %v2044 = vpop.f32.mrb[0].mxu0
      %v2045 = vadd.f32 %v435, %v2044
      %v2046 = vpop.f32.mrb[0].mxu0
      %v2047 = vpop.f32.mrb[0].mxu0
      %v2048 = vadd.f32 %v435, %v2047
      %v2049 = vpop.f32.mrb[0].mxu0
      %2050 = vmatprep.mubr.bf16.mxu0 0
      %2051 = vmatmul.mubr.bf16.gmra.mrb[0].mxu0 %v1288
      %v2052 = vpop.f32.mrb[0].mxu0
      %v2053 = vadd.f32 %v435, %v2052
      %v2054 = vpop.f32.mrb[0].mxu0
      %v2055 = vpop.f32.mrb[0].mxu0
      %v2056 = vadd.f32 %v435, %v2055
      %v2057 = vpop.f32.mrb[0].mxu0
      %2058 = vmatprep.mubr.bf16.mxu0 0
      %2059 = vmatmul.mubr.bf16.gmra.mrb[0].mxu0 %v1291
      %v2060 = vpop.f32.mrb[0].mxu0
      %v2061 = vadd.f32 %v435, %v2060
      %v2062 = vpop.f32.mrb[0].mxu0
      %v2063 = vpop.f32.mrb[0].mxu0
      %v2064 = vadd.f32 %v435, %v2063
      %v2065 = vpop.f32.mrb[0].mxu0
      %2066 = vmatprep.mubr.bf16.mxu0 0
      %2067 = vmatmul.mubr.bf16.gmra.mrb[0].mxu0 %v1294
      %v2068 = vpop.f32.mrb[0].mxu0
      %v2069 = vadd.f32 %v435, %v2068
      %v2070 = vpop.f32.mrb[0].mxu0
      %v2071 = vpop.f32.mrb[0].mxu0
      %v2072 = vadd.f32 %v435, %v2071
      %v2073 = vpop.f32.mrb[0].mxu0
      %2074 = vmatprep.mubr.bf16.mxu0 0
      %2075 = vmatmul.mubr.bf16.gmra.mrb[0].mxu0 %v1297
      %v2076 = vpop.f32.mrb[0].mxu0
      %v2077 = vadd.f32 %v435, %v2076
      %v2078 = vpop.f32.mrb[0].mxu0
      %v2079 = vpop.f32.mrb[0].mxu0
      %v2080 = vadd.f32 %v435, %v2079
      %v2081 = vpop.f32.mrb[0].mxu0
      %2082 = vmatprep.mubr.bf16.mxu0 0
      %2083 = vmatmul.mubr.bf16.gmra.mrb[0].mxu0 %v1300
      %v2084 = vpop.f32.mrb[0].mxu0
      %v2085 = vadd.f32 %v435, %v2084
      %v2086 = vpop.f32.mrb[0].mxu0
      %v2087 = vpop.f32.mrb[0].mxu0
      %v2088 = vadd.f32 %v435, %v2087
      %v2089 = vpop.f32.mrb[0].mxu0
      %2090 = vmatprep.mubr.bf16.mxu0 0
      %2091 = vmatmul.mubr.bf16.gmra.mrb[0].mxu0 %v1303
      %v2092 = vpop.f32.mrb[0].mxu0
      %v2093 = vadd.f32 %v435, %v2092
      %v2094 = vpop.f32.mrb[0].mxu0
      %v2095 = vpop.f32.mrb[0].mxu0
      %v2096 = vadd.f32 %v435, %v2095
      %v2097 = vpop.f32.mrb[0].mxu0
      %2098 = vmatprep.mubr.bf16.mxu0 0
      %2099 = vmatmul.mubr.bf16.gmra.mrb[0].mxu0 %v1306
      %v2100 = vpop.f32.mrb[0].mxu0
      %v2101 = vadd.f32 %v435, %v2100
      %v2102 = vpop.f32.mrb[0].mxu0
      %v2103 = vpop.f32.mrb[0].mxu0
      %v2104 = vadd.f32 %v435, %v2103
      %v2105 = vpop.f32.mrb[0].mxu0
      %2106 = vmatprep.mubr.bf16.mxu0 0
      %2107 = vmatmul.mubr.bf16.gmra.mrb[0].mxu0 %v1309
      %v2108 = vpop.f32.mrb[0].mxu0
      %v2109 = vadd.f32 %v435, %v2108
      %v2110 = vpop.f32.mrb[0].mxu0
      %v2111 = vpop.f32.mrb[0].mxu0
      %v2112 = vadd.f32 %v435, %v2111
      %v2113 = vpop.f32.mrb[0].mxu0
      %2114 = vmatprep.mubr.bf16.mxu0 0
      %2115 = vmatmul.mubr.bf16.gmra.mrb[0].mxu0 %v1312
      %v2116 = vpop.f32.mrb[0].mxu0
      %v2117 = vadd.f32 %v435, %v2116
      %v2118 = vpop.f32.mrb[0].mxu0
      %v2119 = vpop.f32.mrb[0].mxu0
      %v2120 = vadd.f32 %v435, %v2119
      %v2121 = vpop.f32.mrb[0].mxu0
      %2122 = vmatprep.mubr.bf16.mxu0 0
      %2123 = vmatmul.mubr.bf16.gmra.mrb[0].mxu0 %v1315
      %v2124 = vpop.f32.mrb[0].mxu0
      %v2125 = vadd.f32 %v435, %v2124
      %v2126 = vpop.f32.mrb[0].mxu0
      %v2127 = vpop.f32.mrb[0].mxu0
      %v2128 = vadd.f32 %v435, %v2127
      %v2129 = vpop.f32.mrb[0].mxu0
      %2130 = vmatprep.mubr.bf16.mxu0 0
      %2131 = vmatmul.mubr.bf16.gmra.mrb[0].mxu0 %v1318
      %v2132 = vpop.f32.mrb[0].mxu0
      %v2133 = vadd.f32 %v435, %v2132
      %v2134 = vpop.f32.mrb[0].mxu0
      %v2135 = vpop.f32.mrb[0].mxu0
      %v2136 = vadd.f32 %v435, %v2135
      %v2137 = vpop.f32.mrb[0].mxu0
      %2138 = vmatprep.mubr.bf16.mxu0 0
      %2139 = vmatmul.mubr.bf16.gmra.mrb[0].mxu0 %v1321
      %v2140 = vpop.f32.mrb[0].mxu0
      %v2141 = vadd.f32 %v435, %v2140
      %v2142 = vpop.f32.mrb[0].mxu0
      %v2143 = vpop.f32.mrb[0].mxu0
      %v2144 = vadd.f32 %v435, %v2143
      %v2145 = vpop.f32.mrb[0].mxu0
      %2146 = vmatprep.mubr.bf16.mxu0 0
      %2147 = vmatmul.mubr.bf16.gmra.mrb[0].mxu0 %v1324
      %v2148 = vpop.f32.mrb[0].mxu0
      %v2149 = vadd.f32 %v435, %v2148
      %v2150 = vpop.f32.mrb[0].mxu0
      %v2151 = vpop.f32.mrb[0].mxu0
      %v2152 = vadd.f32 %v435, %v2151
      %v2153 = vpop.f32.mrb[0].mxu0
      %2154 = vmatprep.mubr.bf16.mxu0 0
      %2155 = vmatmul.mubr.bf16.gmra.mrb[0].mxu0 %v1327
      %v2156 = vpop.f32.mrb[0].mxu0
      %v2157 = vadd.f32 %v435, %v2156
      %v2158 = vpop.f32.mrb[0].mxu0
      %v2159 = vpop.f32.mrb[0].mxu0
      %v2160 = vadd.f32 %v435, %v2159
      %v2161 = vpop.f32.mrb[0].mxu0
      %2162 = vmatprep.mubr.bf16.mxu0 0
      %2163 = vmatmul.mubr.bf16.gmra.mrb[0].mxu0 %v1330
      %v2164 = vpop.f32.mrb[0].mxu0
      %v2165 = vadd.f32 %v435, %v2164
      %v2166 = vpop.f32.mrb[0].mxu0
      %v2167 = vpop.f32.mrb[0].mxu0
      %v2168 = vadd.f32 %v435, %v2167
      %v2169 = vpop.f32.mrb[0].mxu0
      %2170 = vmatprep.mubr.bf16.mxu0 0
      %2171 = vmatmul.mubr.bf16.gmra.mrb[0].mxu0 %v1333
      %v2172 = vpop.f32.mrb[0].mxu0
      %v2173 = vadd.f32 %v435, %v2172
      %v2174 = vpop.f32.mrb[0].mxu0
      %v2175 = vpop.f32.mrb[0].mxu0
      %v2176 = vadd.f32 %v435, %v2175
      %v2177 = vpop.f32.mrb[0].mxu0
      %2178 = vmatprep.mubr.bf16.mxu0 0
      %2179 = vmatmul.mubr.bf16.gmra.mrb[0].mxu0 %v1336
      %v2180 = vpop.f32.mrb[0].mxu0
      %v2181 = vadd.f32 %v435, %v2180
      %v2182 = vpop.f32.mrb[0].mxu0
      %v2183 = vpop.f32.mrb[0].mxu0
      %v2184 = vadd.f32 %v435, %v2183
      %v2185 = vpop.f32.mrb[0].mxu0
      %2186 = vmatprep.mubr.bf16.mxu0 0
      %2187 = vmatmul.mubr.bf16.gmra.mrb[0].mxu0 %v1339
      %v2188 = vpop.f32.mrb[0].mxu0
      %v2189 = vadd.f32 %v435, %v2188
      %v2190 = vpop.f32.mrb[0].mxu0
      %v2191 = vpop.f32.mrb[0].mxu0
      %v2192 = vadd.f32 %v435, %v2191
      %v2193 = vpop.f32.mrb[0].mxu0
      %2194 = vmatprep.mubr.bf16.mxu0 0
      %2195 = vmatmul.mubr.bf16.gmra.mrb[0].mxu0 %v1342
      %v2196 = vpop.f32.mrb[0].mxu0
      %v2197 = vadd.f32 %v435, %v2196
      %v2198 = vpop.f32.mrb[0].mxu0
      %v2199 = vpop.f32.mrb[0].mxu0
      %v2200 = vadd.f32 %v435, %v2199
      %v2201 = vpop.f32.mrb[0].mxu0
      %2202 = vmatprep.mubr.bf16.mxu0 0
      %2203 = vmatmul.mubr.bf16.gmra.mrb[0].mxu0 %v1345
      %v2204 = vpop.f32.mrb[0].mxu0
      %v2205 = vadd.f32 %v435, %v2204
      %v2206 = vpop.f32.mrb[0].mxu0
      %v2207 = vpop.f32.mrb[0].mxu0
      %v2208 = vadd.f32 %v435, %v2207
      %v2209 = vpop.f32.mrb[0].mxu0
      %2210 = vmatprep.mubr.bf16.mxu0 0
      %2211 = vmatmul.mubr.bf16.gmra.mrb[0].mxu0 %v1348
      %v2212 = vpop.f32.mrb[0].mxu0
      %v2213 = vadd.f32 %v435, %v2212
      %v2214 = vpop.f32.mrb[0].mxu0
      %v2215 = vpop.f32.mrb[0].mxu0
      %v2216 = vadd.f32 %v435, %v2215
      %v2217 = vpop.f32.mrb[0].mxu0
      %2218 = vmatprep.mubr.bf16.mxu0 0
      %2219 = vmatmul.mubr.bf16.gmra.mrb[0].mxu0 %v1351
      %v2220 = vpop.f32.mrb[0].mxu0
      %v2221 = vadd.f32 %v435, %v2220
      %v2222 = vpop.f32.mrb[0].mxu0
      %v2223 = vpop.f32.mrb[0].mxu0
      %v2224 = vadd.f32 %v435, %v2223
      %v2225 = vpop.f32.mrb[0].mxu0
      %2226 = vmatprep.mubr.bf16.mxu0 0
      %2227 = vmatmul.mubr.bf16.gmra.mrb[0].mxu0 %v1354
      %v2228 = vpop.f32.mrb[0].mxu0
      %v2229 = vadd.f32 %v435, %v2228
      %v2230 = vpop.f32.mrb[0].mxu0
      %v2231 = vpop.f32.mrb[0].mxu0
      %v2232 = vadd.f32 %v435, %v2231
      %v2233 = vpop.f32.mrb[0].mxu0
      %2234 = vmatprep.mubr.bf16.mxu0 0
      %2235 = vmatmul.mubr.bf16.gmra.mrb[0].mxu0 %v1357
      %v2236 = vpop.f32.mrb[0].mxu0
      %v2237 = vadd.f32 %v435, %v2236
      %v2238 = vpop.f32.mrb[0].mxu0
      %v2239 = vpop.f32.mrb[0].mxu0
      %v2240 = vadd.f32 %v435, %v2239
      %v2241 = vpop.f32.mrb[0].mxu0
      %2242 = vmatprep.mubr.bf16.mxu0 0
      %2243 = vmatmul.mubr.bf16.gmra.mrb[0].mxu0 %v1360
      %v2244 = vpop.f32.mrb[0].mxu0
      %v2245 = vadd.f32 %v435, %v2244
      %v2246 = vpop.f32.mrb[0].mxu0
      %v2247 = vpop.f32.mrb[0].mxu0
      %v2248 = vadd.f32 %v435, %v2247
      %v2249 = vpop.f32.mrb[0].mxu0
      %2250 = vmatprep.mubr.bf16.mxu0 0
      %2251 = vmatmul.mubr.bf16.gmra.mrb[0].mxu0 %v1363
      %v2252 = vpop.f32.mrb[0].mxu0
      %v2253 = vadd.f32 %v435, %v2252
      %v2254 = vpop.f32.mrb[0].mxu0
      %v2255 = vpop.f32.mrb[0].mxu0
      %v2256 = vadd.f32 %v435, %v2255
      %v2257 = vpop.f32.mrb[0].mxu0
      %2258 = vmatprep.mubr.bf16.mxu0 0
      %2259 = vmatmul.mubr.bf16.gmra.mrb[0].mxu0 %v1366
      %v2260 = vpop.f32.mrb[0].mxu0
      %v2261 = vadd.f32 %v435, %v2260
      %v2262 = vpop.f32.mrb[0].mxu0
      %v2263 = vpop.f32.mrb[0].mxu0
      %v2264 = vadd.f32 %v435, %v2263
      %v2265 = vpop.f32.mrb[0].mxu0
      %2266 = vmatprep.mubr.bf16.mxu0 0
      %2267 = vmatmul.mubr.bf16.gmra.mrb[0].mxu0 %v1369
      %v2268 = vpop.f32.mrb[0].mxu0
      %v2269 = vadd.f32 %v435, %v2268
      %v2270 = vpop.f32.mrb[0].mxu0
      %v2271 = vpop.f32.mrb[0].mxu0
      %v2272 = vadd.f32 %v435, %v2271
      %v2273 = vpop.f32.mrb[0].mxu0
      %2274 = vmatprep.mubr.bf16.mxu0 0
      %2275 = vmatmul.mubr.bf16.gmra.mrb[0].mxu0 %v1372
      %v2276 = vpop.f32.mrb[0].mxu0
      %v2277 = vadd.f32 %v435, %v2276
      %v2278 = vpop.f32.mrb[0].mxu0
      %v2279 = vpop.f32.mrb[0].mxu0
      %v2280 = vadd.f32 %v435, %v2279
      %v2281 = vpop.f32.mrb[0].mxu0
      %2282 = vmatprep.mubr.bf16.mxu0 0
      %2283 = vmatmul.mubr.bf16.gmra.mrb[0].mxu0 %v1375
      %v2284 = vpop.f32.mrb[0].mxu0
      %v2285 = vadd.f32 %v435, %v2284
      %v2286 = vpop.f32.mrb[0].mxu0
      %v2287 = vpop.f32.mrb[0].mxu0
      %v2288 = vadd.f32 %v435, %v2287
      %v2289 = vpop.f32.mrb[0].mxu0
      %2290 = vmatprep.mubr.bf16.mxu0 0
      %2291 = vmatmul.mubr.bf16.gmra.mrb[0].mxu0 %v1378
      %v2292 = vpop.f32.mrb[0].mxu0
      %v2293 = vadd.f32 %v435, %v2292
      %v2294 = vpop.f32.mrb[0].mxu0
      %v2295 = vpop.f32.mrb[0].mxu0
      %v2296 = vadd.f32 %v435, %v2295
      %v2297 = vpop.f32.mrb[0].mxu0
      %2298 = vmatprep.mubr.bf16.mxu0 0
      %2299 = vmatmul.mubr.bf16.gmra.mrb[0].mxu0 %v1381
      %v2300 = vpop.f32.mrb[0].mxu0
      %v2301 = vadd.f32 %v435, %v2300
      %v2302 = vpop.f32.mrb[0].mxu0
      %v2303 = vpop.f32.mrb[0].mxu0
      %v2304 = vadd.f32 %v435, %v2303
      %v2305 = vpop.f32.mrb[0].mxu0
      %2306 = vmatprep.mubr.bf16.mxu0 0
      %2307 = vmatmul.mubr.bf16.gmra.mrb[0].mxu0 %v1384
      %v2308 = vpop.f32.mrb[0].mxu0
      %v2309 = vadd.f32 %v435, %v2308
      %v2310 = vpop.f32.mrb[0].mxu0
      %v2311 = vpop.f32.mrb[0].mxu0
      %v2312 = vadd.f32 %v435, %v2311
      %v2313 = vpop.f32.mrb[0].mxu0
      %2314 = vmatprep.mubr.bf16.mxu0 0
      %2315 = vmatmul.mubr.bf16.gmra.mrb[0].mxu0 %v1387
      %v2316 = vpop.f32.mrb[0].mxu0
      %v2317 = vadd.f32 %v435, %v2316
      %v2318 = vpop.f32.mrb[0].mxu0
      %v2319 = vpop.f32.mrb[0].mxu0
      %v2320 = vadd.f32 %v435, %v2319
      %v2321 = vpop.f32.mrb[0].mxu0
      %2322 = vmatprep.mubr.bf16.mxu0 0
      %2323 = vmatmul.mubr.bf16.gmra.mrb[0].mxu0 %v1390
      %v2324 = vpop.f32.mrb[0].mxu0
      %v2325 = vadd.f32 %v435, %v2324
      %v2326 = vpop.f32.mrb[0].mxu0
      %v2327 = vpop.f32.mrb[0].mxu0
      %v2328 = vadd.f32 %v435, %v2327
      %v2329 = vpop.f32.mrb[0].mxu0
      %2330 = vmatprep.mubr.bf16.mxu0 0
      %2331 = vmatmul.mubr.bf16.gmra.mrb[0].mxu0 %v1393
      %v2332 = vpop.f32.mrb[0].mxu0
      %v2333 = vadd.f32 %v435, %v2332
      %v2334 = vpop.f32.mrb[0].mxu0
      %v2335 = vpop.f32.mrb[0].mxu0
      %v2336 = vadd.f32 %v435, %v2335
      %v2337 = vpop.f32.mrb[0].mxu0
      %2338 = vmatprep.mubr.bf16.mxu0 0
      %2339 = vmatmul.mubr.bf16.gmra.mrb[0].mxu0 %v1396
      %v2340 = vpop.f32.mrb[0].mxu0
      %v2341 = vadd.f32 %v435, %v2340
      %v2342 = vpop.f32.mrb[0].mxu0
      %v2343 = vpop.f32.mrb[0].mxu0
      %v2344 = vadd.f32 %v435, %v2343
      %v2345 = vpop.f32.mrb[0].mxu0
      %2346 = vmatprep.mubr.bf16.mxu0 0
      %2347 = vmatmul.mubr.bf16.gmra.mrb[0].mxu0 %v1399
      %v2348 = vpop.f32.mrb[0].mxu0
      %v2349 = vadd.f32 %v435, %v2348
      %v2350 = vpop.f32.mrb[0].mxu0
      %v2351 = vpop.f32.mrb[0].mxu0
      %v2352 = vadd.f32 %v435, %v2351
      %v2353 = vpop.f32.mrb[0].mxu0
      %2354 = vmatprep.mubr.bf16.mxu0 0
      %2355 = vmatmul.mubr.bf16.gmra.mrb[0].mxu0 %v1402
      %v2356 = vpop.f32.mrb[0].mxu0
      %v2357 = vadd.f32 %v435, %v2356
      %v2358 = vpop.f32.mrb[0].mxu0
      %v2359 = vpop.f32.mrb[0].mxu0
      %v2360 = vadd.f32 %v435, %v2359
      %v2361 = vpop.f32.mrb[0].mxu0
      %2362 = vmatprep.mubr.bf16.mxu0 0
      %2363 = vmatmul.mubr.bf16.gmra.mrb[0].mxu0 %v1405
      %v2364 = vpop.f32.mrb[0].mxu0
      %v2365 = vadd.f32 %v435, %v2364
      %v2366 = vpop.f32.mrb[0].mxu0
      %v2367 = vpop.f32.mrb[0].mxu0
      %v2368 = vadd.f32 %v435, %v2367
      %v2369 = vpop.f32.mrb[0].mxu0
      %2370 = vmatprep.mubr.bf16.mxu0 0
      %2371 = vmatmul.mubr.bf16.gmra.mrb[0].mxu0 %v1408
      %v2372 = vpop.f32.mrb[0].mxu0
      %v2373 = vadd.f32 %v435, %v2372
      %v2374 = vpop.f32.mrb[0].mxu0
      %v2375 = vpop.f32.mrb[0].mxu0
      %v2376 = vadd.f32 %v435, %v2375
      %v2377 = vpop.f32.mrb[0].mxu0
      %2378 = vmatprep.mubr.bf16.mxu0 0
      %2379 = vmatmul.mubr.bf16.gmra.mrb[0].mxu0 %v1411
      %v2380 = vpop.f32.mrb[0].mxu0
      %v2381 = vadd.f32 %v435, %v2380
      %v2382 = vpop.f32.mrb[0].mxu0
      %v2383 = vpop.f32.mrb[0].mxu0
      %v2384 = vadd.f32 %v435, %v2383
      %v2385 = vpop.f32.mrb[0].mxu0
      %2386 = vmatprep.mubr.bf16.mxu0 0
      %2387 = vmatmul.mubr.bf16.gmra.mrb[0].mxu0 %v1414
      %v2388 = vpop.f32.mrb[0].mxu0
      %v2389 = vadd.f32 %v435, %v2388
      %v2390 = vpop.f32.mrb[0].mxu0
      %v2391 = vpop.f32.mrb[0].mxu0
      %v2392 = vadd.f32 %v435, %v2391
      %v2393 = vpop.f32.mrb[0].mxu0
      %2394 = vmatprep.mubr.bf16.mxu0 0
      %2395 = vmatmul.mubr.bf16.gmra.mrb[0].mxu0 %v1417
      %v2396 = vpop.f32.mrb[0].mxu0
      %v2397 = vadd.f32 %v435, %v2396
      %v2398 = vpop.f32.mrb[0].mxu0
      %v2399 = vpop.f32.mrb[0].mxu0
      %v2400 = vadd.f32 %v435, %v2399
      %v2401 = vpop.f32.mrb[0].mxu0
      %2402 = vmatprep.mubr.bf16.mxu0 0
      %2403 = vmatmul.mubr.bf16.gmra.mrb[0].mxu0 %v1420
      %v2404 = vpop.f32.mrb[0].mxu0
      %v2405 = vadd.f32 %v435, %v2404
      %v2406 = vpop.f32.mrb[0].mxu0
      %v2407 = vpop.f32.mrb[0].mxu0
      %v2408 = vadd.f32 %v435, %v2407
      %v2409 = vpop.f32.mrb[0].mxu0
      %2410 = vmatprep.mubr.bf16.mxu0 0
      %2411 = vmatmul.mubr.bf16.gmra.mrb[0].mxu0 %v1423
      %v2412 = vpop.f32.mrb[0].mxu0
      %v2413 = vadd.f32 %v435, %v2412
      %v2414 = vpop.f32.mrb[0].mxu0
      %v2415 = vpop.f32.mrb[0].mxu0
      %v2416 = vadd.f32 %v435, %v2415
      %v2417 = vpop.f32.mrb[0].mxu0
      %2418 = vmatprep.mubr.bf16.mxu0 0
      %2419 = vmatmul.mubr.bf16.gmra.mrb[0].mxu0 %v1426
      %v2420 = vpop.f32.mrb[0].mxu0
      %v2421 = vadd.f32 %v435, %v2420
      %v2422 = vpop.f32.mrb[0].mxu0
      %v2423 = vpop.f32.mrb[0].mxu0
      %v2424 = vadd.f32 %v435, %v2423
      %v2425 = vpop.f32.mrb[0].mxu0
      %2426 = vmatprep.mubr.bf16.mxu0 0
      %2427 = vmatmul.mubr.bf16.gmra.mrb[0].mxu0 %v1429
      %v2428 = vpop.f32.mrb[0].mxu0
      %v2429 = vadd.f32 %v435, %v2428
      %v2430 = vpop.f32.mrb[0].mxu0
      %v2431 = vpop.f32.mrb[0].mxu0
      %v2432 = vadd.f32 %v435, %v2431
      %v2433 = vpop.f32.mrb[0].mxu0
      %2434 = vmatprep.mubr.bf16.mxu0 0
      %2435 = vmatmul.mubr.bf16.gmra.mrb[0].mxu0 %v1432
      %v2436 = vpop.f32.mrb[0].mxu0
      %v2437 = vadd.f32 %v435, %v2436
      %v2438 = vpop.f32.mrb[0].mxu0
      %v2439 = vpop.f32.mrb[0].mxu0
      %v2440 = vadd.f32 %v435, %v2439
      %v2441 = vpop.f32.mrb[0].mxu0
      %2442 = vmatprep.mubr.bf16.mxu0 0
      %2443 = vmatmul.mubr.bf16.gmra.mrb[0].mxu0 %v1435
      %v2444 = vpop.f32.mrb[0].mxu0
      %v2445 = vadd.f32 %v435, %v2444
      %v2446 = vpop.f32.mrb[0].mxu0
      %v2447 = vpop.f32.mrb[0].mxu0
      %v2448 = vadd.f32 %v435, %v2447
      %v2449 = vpop.f32.mrb[0].mxu0
      %2450 = vmatprep.mubr.bf16.mxu0 0
      %2451 = vmatmul.mubr.bf16.gmra.mrb[0].mxu0 %v1438
      %v2452 = vpop.f32.mrb[0].mxu0
      %v2453 = vadd.f32 %v435, %v2452
      %v2454 = vpop.f32.mrb[0].mxu0
      %v2455 = vpop.f32.mrb[0].mxu0
      %v2456 = vadd.f32 %v435, %v2455
      %v2457 = vpop.f32.mrb[0].mxu0
      %2458 = vmatprep.mubr.bf16.mxu0 0
      %2459 = vmatmul.mubr.bf16.gmra.mrb[0].mxu0 %v1441
      %v2460 = vpop.f32.mrb[0].mxu0
      %v2461 = vadd.f32 %v435, %v2460
      %v2462 = vpop.f32.mrb[0].mxu0
      %v2463 = vpop.f32.mrb[0].mxu0
      %v2464 = vadd.f32 %v435, %v2463
      %v2465 = vpop.f32.mrb[0].mxu0
      %2466 = vmatprep.mubr.bf16.mxu0 0
      %2467 = vmatmul.mubr.bf16.gmra.mrb[0].mxu0 %v1444
      %v2468 = vpop.f32.mrb[0].mxu0
      %v2469 = vadd.f32 %v435, %v2468
      %v2470 = vpop.f32.mrb[0].mxu0
      %v2471 = vpop.f32.mrb[0].mxu0
      %v2472 = vadd.f32 %v435, %v2471
      %v2473 = vpop.f32.mrb[0].mxu0
      %2474 = vmatprep.mubr.bf16.mxu0 0
      %2475 = vmatmul.mubr.bf16.gmra.mrb[0].mxu0 %v1447
      %v2476 = vpop.f32.mrb[0].mxu0
      %v2477 = vadd.f32 %v435, %v2476
      %v2478 = vpop.f32.mrb[0].mxu0
      %v2479 = vpop.f32.mrb[0].mxu0
      %v2480 = vadd.f32 %v435, %v2479
      %v2481 = vpop.f32.mrb[0].mxu0
      %2482 = vmatprep.mubr.bf16.mxu0 0
      %2483 = vmatmul.mubr.bf16.gmra.mrb[0].mxu0 %v1450
      %v2484 = vpop.f32.mrb[0].mxu0
      %v2485 = vadd.f32 %v435, %v2484
      %v2486 = vpop.f32.mrb[0].mxu0
      %v2487 = vpop.f32.mrb[0].mxu0
      %v2488 = vadd.f32 %v435, %v2487
      %v2489 = vpop.f32.mrb[0].mxu0
      %2490 = vmatprep.mubr.bf16.mxu0 0
      %2491 = vmatmul.mubr.bf16.gmra.mrb[0].mxu0 %v1453
      %v2492 = vpop.f32.mrb[0].mxu0
      %v2493 = vadd.f32 %v435, %v2492
      %v2494 = vpop.f32.mrb[0].mxu0
      %v2495 = vpop.f32.mrb[0].mxu0
      %v2496 = vadd.f32 %v435, %v2495
      %v2497 = vpop.f32.mrb[0].mxu0
      %2498 = vmatprep.mubr.bf16.mxu0 0
      %2499 = vmatmul.mubr.bf16.gmra.mrb[0].mxu0 %v1456
      %v2500 = vpop.f32.mrb[0].mxu0
      %v2501 = vadd.f32 %v435, %v2500
      %v2502 = vpop.f32.mrb[0].mxu0
      %v2503 = vpop.f32.mrb[0].mxu0
      %v2504 = vadd.f32 %v435, %v2503
      %v2505 = vpop.f32.mrb[0].mxu0
      %2506 = vmatprep.mubr.bf16.mxu0 0
      %2507 = vmatmul.mubr.bf16.gmra.mrb[0].mxu0 %v1459
      %v2508 = vpop.f32.mrb[0].mxu0
      %v2509 = vadd.f32 %v435, %v2508
      %v2510 = vpop.f32.mrb[0].mxu0
      %v2511 = vpop.f32.mrb[0].mxu0
      %v2512 = vadd.f32 %v435, %v2511
      %v2513 = vpop.f32.mrb[0].mxu0
      %2514 = vmatprep.mubr.bf16.mxu0 0
      %2515 = vmatmul.mubr.bf16.gmra.mrb[0].mxu0 %v1462
      %v2516 = vpop.f32.mrb[0].mxu0
      %v2517 = vadd.f32 %v435, %v2516
      %v2518 = vpop.f32.mrb[0].mxu0
      %v2519 = vpop.f32.mrb[0].mxu0
      %v2520 = vadd.f32 %v435, %v2519
      %v2521 = vpop.f32.mrb[0].mxu0
      %2522 = vmatprep.mubr.bf16.mxu0 0
      %2523 = vmatmul.mubr.bf16.gmra.mrb[0].mxu0 %v1465
      %v2524 = vpop.f32.mrb[0].mxu0
      %v2525 = vadd.f32 %v435, %v2524
      %v2526 = vpop.f32.mrb[0].mxu0
      %v2527 = vpop.f32.mrb[0].mxu0
      %v2528 = vadd.f32 %v435, %v2527
      %v2529 = vpop.f32.mrb[0].mxu0
      %2530 = vdwg.mxu0
      %vm2531 = vcmp.gt.f32.partialorder %v1509, 0.0
      %vm2532 = vcmp.gt.f32.partialorder %v1512, 0.0
      %vm2533 = vcmp.gt.f32.partialorder %v1517, 0.0
      %vm2534 = vcmp.gt.f32.partialorder %v1520, 0.0
      %vm2535 = vcmp.gt.f32.partialorder %v1525, 0.0
      %vm2536 = vcmp.gt.f32.partialorder %v1528, 0.0
      %vm2537 = vcmp.gt.f32.partialorder %v1533, 0.0
      %vm2538 = vcmp.gt.f32.partialorder %v1536, 0.0
      %vm2539 = vcmp.gt.f32.partialorder %v1541, 0.0
      %vm2540 = vcmp.gt.f32.partialorder %v1544, 0.0
      %vm2541 = vcmp.gt.f32.partialorder %v1549, 0.0
      %vm2542 = vcmp.gt.f32.partialorder %v1552, 0.0
      %vm2543 = vcmp.gt.f32.partialorder %v1557, 0.0
      %vm2544 = vcmp.gt.f32.partialorder %v1560, 0.0
      %vm2545 = vcmp.gt.f32.partialorder %v1565, 0.0
      %vm2546 = vcmp.gt.f32.partialorder %v1568, 0.0
      %vm2547 = vcmp.gt.f32.partialorder %v1573, 0.0
      %vm2548 = vcmp.gt.f32.partialorder %v1576, 0.0
      %vm2549 = vcmp.gt.f32.partialorder %v1581, 0.0
      %vm2550 = vcmp.gt.f32.partialorder %v1584, 0.0
      %vm2551 = vcmp.gt.f32.partialorder %v1589, 0.0
      %vm2552 = vcmp.gt.f32.partialorder %v1592, 0.0
      %vm2553 = vcmp.gt.f32.partialorder %v1597, 0.0
      %vm2554 = vcmp.gt.f32.partialorder %v1600, 0.0
      %vm2555 = vcmp.gt.f32.partialorder %v1605, 0.0
      %vm2556 = vcmp.gt.f32.partialorder %v1608, 0.0
      %vm2557 = vcmp.gt.f32.partialorder %v1613, 0.0
      %vm2558 = vcmp.gt.f32.partialorder %v1616, 0.0
      %vm2559 = vcmp.gt.f32.partialorder %v1621, 0.0
      %vm2560 = vcmp.gt.f32.partialorder %v1624, 0.0
      %vm2561 = vcmp.gt.f32.partialorder %v1629, 0.0
      %vm2562 = vcmp.gt.f32.partialorder %v1632, 0.0
      %vm2563 = vcmp.gt.f32.partialorder %v1637, 0.0
      %vm2564 = vcmp.gt.f32.partialorder %v1640, 0.0
      %vm2565 = vcmp.gt.f32.partialorder %v1645, 0.0
      %vm2566 = vcmp.gt.f32.partialorder %v1648, 0.0
      %vm2567 = vcmp.gt.f32.partialorder %v1653, 0.0
      %vm2568 = vcmp.gt.f32.partialorder %v1656, 0.0
      %vm2569 = vcmp.gt.f32.partialorder %v1661, 0.0
      %vm2570 = vcmp.gt.f32.partialorder %v1664, 0.0
      %vm2571 = vcmp.gt.f32.partialorder %v1669, 0.0
      %vm2572 = vcmp.gt.f32.partialorder %v1672, 0.0
      %vm2573 = vcmp.gt.f32.partialorder %v1677, 0.0
      %vm2574 = vcmp.gt.f32.partialorder %v1680, 0.0
      %vm2575 = vcmp.gt.f32.partialorder %v1685, 0.0
      %vm2576 = vcmp.gt.f32.partialorder %v1688, 0.0
      %vm2577 = vcmp.gt.f32.partialorder %v1693, 0.0
      %vm2578 = vcmp.gt.f32.partialorder %v1696, 0.0
      %vm2579 = vcmp.gt.f32.partialorder %v1701, 0.0
      %vm2580 = vcmp.gt.f32.partialorder %v1704, 0.0
      %vm2581 = vcmp.gt.f32.partialorder %v1709, 0.0
      %vm2582 = vcmp.gt.f32.partialorder %v1712, 0.0
      %vm2583 = vcmp.gt.f32.partialorder %v1717, 0.0
      %vm2584 = vcmp.gt.f32.partialorder %v1720, 0.0
      %vm2585 = vcmp.gt.f32.partialorder %v1725, 0.0
      %vm2586 = vcmp.gt.f32.partialorder %v1728, 0.0
      %vm2587 = vcmp.gt.f32.partialorder %v1733, 0.0
      %vm2588 = vcmp.gt.f32.partialorder %v1736, 0.0
      %vm2589 = vcmp.gt.f32.partialorder %v1741, 0.0
      %vm2590 = vcmp.gt.f32.partialorder %v1744, 0.0
      %vm2591 = vcmp.gt.f32.partialorder %v1749, 0.0
      %vm2592 = vcmp.gt.f32.partialorder %v1752, 0.0
      %vm2593 = vcmp.gt.f32.partialorder %v1757, 0.0
      %vm2594 = vcmp.gt.f32.partialorder %v1760, 0.0
      %vm2595 = vcmp.gt.f32.partialorder %v1765, 0.0
      %vm2596 = vcmp.gt.f32.partialorder %v1768, 0.0
      %vm2597 = vcmp.gt.f32.partialorder %v1773, 0.0
      %vm2598 = vcmp.gt.f32.partialorder %v1776, 0.0
      %vm2599 = vcmp.gt.f32.partialorder %v1781, 0.0
      %vm2600 = vcmp.gt.f32.partialorder %v1784, 0.0
      %vm2601 = vcmp.gt.f32.partialorder %v1789, 0.0
      %vm2602 = vcmp.gt.f32.partialorder %v1792, 0.0
      %vm2603 = vcmp.gt.f32.partialorder %v1797, 0.0
      %vm2604 = vcmp.gt.f32.partialorder %v1800, 0.0
      %vm2605 = vcmp.gt.f32.partialorder %v1805, 0.0
      %vm2606 = vcmp.gt.f32.partialorder %v1808, 0.0
      %vm2607 = vcmp.gt.f32.partialorder %v1813, 0.0
      %vm2608 = vcmp.gt.f32.partialorder %v1816, 0.0
      %vm2609 = vcmp.gt.f32.partialorder %v1821, 0.0
      %vm2610 = vcmp.gt.f32.partialorder %v1824, 0.0
      %vm2611 = vcmp.gt.f32.partialorder %v1829, 0.0
      %vm2612 = vcmp.gt.f32.partialorder %v1832, 0.0
      %vm2613 = vcmp.gt.f32.partialorder %v1837, 0.0
      %vm2614 = vcmp.gt.f32.partialorder %v1840, 0.0
      %vm2615 = vcmp.gt.f32.partialorder %v1845, 0.0
      %vm2616 = vcmp.gt.f32.partialorder %v1848, 0.0
      %vm2617 = vcmp.gt.f32.partialorder %v1853, 0.0
      %vm2618 = vcmp.gt.f32.partialorder %v1856, 0.0
      %vm2619 = vcmp.gt.f32.partialorder %v1861, 0.0
      %vm2620 = vcmp.gt.f32.partialorder %v1864, 0.0
      %vm2621 = vcmp.gt.f32.partialorder %v1869, 0.0
      %vm2622 = vcmp.gt.f32.partialorder %v1872, 0.0
      %vm2623 = vcmp.gt.f32.partialorder %v1877, 0.0
      %vm2624 = vcmp.gt.f32.partialorder %v1880, 0.0
      %vm2625 = vcmp.gt.f32.partialorder %v1885, 0.0
      %vm2626 = vcmp.gt.f32.partialorder %v1888, 0.0
      %vm2627 = vcmp.gt.f32.partialorder %v1893, 0.0
      %vm2628 = vcmp.gt.f32.partialorder %v1896, 0.0
      %vm2629 = vcmp.gt.f32.partialorder %v1901, 0.0
      %vm2630 = vcmp.gt.f32.partialorder %v1904, 0.0
      %vm2631 = vcmp.gt.f32.partialorder %v1909, 0.0
      %vm2632 = vcmp.gt.f32.partialorder %v1912, 0.0
      %vm2633 = vcmp.gt.f32.partialorder %v1917, 0.0
      %vm2634 = vcmp.gt.f32.partialorder %v1920, 0.0
      %vm2635 = vcmp.gt.f32.partialorder %v1925, 0.0
      %vm2636 = vcmp.gt.f32.partialorder %v1928, 0.0
      %vm2637 = vcmp.gt.f32.partialorder %v1933, 0.0
      %vm2638 = vcmp.gt.f32.partialorder %v1936, 0.0
      %vm2639 = vcmp.gt.f32.partialorder %v1941, 0.0
      %vm2640 = vcmp.gt.f32.partialorder %v1944, 0.0
      %vm2641 = vcmp.gt.f32.partialorder %v1949, 0.0
      %vm2642 = vcmp.gt.f32.partialorder %v1952, 0.0
      %vm2643 = vcmp.gt.f32.partialorder %v1957, 0.0
      %vm2644 = vcmp.gt.f32.partialorder %v1960, 0.0
      %vm2645 = vcmp.gt.f32.partialorder %v1965, 0.0
      %vm2646 = vcmp.gt.f32.partialorder %v1968, 0.0
      %vm2647 = vcmp.gt.f32.partialorder %v1973, 0.0
      %vm2648 = vcmp.gt.f32.partialorder %v1976, 0.0
      %vm2649 = vcmp.gt.f32.partialorder %v1981, 0.0
      %vm2650 = vcmp.gt.f32.partialorder %v1984, 0.0
      %vm2651 = vcmp.gt.f32.partialorder %v1989, 0.0
      %vm2652 = vcmp.gt.f32.partialorder %v1992, 0.0
      %vm2653 = vcmp.gt.f32.partialorder %v1997, 0.0
      %vm2654 = vcmp.gt.f32.partialorder %v2000, 0.0
      %vm2655 = vcmp.gt.f32.partialorder %v2005, 0.0
      %vm2656 = vcmp.gt.f32.partialorder %v2008, 0.0
      %vm2657 = vcmp.gt.f32.partialorder %v2013, 0.0
      %vm2658 = vcmp.gt.f32.partialorder %v2016, 0.0
      %vm2659 = vcmp.gt.f32.partialorder %v2021, 0.0
      %vm2660 = vcmp.gt.f32.partialorder %v2024, 0.0
      %vm2661 = vcmp.gt.f32.partialorder %v2029, 0.0
      %vm2662 = vcmp.gt.f32.partialorder %v2032, 0.0
      %vm2663 = vcmp.gt.f32.partialorder %v2037, 0.0
      %vm2664 = vcmp.gt.f32.partialorder %v2040, 0.0
      %vm2665 = vcmp.gt.f32.partialorder %v2045, 0.0
      %vm2666 = vcmp.gt.f32.partialorder %v2048, 0.0
      %vm2667 = vcmp.gt.f32.partialorder %v2053, 0.0
      %vm2668 = vcmp.gt.f32.partialorder %v2056, 0.0
      %vm2669 = vcmp.gt.f32.partialorder %v2061, 0.0
      %vm2670 = vcmp.gt.f32.partialorder %v2064, 0.0
      %vm2671 = vcmp.gt.f32.partialorder %v2069, 0.0
      %vm2672 = vcmp.gt.f32.partialorder %v2072, 0.0
      %vm2673 = vcmp.gt.f32.partialorder %v2077, 0.0
      %vm2674 = vcmp.gt.f32.partialorder %v2080, 0.0
      %vm2675 = vcmp.gt.f32.partialorder %v2085, 0.0
      %vm2676 = vcmp.gt.f32.partialorder %v2088, 0.0
      %vm2677 = vcmp.gt.f32.partialorder %v2093, 0.0
      %vm2678 = vcmp.gt.f32.partialorder %v2096, 0.0
      %vm2679 = vcmp.gt.f32.partialorder %v2101, 0.0
      %vm2680 = vcmp.gt.f32.partialorder %v2104, 0.0
      %vm2681 = vcmp.gt.f32.partialorder %v2109, 0.0
      %vm2682 = vcmp.gt.f32.partialorder %v2112, 0.0
      %vm2683 = vcmp.gt.f32.partialorder %v2117, 0.0
      %vm2684 = vcmp.gt.f32.partialorder %v2120, 0.0
      %vm2685 = vcmp.gt.f32.partialorder %v2125, 0.0
      %vm2686 = vcmp.gt.f32.partialorder %v2128, 0.0
      %vm2687 = vcmp.gt.f32.partialorder %v2133, 0.0
      %vm2688 = vcmp.gt.f32.partialorder %v2136, 0.0
      %vm2689 = vcmp.gt.f32.partialorder %v2141, 0.0
      %vm2690 = vcmp.gt.f32.partialorder %v2144, 0.0
      %vm2691 = vcmp.gt.f32.partialorder %v2149, 0.0
      %vm2692 = vcmp.gt.f32.partialorder %v2152, 0.0
      %vm2693 = vcmp.gt.f32.partialorder %v2157, 0.0
      %vm2694 = vcmp.gt.f32.partialorder %v2160, 0.0
      %vm2695 = vcmp.gt.f32.partialorder %v2165, 0.0
      %vm2696 = vcmp.gt.f32.partialorder %v2168, 0.0
      %vm2697 = vcmp.gt.f32.partialorder %v2173, 0.0
      %vm2698 = vcmp.gt.f32.partialorder %v2176, 0.0
      %vm2699 = vcmp.gt.f32.partialorder %v2181, 0.0
      %vm2700 = vcmp.gt.f32.partialorder %v2184, 0.0
      %vm2701 = vcmp.gt.f32.partialorder %v2189, 0.0
      %vm2702 = vcmp.gt.f32.partialorder %v2192, 0.0
      %vm2703 = vcmp.gt.f32.partialorder %v2197, 0.0
      %vm2704 = vcmp.gt.f32.partialorder %v2200, 0.0
      %vm2705 = vcmp.gt.f32.partialorder %v2205, 0.0
      %vm2706 = vcmp.gt.f32.partialorder %v2208, 0.0
      %vm2707 = vcmp.gt.f32.partialorder %v2213, 0.0
      %vm2708 = vcmp.gt.f32.partialorder %v2216, 0.0
      %vm2709 = vcmp.gt.f32.partialorder %v2221, 0.0
      %vm2710 = vcmp.gt.f32.partialorder %v2224, 0.0
      %vm2711 = vcmp.gt.f32.partialorder %v2229, 0.0
      %vm2712 = vcmp.gt.f32.partialorder %v2232, 0.0
      %vm2713 = vcmp.gt.f32.partialorder %v2237, 0.0
      %vm2714 = vcmp.gt.f32.partialorder %v2240, 0.0
      %vm2715 = vcmp.gt.f32.partialorder %v2245, 0.0
      %vm2716 = vcmp.gt.f32.partialorder %v2248, 0.0
      %vm2717 = vcmp.gt.f32.partialorder %v2253, 0.0
      %vm2718 = vcmp.gt.f32.partialorder %v2256, 0.0
      %vm2719 = vcmp.gt.f32.partialorder %v2261, 0.0
      %vm2720 = vcmp.gt.f32.partialorder %v2264, 0.0
      %vm2721 = vcmp.gt.f32.partialorder %v2269, 0.0
      %vm2722 = vcmp.gt.f32.partialorder %v2272, 0.0
      %vm2723 = vcmp.gt.f32.partialorder %v2277, 0.0
      %vm2724 = vcmp.gt.f32.partialorder %v2280, 0.0
      %vm2725 = vcmp.gt.f32.partialorder %v2285, 0.0
      %vm2726 = vcmp.gt.f32.partialorder %v2288, 0.0
      %vm2727 = vcmp.gt.f32.partialorder %v2293, 0.0
      %vm2728 = vcmp.gt.f32.partialorder %v2296, 0.0
      %vm2729 = vcmp.gt.f32.partialorder %v2301, 0.0
      %vm2730 = vcmp.gt.f32.partialorder %v2304, 0.0
      %vm2731 = vcmp.gt.f32.partialorder %v2309, 0.0
      %vm2732 = vcmp.gt.f32.partialorder %v2312, 0.0
      %vm2733 = vcmp.gt.f32.partialorder %v2317, 0.0
      %vm2734 = vcmp.gt.f32.partialorder %v2320, 0.0
      %vm2735 = vcmp.gt.f32.partialorder %v2325, 0.0
      %vm2736 = vcmp.gt.f32.partialorder %v2328, 0.0
      %vm2737 = vcmp.gt.f32.partialorder %v2333, 0.0
      %vm2738 = vcmp.gt.f32.partialorder %v2336, 0.0
      %vm2739 = vcmp.gt.f32.partialorder %v2341, 0.0
      %vm2740 = vcmp.gt.f32.partialorder %v2344, 0.0
      %vm2741 = vcmp.gt.f32.partialorder %v2349, 0.0
      %vm2742 = vcmp.gt.f32.partialorder %v2352, 0.0
      %vm2743 = vcmp.gt.f32.partialorder %v2357, 0.0
      %vm2744 = vcmp.gt.f32.partialorder %v2360, 0.0
      %vm2745 = vcmp.gt.f32.partialorder %v2365, 0.0
      %vm2746 = vcmp.gt.f32.partialorder %v2368, 0.0
      %vm2747 = vcmp.gt.f32.partialorder %v2373, 0.0
      %vm2748 = vcmp.gt.f32.partialorder %v2376, 0.0
      %vm2749 = vcmp.gt.f32.partialorder %v2381, 0.0
      %vm2750 = vcmp.gt.f32.partialorder %v2384, 0.0
      %vm2751 = vcmp.gt.f32.partialorder %v2389, 0.0
      %vm2752 = vcmp.gt.f32.partialorder %v2392, 0.0
      %vm2753 = vcmp.gt.f32.partialorder %v2397, 0.0
      %vm2754 = vcmp.gt.f32.partialorder %v2400, 0.0
      %vm2755 = vcmp.gt.f32.partialorder %v2405, 0.0
      %vm2756 = vcmp.gt.f32.partialorder %v2408, 0.0
      %vm2757 = vcmp.gt.f32.partialorder %v2413, 0.0
      %vm2758 = vcmp.gt.f32.partialorder %v2416, 0.0
      %vm2759 = vcmp.gt.f32.partialorder %v2421, 0.0
      %vm2760 = vcmp.gt.f32.partialorder %v2424, 0.0
      %vm2761 = vcmp.gt.f32.partialorder %v2429, 0.0
      %vm2762 = vcmp.gt.f32.partialorder %v2432, 0.0
      %vm2763 = vcmp.gt.f32.partialorder %v2437, 0.0
      %vm2764 = vcmp.gt.f32.partialorder %v2440, 0.0
      %vm2765 = vcmp.gt.f32.partialorder %v2445, 0.0
      %vm2766 = vcmp.gt.f32.partialorder %v2448, 0.0
      %vm2767 = vcmp.gt.f32.partialorder %v2453, 0.0
      %vm2768 = vcmp.gt.f32.partialorder %v2456, 0.0
      %vm2769 = vcmp.gt.f32.partialorder %v2461, 0.0
      %vm2770 = vcmp.gt.f32.partialorder %v2464, 0.0
      %vm2771 = vcmp.gt.f32.partialorder %v2469, 0.0
      %vm2772 = vcmp.gt.f32.partialorder %v2472, 0.0
      %vm2773 = vcmp.gt.f32.partialorder %v2477, 0.0
      %vm2774 = vcmp.gt.f32.partialorder %v2480, 0.0
      %vm2775 = vcmp.gt.f32.partialorder %v2485, 0.0
      %vm2776 = vcmp.gt.f32.partialorder %v2488, 0.0
      %vm2777 = vcmp.gt.f32.partialorder %v2493, 0.0
      %vm2778 = vcmp.gt.f32.partialorder %v2496, 0.0
      %vm2779 = vcmp.gt.f32.partialorder %v2501, 0.0
      %vm2780 = vcmp.gt.f32.partialorder %v2504, 0.0
      %vm2781 = vcmp.gt.f32.partialorder %v2509, 0.0
      %vm2782 = vcmp.gt.f32.partialorder %v2512, 0.0
      %vm2783 = vcmp.gt.f32.partialorder %v2517, 0.0
      %vm2784 = vcmp.gt.f32.partialorder %v2520, 0.0
      %vm2785 = vcmp.gt.f32.partialorder %v2525, 0.0
      %vm2786 = vcmp.gt.f32.partialorder %v2528, 0.0
      %v2787 = vmul.f32 %v1509, 0.01
      %v2788 = vmul.f32 %v1512, 0.01
      %v2789 = vmul.f32 %v1517, 0.01
      %v2790 = vmul.f32 %v1520, 0.01
      %v2791 = vmul.f32 %v1525, 0.01
      %v2792 = vmul.f32 %v1528, 0.01
      %v2793 = vmul.f32 %v1533, 0.01
      %v2794 = vmul.f32 %v1536, 0.01
      %v2795 = vmul.f32 %v1541, 0.01
      %v2796 = vmul.f32 %v1544, 0.01
      %v2797 = vmul.f32 %v1549, 0.01
      %v2798 = vmul.f32 %v1552, 0.01
      %v2799 = vmul.f32 %v1557, 0.01
      %v2800 = vmul.f32 %v1560, 0.01
      %v2801 = vmul.f32 %v1565, 0.01
      %v2802 = vmul.f32 %v1568, 0.01
      %v2803 = vmul.f32 %v1573, 0.01
      %v2804 = vmul.f32 %v1576, 0.01
      %v2805 = vmul.f32 %v1581, 0.01
      %v2806 = vmul.f32 %v1584, 0.01
      %v2807 = vmul.f32 %v1589, 0.01
      %v2808 = vmul.f32 %v1592, 0.01
      %v2809 = vmul.f32 %v1597, 0.01
      %v2810 = vmul.f32 %v1600, 0.01
      %v2811 = vmul.f32 %v1605, 0.01
      %v2812 = vmul.f32 %v1608, 0.01
      %v2813 = vmul.f32 %v1613, 0.01
      %v2814 = vmul.f32 %v1616, 0.01
      %v2815 = vmul.f32 %v1621, 0.01
      %v2816 = vmul.f32 %v1624, 0.01
      %v2817 = vmul.f32 %v1629, 0.01
      %v2818 = vmul.f32 %v1632, 0.01
      %v2819 = vmul.f32 %v1637, 0.01
      %v2820 = vmul.f32 %v1640, 0.01
      %v2821 = vmul.f32 %v1645, 0.01
      %v2822 = vmul.f32 %v1648, 0.01
      %v2823 = vmul.f32 %v1653, 0.01
      %v2824 = vmul.f32 %v1656, 0.01
      %v2825 = vmul.f32 %v1661, 0.01
      %v2826 = vmul.f32 %v1664, 0.01
      %v2827 = vmul.f32 %v1669, 0.01
      %v2828 = vmul.f32 %v1672, 0.01
      %v2829 = vmul.f32 %v1677, 0.01
      %v2830 = vmul.f32 %v1680, 0.01
      %v2831 = vmul.f32 %v1685, 0.01
      %v2832 = vmul.f32 %v1688, 0.01
      %v2833 = vmul.f32 %v1693, 0.01
      %v2834 = vmul.f32 %v1696, 0.01
      %v2835 = vmul.f32 %v1701, 0.01
      %v2836 = vmul.f32 %v1704, 0.01
      %v2837 = vmul.f32 %v1709, 0.01
      %v2838 = vmul.f32 %v1712, 0.01
      %v2839 = vmul.f32 %v1717, 0.01
      %v2840 = vmul.f32 %v1720, 0.01
      %v2841 = vmul.f32 %v1725, 0.01
      %v2842 = vmul.f32 %v1728, 0.01
      %v2843 = vmul.f32 %v1733, 0.01
      %v2844 = vmul.f32 %v1736, 0.01
      %v2845 = vmul.f32 %v1741, 0.01
      %v2846 = vmul.f32 %v1744, 0.01
      %v2847 = vmul.f32 %v1749, 0.01
      %v2848 = vmul.f32 %v1752, 0.01
      %v2849 = vmul.f32 %v1757, 0.01
      %v2850 = vmul.f32 %v1760, 0.01
      %v2851 = vmul.f32 %v1765, 0.01
      %v2852 = vmul.f32 %v1768, 0.01
      %v2853 = vmul.f32 %v1773, 0.01
      %v2854 = vmul.f32 %v1776, 0.01
      %v2855 = vmul.f32 %v1781, 0.01
      %v2856 = vmul.f32 %v1784, 0.01
      %v2857 = vmul.f32 %v1789, 0.01
      %v2858 = vmul.f32 %v1792, 0.01
      %v2859 = vmul.f32 %v1797, 0.01
      %v2860 = vmul.f32 %v1800, 0.01
      %v2861 = vmul.f32 %v1805, 0.01
      %v2862 = vmul.f32 %v1808, 0.01
      %v2863 = vmul.f32 %v1813, 0.01
      %v2864 = vmul.f32 %v1816, 0.01
      %v2865 = vmul.f32 %v1821, 0.01
      %v2866 = vmul.f32 %v1824, 0.01
      %v2867 = vmul.f32 %v1829, 0.01
      %v2868 = vmul.f32 %v1832, 0.01
      %v2869 = vmul.f32 %v1837, 0.01
      %v2870 = vmul.f32 %v1840, 0.01
      %v2871 = vmul.f32 %v1845, 0.01
      %v2872 = vmul.f32 %v1848, 0.01
      %v2873 = vmul.f32 %v1853, 0.01
      %v2874 = vmul.f32 %v1856, 0.01
      %v2875 = vmul.f32 %v1861, 0.01
      %v2876 = vmul.f32 %v1864, 0.01
      %v2877 = vmul.f32 %v1869, 0.01
      %v2878 = vmul.f32 %v1872, 0.01
      %v2879 = vmul.f32 %v1877, 0.01
      %v2880 = vmul.f32 %v1880, 0.01
      %v2881 = vmul.f32 %v1885, 0.01
      %v2882 = vmul.f32 %v1888, 0.01
      %v2883 = vmul.f32 %v1893, 0.01
      %v2884 = vmul.f32 %v1896, 0.01
      %v2885 = vmul.f32 %v1901, 0.01
      %v2886 = vmul.f32 %v1904, 0.01
      %v2887 = vmul.f32 %v1909, 0.01
      %v2888 = vmul.f32 %v1912, 0.01
      %v2889 = vmul.f32 %v1917, 0.01
      %v2890 = vmul.f32 %v1920, 0.01
      %v2891 = vmul.f32 %v1925, 0.01
      %v2892 = vmul.f32 %v1928, 0.01
      %v2893 = vmul.f32 %v1933, 0.01
      %v2894 = vmul.f32 %v1936, 0.01
      %v2895 = vmul.f32 %v1941, 0.01
      %v2896 = vmul.f32 %v1944, 0.01
      %v2897 = vmul.f32 %v1949, 0.01
      %v2898 = vmul.f32 %v1952, 0.01
      %v2899 = vmul.f32 %v1957, 0.01
      %v2900 = vmul.f32 %v1960, 0.01
      %v2901 = vmul.f32 %v1965, 0.01
      %v2902 = vmul.f32 %v1968, 0.01
      %v2903 = vmul.f32 %v1973, 0.01
      %v2904 = vmul.f32 %v1976, 0.01
      %v2905 = vmul.f32 %v1981, 0.01
      %v2906 = vmul.f32 %v1984, 0.01
      %v2907 = vmul.f32 %v1989, 0.01
      %v2908 = vmul.f32 %v1992, 0.01
      %v2909 = vmul.f32 %v1997, 0.01
      %v2910 = vmul.f32 %v2000, 0.01
      %v2911 = vmul.f32 %v2005, 0.01
      %v2912 = vmul.f32 %v2008, 0.01
      %v2913 = vmul.f32 %v2013, 0.01
      %v2914 = vmul.f32 %v2016, 0.01
      %v2915 = vmul.f32 %v2021, 0.01
      %v2916 = vmul.f32 %v2024, 0.01
      %v2917 = vmul.f32 %v2029, 0.01
      %v2918 = vmul.f32 %v2032, 0.01
      %v2919 = vmul.f32 %v2037, 0.01
      %v2920 = vmul.f32 %v2040, 0.01
      %v2921 = vmul.f32 %v2045, 0.01
      %v2922 = vmul.f32 %v2048, 0.01
      %v2923 = vmul.f32 %v2053, 0.01
      %v2924 = vmul.f32 %v2056, 0.01
      %v2925 = vmul.f32 %v2061, 0.01
      %v2926 = vmul.f32 %v2064, 0.01
      %v2927 = vmul.f32 %v2069, 0.01
      %v2928 = vmul.f32 %v2072, 0.01
      %v2929 = vmul.f32 %v2077, 0.01
      %v2930 = vmul.f32 %v2080, 0.01
      %v2931 = vmul.f32 %v2085, 0.01
      %v2932 = vmul.f32 %v2088, 0.01
      %v2933 = vmul.f32 %v2093, 0.01
      %v2934 = vmul.f32 %v2096, 0.01
      %v2935 = vmul.f32 %v2101, 0.01
      %v2936 = vmul.f32 %v2104, 0.01
      %v2937 = vmul.f32 %v2109, 0.01
      %v2938 = vmul.f32 %v2112, 0.01
      %v2939 = vmul.f32 %v2117, 0.01
      %v2940 = vmul.f32 %v2120, 0.01
      %v2941 = vmul.f32 %v2125, 0.01
      %v2942 = vmul.f32 %v2128, 0.01
      %v2943 = vmul.f32 %v2133, 0.01
      %v2944 = vmul.f32 %v2136, 0.01
      %v2945 = vmul.f32 %v2141, 0.01
      %v2946 = vmul.f32 %v2144, 0.01
      %v2947 = vmul.f32 %v2149, 0.01
      %v2948 = vmul.f32 %v2152, 0.01
      %v2949 = vmul.f32 %v2157, 0.01
      %v2950 = vmul.f32 %v2160, 0.01
      %v2951 = vmul.f32 %v2165, 0.01
      %v2952 = vmul.f32 %v2168, 0.01
      %v2953 = vmul.f32 %v2173, 0.01
      %v2954 = vmul.f32 %v2176, 0.01
      %v2955 = vmul.f32 %v2181, 0.01
      %v2956 = vmul.f32 %v2184, 0.01
      %v2957 = vmul.f32 %v2189, 0.01
      %v2958 = vmul.f32 %v2192, 0.01
      %v2959 = vmul.f32 %v2197, 0.01
      %v2960 = vmul.f32 %v2200, 0.01
      %v2961 = vmul.f32 %v2205, 0.01
      %v2962 = vmul.f32 %v2208, 0.01
      %v2963 = vmul.f32 %v2213, 0.01
      %v2964 = vmul.f32 %v2216, 0.01
      %v2965 = vmul.f32 %v2221, 0.01
      %v2966 = vmul.f32 %v2224, 0.01
      %v2967 = vmul.f32 %v2229, 0.01
      %v2968 = vmul.f32 %v2232, 0.01
      %v2969 = vmul.f32 %v2237, 0.01
      %v2970 = vmul.f32 %v2240, 0.01
      %v2971 = vmul.f32 %v2245, 0.01
      %v2972 = vmul.f32 %v2248, 0.01
      %v2973 = vmul.f32 %v2253, 0.01
      %v2974 = vmul.f32 %v2256, 0.01
      %v2975 = vmul.f32 %v2261, 0.01
      %v2976 = vmul.f32 %v2264, 0.01
      %v2977 = vmul.f32 %v2269, 0.01
      %v2978 = vmul.f32 %v2272, 0.01
      %v2979 = vmul.f32 %v2277, 0.01
      %v2980 = vmul.f32 %v2280, 0.01
      %v2981 = vmul.f32 %v2285, 0.01
      %v2982 = vmul.f32 %v2288, 0.01
      %v2983 = vmul.f32 %v2293, 0.01
      %v2984 = vmul.f32 %v2296, 0.01
      %v2985 = vmul.f32 %v2301, 0.01
      %v2986 = vmul.f32 %v2304, 0.01
      %v2987 = vmul.f32 %v2309, 0.01
      %v2988 = vmul.f32 %v2312, 0.01
      %v2989 = vmul.f32 %v2317, 0.01
      %v2990 = vmul.f32 %v2320, 0.01
      %v2991 = vmul.f32 %v2325, 0.01
      %v2992 = vmul.f32 %v2328, 0.01
      %v2993 = vmul.f32 %v2333, 0.01
      %v2994 = vmul.f32 %v2336, 0.01
      %v2995 = vmul.f32 %v2341, 0.01
      %v2996 = vmul.f32 %v2344, 0.01
      %v2997 = vmul.f32 %v2349, 0.01
      %v2998 = vmul.f32 %v2352, 0.01
      %v2999 = vmul.f32 %v2357, 0.01
      %v3000 = vmul.f32 %v2360, 0.01
      %v3001 = vmul.f32 %v2365, 0.01
      %v3002 = vmul.f32 %v2368, 0.01
      %v3003 = vmul.f32 %v2373, 0.01
      %v3004 = vmul.f32 %v2376, 0.01
      %v3005 = vmul.f32 %v2381, 0.01
      %v3006 = vmul.f32 %v2384, 0.01
      %v3007 = vmul.f32 %v2389, 0.01
      %v3008 = vmul.f32 %v2392, 0.01
      %v3009 = vmul.f32 %v2397, 0.01
      %v3010 = vmul.f32 %v2400, 0.01
      %v3011 = vmul.f32 %v2405, 0.01
      %v3012 = vmul.f32 %v2408, 0.01
      %v3013 = vmul.f32 %v2413, 0.01
      %v3014 = vmul.f32 %v2416, 0.01
      %v3015 = vmul.f32 %v2421, 0.01
      %v3016 = vmul.f32 %v2424, 0.01
      %v3017 = vmul.f32 %v2429, 0.01
      %v3018 = vmul.f32 %v2432, 0.01
      %v3019 = vmul.f32 %v2437, 0.01
      %v3020 = vmul.f32 %v2440, 0.01
      %v3021 = vmul.f32 %v2445, 0.01
      %v3022 = vmul.f32 %v2448, 0.01
      %v3023 = vmul.f32 %v2453, 0.01
      %v3024 = vmul.f32 %v2456, 0.01
      %v3025 = vmul.f32 %v2461, 0.01
      %v3026 = vmul.f32 %v2464, 0.01
      %v3027 = vmul.f32 %v2469, 0.01
      %v3028 = vmul.f32 %v2472, 0.01
      %v3029 = vmul.f32 %v2477, 0.01
      %v3030 = vmul.f32 %v2480, 0.01
      %v3031 = vmul.f32 %v2485, 0.01
      %v3032 = vmul.f32 %v2488, 0.01
      %v3033 = vmul.f32 %v2493, 0.01
      %v3034 = vmul.f32 %v2496, 0.01
      %v3035 = vmul.f32 %v2501, 0.01
      %v3036 = vmul.f32 %v2504, 0.01
      %v3037 = vmul.f32 %v2509, 0.01
      %v3038 = vmul.f32 %v2512, 0.01
      %v3039 = vmul.f32 %v2517, 0.01
      %v3040 = vmul.f32 %v2520, 0.01
      %v3041 = vmul.f32 %v2525, 0.01
      %v3042 = vmul.f32 %v2528, 0.01
      %v3043 = vsel %vm2531, %v1509, %v2787
      %v3044 = vsel %vm2532, %v1512, %v2788
      %v3045 = vsel %vm2533, %v1517, %v2789
      %v3046 = vsel %vm2534, %v1520, %v2790
      %v3047 = vsel %vm2535, %v1525, %v2791
      %v3048 = vsel %vm2536, %v1528, %v2792
      %v3049 = vsel %vm2537, %v1533, %v2793
      %v3050 = vsel %vm2538, %v1536, %v2794
      %v3051 = vsel %vm2539, %v1541, %v2795
      %v3052 = vsel %vm2540, %v1544, %v2796
      %v3053 = vsel %vm2541, %v1549, %v2797
      %v3054 = vsel %vm2542, %v1552, %v2798
      %v3055 = vsel %vm2543, %v1557, %v2799
      %v3056 = vsel %vm2544, %v1560, %v2800
      %v3057 = vsel %vm2545, %v1565, %v2801
      %v3058 = vsel %vm2546, %v1568, %v2802
      %v3059 = vsel %vm2547, %v1573, %v2803
      %v3060 = vsel %vm2548, %v1576, %v2804
      %v3061 = vsel %vm2549, %v1581, %v2805
      %v3062 = vsel %vm2550, %v1584, %v2806
      %v3063 = vsel %vm2551, %v1589, %v2807
      %v3064 = vsel %vm2552, %v1592, %v2808
      %v3065 = vsel %vm2553, %v1597, %v2809
      %v3066 = vsel %vm2554, %v1600, %v2810
      %v3067 = vsel %vm2555, %v1605, %v2811
      %v3068 = vsel %vm2556, %v1608, %v2812
      %v3069 = vsel %vm2557, %v1613, %v2813
      %v3070 = vsel %vm2558, %v1616, %v2814
      %v3071 = vsel %vm2559, %v1621, %v2815
      %v3072 = vsel %vm2560, %v1624, %v2816
      %v3073 = vsel %vm2561, %v1629, %v2817
      %v3074 = vsel %vm2562, %v1632, %v2818
      %v3075 = vsel %vm2563, %v1637, %v2819
      %v3076 = vsel %vm2564, %v1640, %v2820
      %v3077 = vsel %vm2565, %v1645, %v2821
      %v3078 = vsel %vm2566, %v1648, %v2822
      %v3079 = vsel %vm2567, %v1653, %v2823
      %v3080 = vsel %vm2568, %v1656, %v2824
      %v3081 = vsel %vm2569, %v1661, %v2825
      %v3082 = vsel %vm2570, %v1664, %v2826
      %v3083 = vsel %vm2571, %v1669, %v2827
      %v3084 = vsel %vm2572, %v1672, %v2828
      %v3085 = vsel %vm2573, %v1677, %v2829
      %v3086 = vsel %vm2574, %v1680, %v2830
      %v3087 = vsel %vm2575, %v1685, %v2831
      %v3088 = vsel %vm2576, %v1688, %v2832
      %v3089 = vsel %vm2577, %v1693, %v2833
      %v3090 = vsel %vm2578, %v1696, %v2834
      %v3091 = vsel %vm2579, %v1701, %v2835
      %v3092 = vsel %vm2580, %v1704, %v2836
      %v3093 = vsel %vm2581, %v1709, %v2837
      %v3094 = vsel %vm2582, %v1712, %v2838
      %v3095 = vsel %vm2583, %v1717, %v2839
      %v3096 = vsel %vm2584, %v1720, %v2840
      %v3097 = vsel %vm2585, %v1725, %v2841
      %v3098 = vsel %vm2586, %v1728, %v2842
      %v3099 = vsel %vm2587, %v1733, %v2843
      %v3100 = vsel %vm2588, %v1736, %v2844
      %v3101 = vsel %vm2589, %v1741, %v2845
      %v3102 = vsel %vm2590, %v1744, %v2846
      %v3103 = vsel %vm2591, %v1749, %v2847
      %v3104 = vsel %vm2592, %v1752, %v2848
      %v3105 = vsel %vm2593, %v1757, %v2849
      %v3106 = vsel %vm2594, %v1760, %v2850
      %v3107 = vsel %vm2595, %v1765, %v2851
      %v3108 = vsel %vm2596, %v1768, %v2852
      %v3109 = vsel %vm2597, %v1773, %v2853
      %v3110 = vsel %vm2598, %v1776, %v2854
      %v3111 = vsel %vm2599, %v1781, %v2855
      %v3112 = vsel %vm2600, %v1784, %v2856
      %v3113 = vsel %vm2601, %v1789, %v2857
      %v3114 = vsel %vm2602, %v1792, %v2858
      %v3115 = vsel %vm2603, %v1797, %v2859
      %v3116 = vsel %vm2604, %v1800, %v2860
      %v3117 = vsel %vm2605, %v1805, %v2861
      %v3118 = vsel %vm2606, %v1808, %v2862
      %v3119 = vsel %vm2607, %v1813, %v2863
      %v3120 = vsel %vm2608, %v1816, %v2864
      %v3121 = vsel %vm2609, %v1821, %v2865
      %v3122 = vsel %vm2610, %v1824, %v2866
      %v3123 = vsel %vm2611, %v1829, %v2867
      %v3124 = vsel %vm2612, %v1832, %v2868
      %v3125 = vsel %vm2613, %v1837, %v2869
      %v3126 = vsel %vm2614, %v1840, %v2870
      %v3127 = vsel %vm2615, %v1845, %v2871
      %v3128 = vsel %vm2616, %v1848, %v2872
      %v3129 = vsel %vm2617, %v1853, %v2873
      %v3130 = vsel %vm2618, %v1856, %v2874
      %v3131 = vsel %vm2619, %v1861, %v2875
      %v3132 = vsel %vm2620, %v1864, %v2876
      %v3133 = vsel %vm2621, %v1869, %v2877
      %v3134 = vsel %vm2622, %v1872, %v2878
      %v3135 = vsel %vm2623, %v1877, %v2879
      %v3136 = vsel %vm2624, %v1880, %v2880
      %v3137 = vsel %vm2625, %v1885, %v2881
      %v3138 = vsel %vm2626, %v1888, %v2882
      %v3139 = vsel %vm2627, %v1893, %v2883
      %v3140 = vsel %vm2628, %v1896, %v2884
      %v3141 = vsel %vm2629, %v1901, %v2885
      %v3142 = vsel %vm2630, %v1904, %v2886
      %v3143 = vsel %vm2631, %v1909, %v2887
      %v3144 = vsel %vm2632, %v1912, %v2888
      %v3145 = vsel %vm2633, %v1917, %v2889
      %v3146 = vsel %vm2634, %v1920, %v2890
      %v3147 = vsel %vm2635, %v1925, %v2891
      %v3148 = vsel %vm2636, %v1928, %v2892
      %v3149 = vsel %vm2637, %v1933, %v2893
      %v3150 = vsel %vm2638, %v1936, %v2894
      %v3151 = vsel %vm2639, %v1941, %v2895
      %v3152 = vsel %vm2640, %v1944, %v2896
      %v3153 = vsel %vm2641, %v1949, %v2897
      %v3154 = vsel %vm2642, %v1952, %v2898
      %v3155 = vsel %vm2643, %v1957, %v2899
      %v3156 = vsel %vm2644, %v1960, %v2900
      %v3157 = vsel %vm2645, %v1965, %v2901
      %v3158 = vsel %vm2646, %v1968, %v2902
      %v3159 = vsel %vm2647, %v1973, %v2903
      %v3160 = vsel %vm2648, %v1976, %v2904
      %v3161 = vsel %vm2649, %v1981, %v2905
      %v3162 = vsel %vm2650, %v1984, %v2906
      %v3163 = vsel %vm2651, %v1989, %v2907
      %v3164 = vsel %vm2652, %v1992, %v2908
      %v3165 = vsel %vm2653, %v1997, %v2909
      %v3166 = vsel %vm2654, %v2000, %v2910
      %v3167 = vsel %vm2655, %v2005, %v2911
      %v3168 = vsel %vm2656, %v2008, %v2912
      %v3169 = vsel %vm2657, %v2013, %v2913
      %v3170 = vsel %vm2658, %v2016, %v2914
      %v3171 = vsel %vm2659, %v2021, %v2915
      %v3172 = vsel %vm2660, %v2024, %v2916
      %v3173 = vsel %vm2661, %v2029, %v2917
      %v3174 = vsel %vm2662, %v2032, %v2918
      %v3175 = vsel %vm2663, %v2037, %v2919
      %v3176 = vsel %vm2664, %v2040, %v2920
      %v3177 = vsel %vm2665, %v2045, %v2921
      %v3178 = vsel %vm2666, %v2048, %v2922
      %v3179 = vsel %vm2667, %v2053, %v2923
      %v3180 = vsel %vm2668, %v2056, %v2924
      %v3181 = vsel %vm2669, %v2061, %v2925
      %v3182 = vsel %vm2670, %v2064, %v2926
      %v3183 = vsel %vm2671, %v2069, %v2927
      %v3184 = vsel %vm2672, %v2072, %v2928
      %v3185 = vsel %vm2673, %v2077, %v2929
      %v3186 = vsel %vm2674, %v2080, %v2930
      %v3187 = vsel %vm2675, %v2085, %v2931
      %v3188 = vsel %vm2676, %v2088, %v2932
      %v3189 = vsel %vm2677, %v2093, %v2933
      %v3190 = vsel %vm2678, %v2096, %v2934
      %v3191 = vsel %vm2679, %v2101, %v2935
      %v3192 = vsel %vm2680, %v2104, %v2936
      %v3193 = vsel %vm2681, %v2109, %v2937
      %v3194 = vsel %vm2682, %v2112, %v2938
      %v3195 = vsel %vm2683, %v2117, %v2939
      %v3196 = vsel %vm2684, %v2120, %v2940
      %v3197 = vsel %vm2685, %v2125, %v2941
      %v3198 = vsel %vm2686, %v2128, %v2942
      %v3199 = vsel %vm2687, %v2133, %v2943
      %v3200 = vsel %vm2688, %v2136, %v2944
      %v3201 = vsel %vm2689, %v2141, %v2945
      %v3202 = vsel %vm2690, %v2144, %v2946
      %v3203 = vsel %vm2691, %v2149, %v2947
      %v3204 = vsel %vm2692, %v2152, %v2948
      %v3205 = vsel %vm2693, %v2157, %v2949
      %v3206 = vsel %vm2694, %v2160, %v2950
      %v3207 = vsel %vm2695, %v2165, %v2951
      %v3208 = vsel %vm2696, %v2168, %v2952
      %v3209 = vsel %vm2697, %v2173, %v2953
      %v3210 = vsel %vm2698, %v2176, %v2954
      %v3211 = vsel %vm2699, %v2181, %v2955
      %v3212 = vsel %vm2700, %v2184, %v2956
      %v3213 = vsel %vm2701, %v2189, %v2957
      %v3214 = vsel %vm2702, %v2192, %v2958
      %v3215 = vsel %vm2703, %v2197, %v2959
      %v3216 = vsel %vm2704, %v2200, %v2960
      %v3217 = vsel %vm2705, %v2205, %v2961
      %v3218 = vsel %vm2706, %v2208, %v2962
      %v3219 = vsel %vm2707, %v2213, %v2963
      %v3220 = vsel %vm2708, %v2216, %v2964
      %v3221 = vsel %vm2709, %v2221, %v2965
      %v3222 = vsel %vm2710, %v2224, %v2966
      %v3223 = vsel %vm2711, %v2229, %v2967
      %v3224 = vsel %vm2712, %v2232, %v2968
      %v3225 = vsel %vm2713, %v2237, %v2969
      %v3226 = vsel %vm2714, %v2240, %v2970
      %v3227 = vsel %vm2715, %v2245, %v2971
      %v3228 = vsel %vm2716, %v2248, %v2972
      %v3229 = vsel %vm2717, %v2253, %v2973
      %v3230 = vsel %vm2718, %v2256, %v2974
      %v3231 = vsel %vm2719, %v2261, %v2975
      %v3232 = vsel %vm2720, %v2264, %v2976
      %v3233 = vsel %vm2721, %v2269, %v2977
      %v3234 = vsel %vm2722, %v2272, %v2978
      %v3235 = vsel %vm2723, %v2277, %v2979
      %v3236 = vsel %vm2724, %v2280, %v2980
      %v3237 = vsel %vm2725, %v2285, %v2981
      %v3238 = vsel %vm2726, %v2288, %v2982
      %v3239 = vsel %vm2727, %v2293, %v2983
      %v3240 = vsel %vm2728, %v2296, %v2984
      %v3241 = vsel %vm2729, %v2301, %v2985
      %v3242 = vsel %vm2730, %v2304, %v2986
      %v3243 = vsel %vm2731, %v2309, %v2987
      %v3244 = vsel %vm2732, %v2312, %v2988
      %v3245 = vsel %vm2733, %v2317, %v2989
      %v3246 = vsel %vm2734, %v2320, %v2990
      %v3247 = vsel %vm2735, %v2325, %v2991
      %v3248 = vsel %vm2736, %v2328, %v2992
      %v3249 = vsel %vm2737, %v2333, %v2993
      %v3250 = vsel %vm2738, %v2336, %v2994
      %v3251 = vsel %vm2739, %v2341, %v2995
      %v3252 = vsel %vm2740, %v2344, %v2996
      %v3253 = vsel %vm2741, %v2349, %v2997
      %v3254 = vsel %vm2742, %v2352, %v2998
      %v3255 = vsel %vm2743, %v2357, %v2999
      %v3256 = vsel %vm2744, %v2360, %v3000
      %v3257 = vsel %vm2745, %v2365, %v3001
      %v3258 = vsel %vm2746, %v2368, %v3002
      %v3259 = vsel %vm2747, %v2373, %v3003
      %v3260 = vsel %vm2748, %v2376, %v3004
      %v3261 = vsel %vm2749, %v2381, %v3005
      %v3262 = vsel %vm2750, %v2384, %v3006
      %v3263 = vsel %vm2751, %v2389, %v3007
      %v3264 = vsel %vm2752, %v2392, %v3008
      %v3265 = vsel %vm2753, %v2397, %v3009
      %v3266 = vsel %vm2754, %v2400, %v3010
      %v3267 = vsel %vm2755, %v2405, %v3011
      %v3268 = vsel %vm2756, %v2408, %v3012
      %v3269 = vsel %vm2757, %v2413, %v3013
      %v3270 = vsel %vm2758, %v2416, %v3014
      %v3271 = vsel %vm2759, %v2421, %v3015
      %v3272 = vsel %vm2760, %v2424, %v3016
      %v3273 = vsel %vm2761, %v2429, %v3017
      %v3274 = vsel %vm2762, %v2432, %v3018
      %v3275 = vsel %vm2763, %v2437, %v3019
      %v3276 = vsel %vm2764, %v2440, %v3020
      %v3277 = vsel %vm2765, %v2445, %v3021
      %v3278 = vsel %vm2766, %v2448, %v3022
      %v3279 = vsel %vm2767, %v2453, %v3023
      %v3280 = vsel %vm2768, %v2456, %v3024
      %v3281 = vsel %vm2769, %v2461, %v3025
      %v3282 = vsel %vm2770, %v2464, %v3026
      %v3283 = vsel %vm2771, %v2469, %v3027
      %v3284 = vsel %vm2772, %v2472, %v3028
      %v3285 = vsel %vm2773, %v2477, %v3029
      %v3286 = vsel %vm2774, %v2480, %v3030
      %v3287 = vsel %vm2775, %v2485, %v3031
      %v3288 = vsel %vm2776, %v2488, %v3032
      %v3289 = vsel %vm2777, %v2493, %v3033
      %v3290 = vsel %vm2778, %v2496, %v3034
      %v3291 = vsel %vm2779, %v2501, %v3035
      %v3292 = vsel %vm2780, %v2504, %v3036
      %v3293 = vsel %vm2781, %v2509, %v3037
      %v3294 = vsel %vm2782, %v2512, %v3038
      %v3295 = vsel %vm2783, %v2517, %v3039
      %v3296 = vsel %vm2784, %v2520, %v3040
      %v3297 = vsel %vm2785, %v2525, %v3041
      %v3298 = vsel %vm2786, %v2528, %v3042
      %v3299 = vadd.f32 %v3043, %v3044
      %v3300 = vadd.f32 %v3299, %v3045
      %v3301 = vadd.f32 %v3300, %v3046
      %v3302 = vadd.f32 %v3301, %v3047
      %v3303 = vadd.f32 %v3302, %v3048
      %v3304 = vadd.f32 %v3303, %v3049
      %v3305 = vadd.f32 %v3304, %v3050
      %v3306 = vadd.f32 %v3305, %v3051
      %v3307 = vadd.f32 %v3306, %v3052
      %v3308 = vadd.f32 %v3307, %v3053
      %v3309 = vadd.f32 %v3308, %v3054
      %v3310 = vadd.f32 %v3309, %v3055
      %v3311 = vadd.f32 %v3310, %v3056
      %v3312 = vadd.f32 %v3311, %v3057
      %v3313 = vadd.f32 %v3312, %v3058
      %v3314 = vadd.f32 %v3313, %v3059
      %v3315 = vadd.f32 %v3314, %v3060
      %v3316 = vadd.f32 %v3315, %v3061
      %v3317 = vadd.f32 %v3316, %v3062
      %v3318 = vadd.f32 %v3317, %v3063
      %v3319 = vadd.f32 %v3318, %v3064
      %v3320 = vadd.f32 %v3319, %v3065
      %v3321 = vadd.f32 %v3320, %v3066
      %v3322 = vadd.f32 %v3321, %v3067
      %v3323 = vadd.f32 %v3322, %v3068
      %v3324 = vadd.f32 %v3323, %v3069
      %v3325 = vadd.f32 %v3324, %v3070
      %v3326 = vadd.f32 %v3325, %v3071
      %v3327 = vadd.f32 %v3326, %v3072
      %v3328 = vadd.f32 %v3327, %v3073
      %v3329 = vadd.f32 %v3328, %v3074
      %v3330 = vrot.slane %v3329, 4
      %v3331 = vadd.f32 %v3329, %v3330
      %v3332 = vrot.slane %v3331, 2
      %v3333 = vadd.f32 %v3331, %v3332
      %v3334 = vrot.slane %v3333, 1
      %v3335 = vadd.f32 %v3333, %v3334
      %v3336 = vadd.f32 %v3075, %v3076
      %v3337 = vadd.f32 %v3336, %v3077
      %v3338 = vadd.f32 %v3337, %v3078
      %v3339 = vadd.f32 %v3338, %v3079
      %v3340 = vadd.f32 %v3339, %v3080
      %v3341 = vadd.f32 %v3340, %v3081
      %v3342 = vadd.f32 %v3341, %v3082
      %v3343 = vadd.f32 %v3342, %v3083
      %v3344 = vadd.f32 %v3343, %v3084
      %v3345 = vadd.f32 %v3344, %v3085
      %v3346 = vadd.f32 %v3345, %v3086
      %v3347 = vadd.f32 %v3346, %v3087
      %v3348 = vadd.f32 %v3347, %v3088
      %v3349 = vadd.f32 %v3348, %v3089
      %v3350 = vadd.f32 %v3349, %v3090
      %v3351 = vadd.f32 %v3350, %v3091
      %v3352 = vadd.f32 %v3351, %v3092
      %v3353 = vadd.f32 %v3352, %v3093
      %v3354 = vadd.f32 %v3353, %v3094
      %v3355 = vadd.f32 %v3354, %v3095
      %v3356 = vadd.f32 %v3355, %v3096
      %v3357 = vadd.f32 %v3356, %v3097
      %v3358 = vadd.f32 %v3357, %v3098
      %v3359 = vadd.f32 %v3358, %v3099
      %v3360 = vadd.f32 %v3359, %v3100
      %v3361 = vadd.f32 %v3360, %v3101
      %v3362 = vadd.f32 %v3361, %v3102
      %v3363 = vadd.f32 %v3362, %v3103
      %v3364 = vadd.f32 %v3363, %v3104
      %v3365 = vadd.f32 %v3364, %v3105
      %v3366 = vadd.f32 %v3365, %v3106
      %v3367 = vrot.slane %v3366, 4
      %v3368 = vadd.f32 %v3366, %v3367
      %v3369 = vrot.slane %v3368, 2
      %v3370 = vadd.f32 %v3368, %v3369
      %v3371 = vrot.slane %v3370, 1
      %v3372 = vadd.f32 %v3370, %v3371
      %v3373 = vadd.f32 %v3107, %v3108
      %v3374 = vadd.f32 %v3373, %v3109
      %v3375 = vadd.f32 %v3374, %v3110
      %v3376 = vadd.f32 %v3375, %v3111
      %v3377 = vadd.f32 %v3376, %v3112
      %v3378 = vadd.f32 %v3377, %v3113
      %v3379 = vadd.f32 %v3378, %v3114
      %v3380 = vadd.f32 %v3379, %v3115
      %v3381 = vadd.f32 %v3380, %v3116
      %v3382 = vadd.f32 %v3381, %v3117
      %v3383 = vadd.f32 %v3382, %v3118
      %v3384 = vadd.f32 %v3383, %v3119
      %v3385 = vadd.f32 %v3384, %v3120
      %v3386 = vadd.f32 %v3385, %v3121
      %v3387 = vadd.f32 %v3386, %v3122
      %v3388 = vadd.f32 %v3387, %v3123
      %v3389 = vadd.f32 %v3388, %v3124
      %v3390 = vadd.f32 %v3389, %v3125
      %v3391 = vadd.f32 %v3390, %v3126
      %v3392 = vadd.f32 %v3391, %v3127
      %v3393 = vadd.f32 %v3392, %v3128
      %v3394 = vadd.f32 %v3393, %v3129
      %v3395 = vadd.f32 %v3394, %v3130
      %v3396 = vadd.f32 %v3395, %v3131
      %v3397 = vadd.f32 %v3396, %v3132
      %v3398 = vadd.f32 %v3397, %v3133
      %v3399 = vadd.f32 %v3398, %v3134
      %v3400 = vadd.f32 %v3399, %v3135
      %v3401 = vadd.f32 %v3400, %v3136
      %v3402 = vadd.f32 %v3401, %v3137
      %v3403 = vadd.f32 %v3402, %v3138
      %v3404 = vrot.slane %v3403, 4
      %v3405 = vadd.f32 %v3403, %v3404
      %v3406 = vrot.slane %v3405, 2
      %v3407 = vadd.f32 %v3405, %v3406
      %v3408 = vrot.slane %v3407, 1
      %v3409 = vadd.f32 %v3407, %v3408
      %v3410 = vadd.f32 %v3139, %v3140
      %v3411 = vadd.f32 %v3410, %v3141
      %v3412 = vadd.f32 %v3411, %v3142
      %v3413 = vadd.f32 %v3412, %v3143
      %v3414 = vadd.f32 %v3413, %v3144
      %v3415 = vadd.f32 %v3414, %v3145
      %v3416 = vadd.f32 %v3415, %v3146
      %v3417 = vadd.f32 %v3416, %v3147
      %v3418 = vadd.f32 %v3417, %v3148
      %v3419 = vadd.f32 %v3418, %v3149
      %v3420 = vadd.f32 %v3419, %v3150
      %v3421 = vadd.f32 %v3420, %v3151
      %v3422 = vadd.f32 %v3421, %v3152
      %v3423 = vadd.f32 %v3422, %v3153
      %v3424 = vadd.f32 %v3423, %v3154
      %v3425 = vadd.f32 %v3424, %v3155
      %v3426 = vadd.f32 %v3425, %v3156
      %v3427 = vadd.f32 %v3426, %v3157
      %v3428 = vadd.f32 %v3427, %v3158
      %v3429 = vadd.f32 %v3428, %v3159
      %v3430 = vadd.f32 %v3429, %v3160
      %v3431 = vadd.f32 %v3430, %v3161
      %v3432 = vadd.f32 %v3431, %v3162
      %v3433 = vadd.f32 %v3432, %v3163
      %v3434 = vadd.f32 %v3433, %v3164
      %v3435 = vadd.f32 %v3434, %v3165
      %v3436 = vadd.f32 %v3435, %v3166
      %v3437 = vadd.f32 %v3436, %v3167
      %v3438 = vadd.f32 %v3437, %v3168
      %v3439 = vadd.f32 %v3438, %v3169
      %v3440 = vadd.f32 %v3439, %v3170
      %v3441 = vrot.slane %v3440, 4
      %v3442 = vadd.f32 %v3440, %v3441
      %v3443 = vrot.slane %v3442, 2
      %v3444 = vadd.f32 %v3442, %v3443
      %v3445 = vrot.slane %v3444, 1
      %v3446 = vadd.f32 %v3444, %v3445
      %v3447 = vadd.f32 %v3171, %v3172
      %v3448 = vadd.f32 %v3447, %v3173
      %v3449 = vadd.f32 %v3448, %v3174
      %v3450 = vadd.f32 %v3449, %v3175
      %v3451 = vadd.f32 %v3450, %v3176
      %v3452 = vadd.f32 %v3451, %v3177
      %v3453 = vadd.f32 %v3452, %v3178
      %v3454 = vadd.f32 %v3453, %v3179
      %v3455 = vadd.f32 %v3454, %v3180
      %v3456 = vadd.f32 %v3455, %v3181
      %v3457 = vadd.f32 %v3456, %v3182
      %v3458 = vadd.f32 %v3457, %v3183
      %v3459 = vadd.f32 %v3458, %v3184
      %v3460 = vadd.f32 %v3459, %v3185
      %v3461 = vadd.f32 %v3460, %v3186
      %v3462 = vadd.f32 %v3461, %v3187
      %v3463 = vadd.f32 %v3462, %v3188
      %v3464 = vadd.f32 %v3463, %v3189
      %v3465 = vadd.f32 %v3464, %v3190
      %v3466 = vadd.f32 %v3465, %v3191
      %v3467 = vadd.f32 %v3466, %v3192
      %v3468 = vadd.f32 %v3467, %v3193
      %v3469 = vadd.f32 %v3468, %v3194
      %v3470 = vadd.f32 %v3469, %v3195
      %v3471 = vadd.f32 %v3470, %v3196
      %v3472 = vadd.f32 %v3471, %v3197
      %v3473 = vadd.f32 %v3472, %v3198
      %v3474 = vadd.f32 %v3473, %v3199
      %v3475 = vadd.f32 %v3474, %v3200
      %v3476 = vadd.f32 %v3475, %v3201
      %v3477 = vadd.f32 %v3476, %v3202
      %v3478 = vrot.slane %v3477, 4
      %v3479 = vadd.f32 %v3477, %v3478
      %v3480 = vrot.slane %v3479, 2
      %v3481 = vadd.f32 %v3479, %v3480
      %v3482 = vrot.slane %v3481, 1
      %v3483 = vadd.f32 %v3481, %v3482
      %v3484 = vadd.f32 %v3203, %v3204
      %v3485 = vadd.f32 %v3484, %v3205
      %v3486 = vadd.f32 %v3485, %v3206
      %v3487 = vadd.f32 %v3486, %v3207
      %v3488 = vadd.f32 %v3487, %v3208
      %v3489 = vadd.f32 %v3488, %v3209
      %v3490 = vadd.f32 %v3489, %v3210
      %v3491 = vadd.f32 %v3490, %v3211
      %v3492 = vadd.f32 %v3491, %v3212
      %v3493 = vadd.f32 %v3492, %v3213
      %v3494 = vadd.f32 %v3493, %v3214
      %v3495 = vadd.f32 %v3494, %v3215
      %v3496 = vadd.f32 %v3495, %v3216
      %v3497 = vadd.f32 %v3496, %v3217
      %v3498 = vadd.f32 %v3497, %v3218
      %v3499 = vadd.f32 %v3498, %v3219
      %v3500 = vadd.f32 %v3499, %v3220
      %v3501 = vadd.f32 %v3500, %v3221
      %v3502 = vadd.f32 %v3501, %v3222
      %v3503 = vadd.f32 %v3502, %v3223
      %v3504 = vadd.f32 %v3503, %v3224
      %v3505 = vadd.f32 %v3504, %v3225
      %v3506 = vadd.f32 %v3505, %v3226
      %v3507 = vadd.f32 %v3506, %v3227
      %v3508 = vadd.f32 %v3507, %v3228
      %v3509 = vadd.f32 %v3508, %v3229
      %v3510 = vadd.f32 %v3509, %v3230
      %v3511 = vadd.f32 %v3510, %v3231
      %v3512 = vadd.f32 %v3511, %v3232
      %v3513 = vadd.f32 %v3512, %v3233
      %v3514 = vadd.f32 %v3513, %v3234
      %v3515 = vrot.slane %v3514, 4
      %v3516 = vadd.f32 %v3514, %v3515
      %v3517 = vrot.slane %v3516, 2
      %v3518 = vadd.f32 %v3516, %v3517
      %v3519 = vrot.slane %v3518, 1
      %v3520 = vadd.f32 %v3518, %v3519
      %v3521 = vadd.f32 %v3235, %v3236
      %v3522 = vadd.f32 %v3521, %v3237
      %v3523 = vadd.f32 %v3522, %v3238
      %v3524 = vadd.f32 %v3523, %v3239
      %v3525 = vadd.f32 %v3524, %v3240
      %v3526 = vadd.f32 %v3525, %v3241
      %v3527 = vadd.f32 %v3526, %v3242
      %v3528 = vadd.f32 %v3527, %v3243
      %v3529 = vadd.f32 %v3528, %v3244
      %v3530 = vadd.f32 %v3529, %v3245
      %v3531 = vadd.f32 %v3530, %v3246
      %v3532 = vadd.f32 %v3531, %v3247
      %v3533 = vadd.f32 %v3532, %v3248
      %v3534 = vadd.f32 %v3533, %v3249
      %v3535 = vadd.f32 %v3534, %v3250
      %v3536 = vadd.f32 %v3535, %v3251
      %v3537 = vadd.f32 %v3536, %v3252
      %v3538 = vadd.f32 %v3537, %v3253
      %v3539 = vadd.f32 %v3538, %v3254
      %v3540 = vadd.f32 %v3539, %v3255
      %v3541 = vadd.f32 %v3540, %v3256
      %v3542 = vadd.f32 %v3541, %v3257
      %v3543 = vadd.f32 %v3542, %v3258
      %v3544 = vadd.f32 %v3543, %v3259
      %v3545 = vadd.f32 %v3544, %v3260
      %v3546 = vadd.f32 %v3545, %v3261
      %v3547 = vadd.f32 %v3546, %v3262
      %v3548 = vadd.f32 %v3547, %v3263
      %v3549 = vadd.f32 %v3548, %v3264
      %v3550 = vadd.f32 %v3549, %v3265
      %v3551 = vadd.f32 %v3550, %v3266
      %v3552 = vrot.slane %v3551, 4
      %v3553 = vadd.f32 %v3551, %v3552
      %v3554 = vrot.slane %v3553, 2
      %v3555 = vadd.f32 %v3553, %v3554
      %v3556 = vrot.slane %v3555, 1
      %v3557 = vadd.f32 %v3555, %v3556
      %v3558 = vadd.f32 %v3267, %v3268
      %v3559 = vadd.f32 %v3558, %v3269
      %v3560 = vadd.f32 %v3559, %v3270
      %v3561 = vadd.f32 %v3560, %v3271
      %v3562 = vadd.f32 %v3561, %v3272
      %v3563 = vadd.f32 %v3562, %v3273
      %v3564 = vadd.f32 %v3563, %v3274
      %v3565 = vadd.f32 %v3564, %v3275
      %v3566 = vadd.f32 %v3565, %v3276
      %v3567 = vadd.f32 %v3566, %v3277
      %v3568 = vadd.f32 %v3567, %v3278
      %v3569 = vadd.f32 %v3568, %v3279
      %v3570 = vadd.f32 %v3569, %v3280
      %v3571 = vadd.f32 %v3570, %v3281
      %v3572 = vadd.f32 %v3571, %v3282
      %v3573 = vadd.f32 %v3572, %v3283
      %v3574 = vadd.f32 %v3573, %v3284
      %v3575 = vadd.f32 %v3574, %v3285
      %v3576 = vadd.f32 %v3575, %v3286
      %v3577 = vadd.f32 %v3576, %v3287
      %v3578 = vadd.f32 %v3577, %v3288
      %v3579 = vadd.f32 %v3578, %v3289
      %v3580 = vadd.f32 %v3579, %v3290
      %v3581 = vadd.f32 %v3580, %v3291
      %v3582 = vadd.f32 %v3581, %v3292
      %v3583 = vadd.f32 %v3582, %v3293
      %v3584 = vadd.f32 %v3583, %v3294
      %v3585 = vadd.f32 %v3584, %v3295
      %v3586 = vadd.f32 %v3585, %v3296
      %v3587 = vadd.f32 %v3586, %v3297
      %v3588 = vadd.f32 %v3587, %v3298
      %v3589 = vrot.slane %v3588, 4
      %v3590 = vadd.f32 %v3588, %v3589
      %v3591 = vrot.slane %v3590, 2
      %v3592 = vadd.f32 %v3590, %v3591
      %v3593 = vrot.slane %v3592, 1
      %v3594 = vadd.f32 %v3592, %v3593
      %vm3603 = vcmask 1041409
      %v3604 = vsel %vm3603, %v3372, %v3335
      %vm3605 = vcmask 1042434
      %v3606 = vsel %vm3605, %v3409, %v3604
      %vm3607 = vcmask 1043459
      %v3608 = vsel %vm3607, %v3446, %v3606
      %vm3609 = vcmask 1044484
      %v3610 = vsel %vm3609, %v3483, %v3608
      %vm3611 = vcmask 1045509
      %v3612 = vsel %vm3611, %v3520, %v3610
      %vm3613 = vcmask 1046534
      %v3614 = vsel %vm3613, %v3557, %v3612
      %vm3615 = vcmask 1047559
      %v3616 = vsel %vm3615, %v3594, %v3614
      %3618 = vst [vmem:[%s170] sm:$0xff] %v3616
      %p3619 = scmp.lt.s32.totalorder %s14, 1
      %s3620 = scalar_select %p3619, %s14, 1
      %s3621 = smul.addr %s3620, 8
      %s3622 = scalar_lea.vmem %s3, %s3621
      // Predicated region
      $region33: #{_lambda_.2} parent=31 // pred_check
        %p3623 = pneg %p100
      $region34: #{_lambda_.2} parent=31 // pred_check_branch
        %3625 = sbr.rel (%p3623) target = $region36
      $region35: #{_lambda_.2} parent=31 // pred_region
        _
      $region36: #{_lambda_.2} parent=31 // pred_fallthru
        _
    $region32: #{_lambda_.2} parent=5 // pred_fallthru
      _
    %p3626 = scmp.le.s32.totalorder 2, %s9
    // Predicated region
    $region37: #{_lambda_.2} parent=5 // pred_check
      %p3627 = pneg %p3626
    $region38: #{_lambda_.2} parent=5 // pred_check_branch
      %3629 = sbr.rel (%p3627) target = $region40
    $region39: #{_lambda_.2} parent=5 // pred_region
      %s3630 = ssub.s32 %s9, 2
      // Predicated region
      $region41: #{_lambda_.2} parent=39 // pred_check
        %p3631 = pneg %p106
      $region42: #{_lambda_.2} parent=39 // pred_check_branch
        %3633 = sbr.rel (%p3631) target = $region44
      $region43: #{_lambda_.2} parent=39 // pred_region
        %p3634 = scmp.lt.s32.totalorder %s15, 1
        %s3635 = scalar_select %p3634, %s15, 1
        %s3636 = smul.addr %s3635, 8
        %s3637 = scalar_lea.vmem %s3, %s3636
      $region44: #{_lambda_.2} parent=39 // pred_fallthru
        _
    $region40: #{_lambda_.2} parent=5 // pred_fallthru
      _
  $region6: #{_lambda_.2} parent=0 // loop_footer
    %s13 = sadd.s32 1, %s9
  $region7: #{_lambda_.2} parent=0 // loop_footer_branch
    %8 = sbr.rel target = $region3
  $region8: #{_lambda_.2} parent=0 // loop_exit
    _

</llo_original>
